<compile_context>
chip_gen: v5e
topology: v5e:2x2
jax: 0.10.0
libtpu: 0.0.40
codegen_flags: <defaults>
</compile_context>

<pallas_src>
import math

import numpy as np
import jax
import jax.numpy as jnp
from jax import lax
from jax.experimental import pallas as pl
from jax.experimental.pallas import tpu as pltpu

# ---------------- config consistent with the module ----------------
BASE_FEAT = 32            # cfg.model.base_feat_size
IMG_FEAT = 64             # cfg.model.img_feat_size (> 0 -> img_feat_proj exists)
NUM_HEADS = 4             # cfg.model.pte.num_heads
NUM_LAYERS = 2            # cfg.model.pte.num_layers
DIM_FF = 2048             # nn.TransformerEncoderLayer default dim_feedforward
NUM_CLASSES = (8, 12)     # cfg.model.num_classes
NUM_ACTIONS = 3           # cfg.model.num_actions_to_predict == total_actions_to_predict
NUM_INPUT_CLIPS = 2       # cfg.data.input_segments[1] - cfg.data.input_segments[0]
NUM_IMG_PER_CLIP = 2      # cfg.data.image.num_images_per_segment
NUM_IMG_TOKENS = NUM_INPUT_CLIPS * NUM_IMG_PER_CLIP
BATCH = 2
MAX_LEN = 1000
LN_EPS = 1e-5             # PyTorch LayerNorm default eps
HEAD_DIM = BASE_FEAT // NUM_HEADS

IMG_ROWS = BATCH * NUM_IMG_TOKENS       # 8  (image-token rows, sublane-tile aligned)
QRY_ROWS = BATCH * NUM_ACTIONS          # 6  (query rows)
ROWS_PAD = 16                           # 8 img + 6 qry + 2 dummy rows -> sublane-aligned slab
OUT_ROWS = ROWS_PAD - IMG_ROWS          # 8  -> full (8,128) output tile store
HEAD_PAD = 128                          # lane-dense classification-head output
NEG = -1e30

# rows of the packed small-vector table (NVEC, BASE_FEAT)
V_PROJ_B, V_POS_G, V_POS_B, V_ENC_G, V_ENC_B = 0, 1, 2, 3, 4
V_LAYER0, V_PER_LAYER = 5, 6
VO_BO, VO_LN1G, VO_LN1B, VO_B2, VO_LN2G, VO_LN2B = 0, 1, 2, 3, 4, 5
NVEC = V_LAYER0 + NUM_LAYERS * V_PER_LAYER          # 17


# ---------------- the fused Pallas kernel ----------------

def _fused_forward_kernel(key_pad_ref, imgf_ref, img_pos_ref, qtok_ref,
                          pw_ref, vec_ref, win_ref, bin_ref, wo_ref,
                          w1_ref, b1_ref, w2t_ref, hw_ref, hb_ref,
                          out_ref):
    D, dh = BASE_FEAT, HEAD_DIM
    scale = 1.0 / math.sqrt(dh)

    def vrow(i):                                  # static row of the packed vector table
        return vec_ref[i:i + 1, :]                # (1, D)

    def ln(x, g, b):
        m = jnp.mean(x, axis=-1, keepdims=True)
        v = jnp.mean(jnp.square(x - m), axis=-1, keepdims=True)
        return (x - m) * lax.rsqrt(v + LN_EPS) * g + b

    # --- image branch: img_feat_proj + positional encoding + LayerNorm ---
    img = jnp.dot(imgf_ref[...], pw_ref[...],
                  preferred_element_type=jnp.float32) + vrow(V_PROJ_B)        # (IMG_ROWS, D)
    img = ln(img + img_pos_ref[...], vrow(V_POS_G), vrow(V_POS_B))
    # --- query branch: (queries + modality_token) pre-combined; 2 dummy pad rows at the end ---
    qtok = ln(qtok_ref[...], vrow(V_POS_G), vrow(V_POS_B))                    # (OUT_ROWS, D)
    x = jnp.concatenate([img, qtok], axis=0)                                  # (ROWS_PAD, D)

    # --- attention bias built in-kernel: same-batch block structure + key padding ---
    r = lax.broadcasted_iota(jnp.int32, (ROWS_PAD, ROWS_PAD), 0)
    c = lax.broadcasted_iota(jnp.int32, (ROWS_PAD, ROWS_PAD), 1)

    def batch_of(idx):
        # image rows 0..IMG_ROWS-1 in groups of NUM_IMG_TOKENS; query rows in groups of
        # NUM_ACTIONS; the 2 trailing dummy rows land in a non-existent batch -> isolated.
        img_b = jnp.zeros_like(idx)
        for b in range(1, BATCH):
            img_b = img_b + (idx >= b * NUM_IMG_TOKENS).astype(jnp.int32)
        qry_b = jnp.zeros_like(idx)
        for b in range(1, BATCH + 1):
            qry_b = qry_b + (idx >= IMG_ROWS + b * NUM_ACTIONS).astype(jnp.int32)
        return jnp.where(idx < IMG_ROWS, img_b, qry_b)

    same = batch_of(r) == batch_of(c)
    not_padded = key_pad_ref[...] < 0.5                                       # (1, ROWS_PAD) keys
    bias = jnp.where(jnp.logical_and(same, not_padded), 0.0, NEG)             # (ROWS_PAD, ROWS_PAD)

    for l in range(NUM_LAYERS):
        base = V_LAYER0 + l * V_PER_LAYER

        # ---- multi-head self-attention: ONE fused QKV matmul per layer ----
        qkv = jnp.dot(x, win_ref[l], preferred_element_type=jnp.float32) + bin_ref[l]   # (R, 3D)
        attn_out = vrow(base + VO_BO)                                          # out-proj bias
        for h in range(NUM_HEADS):
            q = qkv[:, 0 * D + h * dh:0 * D + (h + 1) * dh]
            k = qkv[:, 1 * D + h * dh:1 * D + (h + 1) * dh]
            v = qkv[:, 2 * D + h * dh:2 * D + (h + 1) * dh]
            s = lax.dot_general(q, k, (((1,), (1,)), ((), ())),
                                preferred_element_type=jnp.float32) * scale + bias
            m = jnp.max(s, axis=-1, keepdims=True)
            p = jnp.exp(s - m)
            denom = jnp.sum(p, axis=-1, keepdims=True)
            attn = p * pl.reciprocal(denom, approx=True)
            ctx = jnp.dot(attn, v, preferred_element_type=jnp.float32)         # (R, dh)
            # sublane-aligned row slice of the (D, D) out-projection -> per-head contribution
            attn_out = attn_out + jnp.dot(ctx, wo_ref[l, h * dh:(h + 1) * dh, :],
                                          preferred_element_type=jnp.float32)
        x = ln(x + attn_out, vrow(base + VO_LN1G), vrow(base + VO_LN1B))

        # ---- feed-forward: bf16 lane-dense weights, f32 accumulation, ReLU ----
        h1 = jnp.dot(x.astype(jnp.bfloat16), w1_ref[l],
                     preferred_element_type=jnp.float32) + b1_ref[l:l + 1, :]  # (R, DIM_FF)
        h1 = jnp.maximum(h1, 0.0)
        # FF2 weight stored transposed (D, DIM_FF): NT matmul keeps its layout lane-dense.
        h2 = lax.dot_general(h1.astype(jnp.bfloat16), w2t_ref[l],
                             (((1,), (1,)), ((), ())),
                             preferred_element_type=jnp.float32) + vrow(base + VO_B2)
        x = ln(x + h2, vrow(base + VO_LN2G), vrow(base + VO_LN2B))

    # ---- encoder final norm + MLPDecoder head (lane-padded to 128, full (8,128) store) ----
    x = ln(x, vrow(V_ENC_G), vrow(V_ENC_B))
    feats = x[IMG_ROWS:, :]                                                    # (OUT_ROWS, D)
    logits = jnp.dot(feats, hw_ref[...], preferred_element_type=jnp.float32) + hb_ref[...]
    out_ref[...] = logits.astype(out_ref.dtype)


# ---------------- one-time parameter packing (host side) ----------------

def prepare_params(params):
    """Packs module parameters into lane/sublane-dense kernel-ready tensors (done once)."""
    D = BASE_FEAT
    pos = params["pos"]

    # MMPositionalEncoding image-branch additive term per image token t = clip*imgs_per_clip + j
    abs_pe = pos["pe"][::-1][NUM_ACTIONS:]                                   # flip, drop query part
    clip_pe = abs_pe[:NUM_INPUT_CLIPS, 0, :]                                 # (clips, D)
    rel = pos["rel_pe"][:, 0, :]                                             # (imgs/clip, D)
    pe_img = (clip_pe[:, None, :] + rel[None, :, :]
              + pos["modality_tokens"][2][None, None, :]).reshape(NUM_IMG_TOKENS, D)
    img_pos = jnp.tile(pe_img, (BATCH, 1))                                   # row = b*T + t
    # query tokens (identical across batch): queries + modality_tokens[5], tiled per batch,
    # padded with 2 dummy rows so the token slab is 16 rows (sublane aligned).
    qtok = jnp.tile(params["queries"] + pos["modality_tokens"][5], (BATCH, 1))
    qtok = jnp.pad(qtok, ((0, OUT_ROWS - QRY_ROWS), (0, 0)))

    # packed small-vector table (NVEC, D)
    def r(v):
        return v.reshape(1, D)
    vec_rows = [r(params["img_proj_b"]), r(pos["ln_g"]), r(pos["ln_b"]),
                r(params["enc_ln_g"]), r(params["enc_ln_b"])]
    for lp in params["layers"]:
        vec_rows += [r(lp["attn"]["out_b"]), r(lp["ln1_g"]), r(lp["ln1_b"]),
                     r(lp["ff2_b"]), r(lp["ln2_g"]), r(lp["ln2_b"])]
    vec = jnp.concatenate(vec_rows, axis=0)                                  # (NVEC, D)
    assert vec.shape[0] == NVEC

    layers = params["layers"]
    n_cls = sum(NUM_CLASSES)
    prep = {
        "img_pos": img_pos,
        "qtok": qtok,
        "proj_w": params["img_proj_w"],
        "vec": vec,
        # fused QKV projection per layer: qkv = x @ w_in[l] + b_in[l]
        "w_in": jnp.stack([lp["attn"]["in_w"] for lp in layers], axis=0),          # (L, D, 3D)
        "b_in": jnp.stack([lp["attn"]["in_b"].reshape(1, 3 * D) for lp in layers]),# (L, 1, 3D)
        "wo": jnp.stack([lp["attn"]["out_w"] for lp in layers], axis=0),           # (L, D, D)
        "w1": jnp.stack([lp["ff1_w"] for lp in layers]).astype(jnp.bfloat16),      # (L, D, FF)
        "b1": jnp.stack([lp["ff1_b"] for lp in layers], axis=0),                   # (L, FF) f32
        "w2t": jnp.stack([lp["ff2_w"].T for lp in layers]).astype(jnp.bfloat16),   # (L, D, FF)
        # pad classification head to 128 lanes -> lane-dense head matmul + output store
        "head_w": jnp.pad(params["head_w"], ((0, 0), (0, HEAD_PAD - n_cls))),
        "head_b": jnp.pad(params["head_b"], (0, HEAD_PAD - n_cls)).reshape(1, HEAD_PAD),
    }
    return prep


# ---------------- forward wrapper ----------------

_VMEM_SPEC = pl.BlockSpec(memory_space=pltpu.MemorySpace.VMEM)


@jax.jit
def classification_forward(image_features, mask_image, prep):
    """ClassificationModule.forward with texts=None, pred_text=None (image-only path)."""
    imgf = image_features.reshape(IMG_ROWS, IMG_FEAT)             # row = b*T + t
    # key-padding row (1, ROWS_PAD): image tokens may be padded, query/dummy rows never are.
    key_pad = jnp.pad(mask_image.reshape(1, IMG_ROWS).astype(jnp.float32),
                      ((0, 0), (0, ROWS_PAD - IMG_ROWS)))

    args = (key_pad, imgf, prep["img_pos"], prep["qtok"],
            prep["proj_w"], prep["vec"],
            prep["w_in"], prep["b_in"], prep["wo"],
            prep["w1"], prep["b1"], prep["w2t"],
            prep["head_w"], prep["head_b"])

    out = pl.pallas_call(
        _fused_forward_kernel,
        out_shape=jax.ShapeDtypeStruct((OUT_ROWS, HEAD_PAD), jnp.float32),
        in_specs=[_VMEM_SPEC] * len(args),
        out_specs=_VMEM_SPEC,
    )(*args)

    logits = out[:QRY_ROWS, :sum(NUM_CLASSES)].reshape(BATCH, NUM_ACTIONS, sum(NUM_CLASSES))
    split_points = [int(c) for c in np.cumsum(NUM_CLASSES)[:-1]]
    return tuple(jnp.split(logits, split_points, axis=-1))        # torch.split(..., num_classes)


# ---------------- pure-JAX f32 reference (for correctness check only) ----------------

def reference_forward(image_features, mask_image, params):
    D, H, dh = BASE_FEAT, NUM_HEADS, HEAD_DIM

    def ln(x, g, b):
        m = x.mean(-1, keepdims=True)
        v = ((x - m) ** 2).mean(-1, keepdims=True)
        return (x - m) / jnp.sqrt(v + LN_EPS) * g + b

    img = image_features @ params["img_proj_w"] + params["img_proj_b"]       # (B,T,D)
    img = jnp.transpose(img, (1, 0, 2))                                      # (T,B,D)
    pos = params["pos"]
    abs_pe = pos["pe"][::-1][NUM_ACTIONS:]
    imgr = img.reshape(NUM_INPUT_CLIPS, NUM_IMG_PER_CLIP, BATCH, D)
    imgr = imgr + abs_pe[:NUM_INPUT_CLIPS][:, None] + pos["rel_pe"] + pos["modality_tokens"][2]
    img = ln(imgr.reshape(NUM_IMG_TOKENS, BATCH, D), pos["ln_g"], pos["ln_b"])
    q = jnp.broadcast_to(params["queries"][:, None, :], (NUM_ACTIONS, BATCH, D))
    q = ln(q + pos["modality_tokens"][5], pos["ln_g"], pos["ln_b"])
    x = jnp.concatenate([img, q], axis=0)                                    # (S,B,D)
    S = x.shape[0]
    mask = jnp.concatenate([mask_image, jnp.zeros((BATCH, NUM_ACTIONS), bool)], axis=1)
    bias = jnp.where(mask, NEG, 0.0)[:, None, None, :]                       # (B,1,1,S)
    for lp in params["layers"]:
        qkv = x @ lp["attn"]["in_w"] + lp["attn"]["in_b"]
        qq, kk, vv = jnp.split(qkv, 3, axis=-1)

        def heads(t):
            return t.reshape(S, BATCH, H, dh).transpose(1, 2, 0, 3)          # (B,H,S,dh)

        sc = jnp.einsum("bhqd,bhkd->bhqk", heads(qq), heads(kk)) / math.sqrt(dh) + bias
        p = jax.nn.softmax(sc, axis=-1)
        ctx = jnp.einsum("bhqk,bhkd->bhqd", p, heads(vv))
        ctx = ctx.transpose(2, 0, 1, 3).reshape(S, BATCH, D)
        attn_out = ctx @ lp["attn"]["out_w"] + lp["attn"]["out_b"]
        x = ln(x + attn_out, lp["ln1_g"], lp["ln1_b"])
        ff = jnp.maximum(x @ lp["ff1_w"] + lp["ff1_b"], 0.0) @ lp["ff2_w"] + lp["ff2_b"]
        x = ln(x + ff, lp["ln2_g"], lp["ln2_b"])
    x = ln(x, params["enc_ln_g"], params["enc_ln_b"])
    feats = jnp.transpose(x[-NUM_ACTIONS:], (1, 0, 2))                       # (B,Q,D)
    logits = feats @ params["head_w"] + params["head_b"]
    split_points = [int(c) for c in np.cumsum(NUM_CLASSES)[:-1]]
    return tuple(jnp.split(logits, split_points, axis=-1))


# ---------------- deterministic parameter init ----------------

def sinusoidal_pe(max_len, d_model):
    pe = np.zeros((max_len, d_model), dtype=np.float32)
    position = np.arange(max_len, dtype=np.float32)[:, None]
    div_term = np.exp(np.arange(0, d_model, 2, dtype=np.float32)
                      * (-math.log(10000.0) / d_model))
    pe[:, 0::2] = np.sin(position * div_term)
    pe[:, 1::2] = np.cos(position * div_term)
    return jnp.asarray(pe[:, None, :])          # (max_len, 1, d_model)


def init_params(key):
    def nrm(k, shape, scale=0.02):
        return scale * jax.random.normal(k, shape, dtype=jnp.float32)

    keys = iter(jax.random.split(key, 64))
    params = {
        "img_proj_w": nrm(next(keys), (IMG_FEAT, BASE_FEAT)),
        "img_proj_b": jnp.zeros((BASE_FEAT,), jnp.float32),
        "queries": nrm(next(keys), (NUM_ACTIONS, BASE_FEAT), 1.0),
        "pos": {
            "pe": sinusoidal_pe(MAX_LEN, BASE_FEAT),
            "modality_tokens": nrm(next(keys), (6, BASE_FEAT), 1.0),
            "rel_pe": jnp.zeros((NUM_IMG_PER_CLIP, 1, BASE_FEAT), jnp.float32),
            "ln_g": jnp.ones((BASE_FEAT,), jnp.float32),
            "ln_b": jnp.zeros((BASE_FEAT,), jnp.float32),
        },
        "enc_ln_g": jnp.ones((BASE_FEAT,), jnp.float32),
        "enc_ln_b": jnp.zeros((BASE_FEAT,), jnp.float32),
        "head_w": nrm(next(keys), (BASE_FEAT, sum(NUM_CLASSES))),
        "head_b": jnp.zeros((sum(NUM_CLASSES),), jnp.float32),
        "layers": [],
    }
    for _ in range(NUM_LAYERS):
        params["layers"].append({
            "attn": {
                "in_w": nrm(next(keys), (BASE_FEAT, 3 * BASE_FEAT)),
                "in_b": jnp.zeros((3 * BASE_FEAT,), jnp.float32),
                "out_w": nrm(next(keys), (BASE_FEAT, BASE_FEAT)),
                "out_b": jnp.zeros((BASE_FEAT,), jnp.float32),
            },
            "ln1_g": jnp.ones((BASE_FEAT,), jnp.float32),
            "ln1_b": jnp.zeros((BASE_FEAT,), jnp.float32),
            "ff1_w": nrm(next(keys), (BASE_FEAT, DIM_FF)),
            "ff1_b": jnp.zeros((DIM_FF,), jnp.float32),
            "ff2_w": nrm(next(keys), (DIM_FF, BASE_FEAT)),
            "ff2_b": jnp.zeros((BASE_FEAT,), jnp.float32),
            "ln2_g": jnp.ones((BASE_FEAT,), jnp.float32),
            "ln2_b": jnp.zeros((BASE_FEAT,), jnp.float32),
        })
    return params


if __name__ == "__main__":
    root = jax.random.PRNGKey(0)
    pkey, xkey = jax.random.split(root)
    params = init_params(pkey)
    prep = prepare_params(params)                 # one-time weight packing

    # image_features: (batch, num_input_clips * num_img_per_clip, img_feat_size)
    image_features = jax.random.normal(
        xkey, (BATCH, NUM_IMG_TOKENS, IMG_FEAT), dtype=jnp.float32)
    mask_image = jnp.zeros((BATCH, NUM_IMG_TOKENS), dtype=bool)   # no padded tokens

    logits_verb, logits_noun = classification_forward(image_features, mask_image, prep)
    jax.block_until_ready((logits_verb, logits_noun))

    assert logits_verb.shape == (BATCH, NUM_ACTIONS, NUM_CLASSES[0])
    assert logits_noun.shape == (BATCH, NUM_ACTIONS, NUM_CLASSES[1])
    assert bool(jnp.all(jnp.isfinite(logits_verb))) and bool(jnp.all(jnp.isfinite(logits_noun)))

    # correctness vs pure-JAX f32 reference (bf16 FF weights + approx reciprocal => small tol)
    ref_verb, ref_noun = reference_forward(image_features, mask_image, params)
    err = max(float(jnp.max(jnp.abs(logits_verb - ref_verb))),
              float(jnp.max(jnp.abs(logits_noun - ref_noun))))
    assert err < 5e-2, f"kernel/reference mismatch: max abs err = {err}"

    print("KERNEL_OK")
</pallas_src>

<mosaic_0001>
module attributes {stable_mosaic.version = 11 : i64} {
  func.func @_fused_forward_kernel(%arg0: memref<1x16xf32, #tpu.memory_space<vmem>>, %arg1: memref<8x64xf32, #tpu.memory_space<vmem>>, %arg2: memref<8x32xf32, #tpu.memory_space<vmem>>, %arg3: memref<8x32xf32, #tpu.memory_space<vmem>>, %arg4: memref<64x32xf32, #tpu.memory_space<vmem>>, %arg5: memref<17x32xf32, #tpu.memory_space<vmem>>, %arg6: memref<2x32x96xf32, #tpu.memory_space<vmem>>, %arg7: memref<2x1x96xf32, #tpu.memory_space<vmem>>, %arg8: memref<2x32x32xf32, #tpu.memory_space<vmem>>, %arg9: memref<2x32x2048xbf16, #tpu.memory_space<vmem>>, %arg10: memref<2x2048xf32, #tpu.memory_space<vmem>>, %arg11: memref<2x32x2048xbf16, #tpu.memory_space<vmem>>, %arg12: memref<32x128xf32, #tpu.memory_space<vmem>>, %arg13: memref<1x128xf32, #tpu.memory_space<vmem>>, %arg14: memref<8x128xf32, #tpu.memory_space<vmem>>) attributes {dimension_semantics = [], scalar_prefetch = 0 : i64, scratch_operands = 0 : i64, tpu.core_type = #tpu.core_type<tc>} {
    %c0 = arith.constant 0 : index
    %c0_0 = arith.constant 0 : index
    %0 = vector.load %arg1[%c0, %c0_0] : memref<8x64xf32, #tpu.memory_space<vmem>>, vector<8x64xf32>
    %c0_1 = arith.constant 0 : index
    %c0_2 = arith.constant 0 : index
    %1 = vector.load %arg4[%c0_1, %c0_2] : memref<64x32xf32, #tpu.memory_space<vmem>>, vector<64x32xf32>
    %cst = arith.constant dense<0.000000e+00> : vector<8x32xf32>
    %2 = tpu.matmul %0, %1, %cst {dimension_numbers = #tpu.dot_dimension_numbers<[1], [0], [0], [1], [0, 0, 1, 1], [], []>} : vector<8x64xf32>, vector<64x32xf32>, vector<8x32xf32> -> vector<8x32xf32>
    %c0_3 = arith.constant 0 : index
    %c0_4 = arith.constant 0 : index
    %3 = vector.load %arg5[%c0_3, %c0_4] : memref<17x32xf32, #tpu.memory_space<vmem>>, vector<1x32xf32>
    %4 = vector.broadcast %3 : vector<1x32xf32> to vector<8x32xf32>
    %5 = arith.addf %2, %4 : vector<8x32xf32>
    %c0_5 = arith.constant 0 : index
    %c0_6 = arith.constant 0 : index
    %6 = vector.load %arg2[%c0_5, %c0_6] : memref<8x32xf32, #tpu.memory_space<vmem>>, vector<8x32xf32>
    %7 = arith.addf %5, %6 : vector<8x32xf32>
    %c1 = arith.constant 1 : index
    %c0_7 = arith.constant 0 : index
    %8 = vector.load %arg5[%c1, %c0_7] : memref<17x32xf32, #tpu.memory_space<vmem>>, vector<1x32xf32>
    %c2 = arith.constant 2 : index
    %c0_8 = arith.constant 0 : index
    %9 = vector.load %arg5[%c2, %c0_8] : memref<17x32xf32, #tpu.memory_space<vmem>>, vector<1x32xf32>
    %cst_9 = arith.constant dense<0.000000e+00> : vector<8xf32>
    %10 = vector.multi_reduction <add>, %7, %cst_9 [1] : vector<8x32xf32> to vector<8xf32>
    %11 = vector.shape_cast %10 : vector<8xf32> to vector<8x1xf32>
    %cst_10 = arith.constant 3.200000e+01 : f32
    %12 = vector.broadcast %cst_10 : f32 to vector<8x1xf32>
    %13 = arith.divf %11, %12 : vector<8x1xf32>
    %14 = vector.broadcast %13 : vector<8x1xf32> to vector<8x32xf32>
    %15 = arith.subf %7, %14 : vector<8x32xf32>
    %16 = arith.mulf %15, %15 : vector<8x32xf32>
    %cst_11 = arith.constant dense<0.000000e+00> : vector<8xf32>
    %17 = vector.multi_reduction <add>, %16, %cst_11 [1] : vector<8x32xf32> to vector<8xf32>
    %18 = vector.shape_cast %17 : vector<8xf32> to vector<8x1xf32>
    %cst_12 = arith.constant 3.200000e+01 : f32
    %19 = vector.broadcast %cst_12 : f32 to vector<8x1xf32>
    %20 = arith.divf %18, %19 : vector<8x1xf32>
    %21 = vector.broadcast %13 : vector<8x1xf32> to vector<8x32xf32>
    %22 = arith.subf %7, %21 : vector<8x32xf32>
    %cst_13 = arith.constant 9.99999974E-6 : f32
    %23 = vector.broadcast %cst_13 : f32 to vector<8x1xf32>
    %24 = arith.addf %20, %23 : vector<8x1xf32>
    %25 = math.rsqrt %24 : vector<8x1xf32>
    %26 = vector.broadcast %25 : vector<8x1xf32> to vector<8x32xf32>
    %27 = arith.mulf %22, %26 : vector<8x32xf32>
    %28 = vector.broadcast %8 : vector<1x32xf32> to vector<8x32xf32>
    %29 = arith.mulf %27, %28 : vector<8x32xf32>
    %30 = vector.broadcast %9 : vector<1x32xf32> to vector<8x32xf32>
    %31 = arith.addf %29, %30 : vector<8x32xf32>
    %c0_14 = arith.constant 0 : index
    %c0_15 = arith.constant 0 : index
    %32 = vector.load %arg3[%c0_14, %c0_15] : memref<8x32xf32, #tpu.memory_space<vmem>>, vector<8x32xf32>
    %c1_16 = arith.constant 1 : index
    %c0_17 = arith.constant 0 : index
    %33 = vector.load %arg5[%c1_16, %c0_17] : memref<17x32xf32, #tpu.memory_space<vmem>>, vector<1x32xf32>
    %c2_18 = arith.constant 2 : index
    %c0_19 = arith.constant 0 : index
    %34 = vector.load %arg5[%c2_18, %c0_19] : memref<17x32xf32, #tpu.memory_space<vmem>>, vector<1x32xf32>
    %cst_20 = arith.constant dense<0.000000e+00> : vector<8xf32>
    %35 = vector.multi_reduction <add>, %32, %cst_20 [1] : vector<8x32xf32> to vector<8xf32>
    %36 = vector.shape_cast %35 : vector<8xf32> to vector<8x1xf32>
    %cst_21 = arith.constant 3.200000e+01 : f32
    %37 = vector.broadcast %cst_21 : f32 to vector<8x1xf32>
    %38 = arith.divf %36, %37 : vector<8x1xf32>
    %39 = vector.broadcast %38 : vector<8x1xf32> to vector<8x32xf32>
    %40 = arith.subf %32, %39 : vector<8x32xf32>
    %41 = arith.mulf %40, %40 : vector<8x32xf32>
    %cst_22 = arith.constant dense<0.000000e+00> : vector<8xf32>
    %42 = vector.multi_reduction <add>, %41, %cst_22 [1] : vector<8x32xf32> to vector<8xf32>
    %43 = vector.shape_cast %42 : vector<8xf32> to vector<8x1xf32>
    %cst_23 = arith.constant 3.200000e+01 : f32
    %44 = vector.broadcast %cst_23 : f32 to vector<8x1xf32>
    %45 = arith.divf %43, %44 : vector<8x1xf32>
    %46 = vector.broadcast %38 : vector<8x1xf32> to vector<8x32xf32>
    %47 = arith.subf %32, %46 : vector<8x32xf32>
    %cst_24 = arith.constant 9.99999974E-6 : f32
    %48 = vector.broadcast %cst_24 : f32 to vector<8x1xf32>
    %49 = arith.addf %45, %48 : vector<8x1xf32>
    %50 = math.rsqrt %49 : vector<8x1xf32>
    %51 = vector.broadcast %50 : vector<8x1xf32> to vector<8x32xf32>
    %52 = arith.mulf %47, %51 : vector<8x32xf32>
    %53 = vector.broadcast %33 : vector<1x32xf32> to vector<8x32xf32>
    %54 = arith.mulf %52, %53 : vector<8x32xf32>
    %55 = vector.broadcast %34 : vector<1x32xf32> to vector<8x32xf32>
    %56 = arith.addf %54, %55 : vector<8x32xf32>
    %57 = tpu.concatenate %31, %56 in 0 : vector<8x32xf32>, vector<8x32xf32> -> vector<16x32xf32>
    %58 = tpu.iota {dimensions = array<i32: 0>} : vector<16x16xi32>
    %59 = tpu.iota {dimensions = array<i32: 1>} : vector<16x16xi32>
    %c0_i32 = arith.constant 0 : i32
    %60 = vector.broadcast %c0_i32 : i32 to vector<16x16xi32>
    %c4_i32 = arith.constant 4 : i32
    %61 = vector.broadcast %c4_i32 : i32 to vector<16x16xi32>
    %62 = arith.cmpi sge, %58, %61 : vector<16x16xi32>
    %63 = arith.extui %62 : vector<16x16xi1> to vector<16x16xi32>
    %64 = arith.addi %60, %63 : vector<16x16xi32>
    %c0_i32_25 = arith.constant 0 : i32
    %65 = vector.broadcast %c0_i32_25 : i32 to vector<16x16xi32>
    %c11_i32 = arith.constant 11 : i32
    %66 = vector.broadcast %c11_i32 : i32 to vector<16x16xi32>
    %67 = arith.cmpi sge, %58, %66 : vector<16x16xi32>
    %68 = arith.extui %67 : vector<16x16xi1> to vector<16x16xi32>
    %69 = arith.addi %65, %68 : vector<16x16xi32>
    %c14_i32 = arith.constant 14 : i32
    %70 = vector.broadcast %c14_i32 : i32 to vector<16x16xi32>
    %71 = arith.cmpi sge, %58, %70 : vector<16x16xi32>
    %72 = arith.extui %71 : vector<16x16xi1> to vector<16x16xi32>
    %73 = arith.addi %69, %72 : vector<16x16xi32>
    %c8_i32 = arith.constant 8 : i32
    %74 = vector.broadcast %c8_i32 : i32 to vector<16x16xi32>
    %75 = arith.cmpi slt, %58, %74 : vector<16x16xi32>
    %76 = arith.select %75, %64, %73 : vector<16x16xi1>, vector<16x16xi32>
    %c0_i32_26 = arith.constant 0 : i32
    %77 = vector.broadcast %c0_i32_26 : i32 to vector<16x16xi32>
    %c4_i32_27 = arith.constant 4 : i32
    %78 = vector.broadcast %c4_i32_27 : i32 to vector<16x16xi32>
    %79 = arith.cmpi sge, %59, %78 : vector<16x16xi32>
    %80 = arith.extui %79 : vector<16x16xi1> to vector<16x16xi32>
    %81 = arith.addi %77, %80 : vector<16x16xi32>
    %c0_i32_28 = arith.constant 0 : i32
    %82 = vector.broadcast %c0_i32_28 : i32 to vector<16x16xi32>
    %c11_i32_29 = arith.constant 11 : i32
    %83 = vector.broadcast %c11_i32_29 : i32 to vector<16x16xi32>
    %84 = arith.cmpi sge, %59, %83 : vector<16x16xi32>
    %85 = arith.extui %84 : vector<16x16xi1> to vector<16x16xi32>
    %86 = arith.addi %82, %85 : vector<16x16xi32>
    %c14_i32_30 = arith.constant 14 : i32
    %87 = vector.broadcast %c14_i32_30 : i32 to vector<16x16xi32>
    %88 = arith.cmpi sge, %59, %87 : vector<16x16xi32>
    %89 = arith.extui %88 : vector<16x16xi1> to vector<16x16xi32>
    %90 = arith.addi %86, %89 : vector<16x16xi32>
    %c8_i32_31 = arith.constant 8 : i32
    %91 = vector.broadcast %c8_i32_31 : i32 to vector<16x16xi32>
    %92 = arith.cmpi slt, %59, %91 : vector<16x16xi32>
    %93 = arith.select %92, %81, %90 : vector<16x16xi1>, vector<16x16xi32>
    %94 = arith.cmpi eq, %76, %93 : vector<16x16xi32>
    %c0_32 = arith.constant 0 : index
    %c0_33 = arith.constant 0 : index
    %95 = vector.load %arg0[%c0_32, %c0_33] : memref<1x16xf32, #tpu.memory_space<vmem>>, vector<1x16xf32>
    %cst_34 = arith.constant 5.000000e-01 : f32
    %96 = vector.broadcast %cst_34 : f32 to vector<1x16xf32>
    %97 = arith.cmpf olt, %95, %96 : vector<1x16xf32>
    %98 = vector.broadcast %97 : vector<1x16xi1> to vector<16x16xi1>
    %99 = arith.andi %94, %98 : vector<16x16xi1>
    %cst_35 = arith.constant 0.000000e+00 : f32
    %cst_36 = arith.constant -1.000000e+30 : f32
    %100 = vector.broadcast %cst_35 : f32 to vector<16x16xf32>
    %101 = vector.broadcast %cst_36 : f32 to vector<16x16xf32>
    %102 = arith.select %99, %100, %101 : vector<16x16xi1>, vector<16x16xf32>
    %c0_37 = arith.constant 0 : index
    %c0_38 = arith.constant 0 : index
    %c0_39 = arith.constant 0 : index
    %103 = vector.load %arg6[%c0_37, %c0_38, %c0_39] : memref<2x32x96xf32, #tpu.memory_space<vmem>>, vector<1x32x96xf32>
    %104 = vector.shape_cast %103 : vector<1x32x96xf32> to vector<32x96xf32>
    %cst_40 = arith.constant dense<0.000000e+00> : vector<16x96xf32>
    %105 = tpu.matmul %57, %104, %cst_40 {dimension_numbers = #tpu.dot_dimension_numbers<[1], [0], [0], [1], [0, 0, 1, 1], [], []>} : vector<16x32xf32>, vector<32x96xf32>, vector<16x96xf32> -> vector<16x96xf32>
    %c0_41 = arith.constant 0 : index
    %c0_42 = arith.constant 0 : index
    %c0_43 = arith.constant 0 : index
    %106 = vector.load %arg7[%c0_41, %c0_42, %c0_43] : memref<2x1x96xf32, #tpu.memory_space<vmem>>, vector<1x1x96xf32>
    %107 = vector.shape_cast %106 : vector<1x1x96xf32> to vector<1x96xf32>
    %108 = vector.broadcast %107 : vector<1x96xf32> to vector<16x96xf32>
    %109 = arith.addf %105, %108 : vector<16x96xf32>
    %c5 = arith.constant 5 : index
    %c0_44 = arith.constant 0 : index
    %110 = vector.load %arg5[%c5, %c0_44] : memref<17x32xf32, #tpu.memory_space<vmem>>, vector<1x32xf32>
    %111 = vector.extract_strided_slice %109 {offsets = [0, 0], sizes = [16, 8], strides = [1, 1]} : vector<16x96xf32> to vector<16x8xf32>
    %112 = vector.extract_strided_slice %109 {offsets = [0, 32], sizes = [16, 8], strides = [1, 1]} : vector<16x96xf32> to vector<16x8xf32>
    %113 = vector.extract_strided_slice %109 {offsets = [0, 64], sizes = [16, 8], strides = [1, 1]} : vector<16x96xf32> to vector<16x8xf32>
    %cst_45 = arith.constant dense<0.000000e+00> : vector<16x16xf32>
    %114 = tpu.matmul %111, %112, %cst_45 {dimension_numbers = #tpu.dot_dimension_numbers<[1], [1], [0], [0], [0, 0, 1, 0], [], []>} : vector<16x8xf32>, vector<16x8xf32>, vector<16x16xf32> -> vector<16x16xf32>
    %cst_46 = arith.constant 0.353553385 : f32
    %115 = vector.broadcast %cst_46 : f32 to vector<16x16xf32>
    %116 = arith.mulf %114, %115 : vector<16x16xf32>
    %117 = arith.addf %116, %102 : vector<16x16xf32>
    %cst_47 = arith.constant dense<0xFF800000> : vector<16xf32>
    %118 = vector.multi_reduction <maximumf>, %117, %cst_47 [1] : vector<16x16xf32> to vector<16xf32>
    %119 = vector.shape_cast %118 : vector<16xf32> to vector<16x1xf32>
    %120 = vector.broadcast %119 : vector<16x1xf32> to vector<16x16xf32>
    %121 = arith.subf %117, %120 : vector<16x16xf32>
    %122 = math.exp %121 : vector<16x16xf32>
    %cst_48 = arith.constant dense<0.000000e+00> : vector<16xf32>
    %123 = vector.multi_reduction <add>, %122, %cst_48 [1] : vector<16x16xf32> to vector<16xf32>
    %124 = vector.shape_cast %123 : vector<16xf32> to vector<16x1xf32>
    %125 = tpu.reciprocal %124 {approx = true} : vector<16x1xf32> -> vector<16x1xf32>
    %126 = vector.broadcast %125 : vector<16x1xf32> to vector<16x16xf32>
    %127 = arith.mulf %122, %126 : vector<16x16xf32>
    %cst_49 = arith.constant dense<0.000000e+00> : vector<16x8xf32>
    %128 = tpu.matmul %127, %113, %cst_49 {dimension_numbers = #tpu.dot_dimension_numbers<[1], [0], [0], [1], [0, 0, 1, 1], [], []>} : vector<16x16xf32>, vector<16x8xf32>, vector<16x8xf32> -> vector<16x8xf32>
    %c0_50 = arith.constant 0 : index
    %c0_51 = arith.constant 0 : index
    %c0_52 = arith.constant 0 : index
    %129 = vector.load %arg8[%c0_50, %c0_51, %c0_52] : memref<2x32x32xf32, #tpu.memory_space<vmem>>, vector<1x8x32xf32>
    %130 = vector.shape_cast %129 : vector<1x8x32xf32> to vector<8x32xf32>
    %cst_53 = arith.constant dense<0.000000e+00> : vector<16x32xf32>
    %131 = tpu.matmul %128, %130, %cst_53 {dimension_numbers = #tpu.dot_dimension_numbers<[1], [0], [0], [1], [0, 0, 1, 1], [], []>} : vector<16x8xf32>, vector<8x32xf32>, vector<16x32xf32> -> vector<16x32xf32>
    %132 = vector.broadcast %110 : vector<1x32xf32> to vector<16x32xf32>
    %133 = arith.addf %132, %131 : vector<16x32xf32>
    %134 = vector.extract_strided_slice %109 {offsets = [0, 8], sizes = [16, 8], strides = [1, 1]} : vector<16x96xf32> to vector<16x8xf32>
    %135 = vector.extract_strided_slice %109 {offsets = [0, 40], sizes = [16, 8], strides = [1, 1]} : vector<16x96xf32> to vector<16x8xf32>
    %136 = vector.extract_strided_slice %109 {offsets = [0, 72], sizes = [16, 8], strides = [1, 1]} : vector<16x96xf32> to vector<16x8xf32>
    %cst_54 = arith.constant dense<0.000000e+00> : vector<16x16xf32>
    %137 = tpu.matmul %134, %135, %cst_54 {dimension_numbers = #tpu.dot_dimension_numbers<[1], [1], [0], [0], [0, 0, 1, 0], [], []>} : vector<16x8xf32>, vector<16x8xf32>, vector<16x16xf32> -> vector<16x16xf32>
    %cst_55 = arith.constant 0.353553385 : f32
    %138 = vector.broadcast %cst_55 : f32 to vector<16x16xf32>
    %139 = arith.mulf %137, %138 : vector<16x16xf32>
    %140 = arith.addf %139, %102 : vector<16x16xf32>
    %cst_56 = arith.constant dense<0xFF800000> : vector<16xf32>
    %141 = vector.multi_reduction <maximumf>, %140, %cst_56 [1] : vector<16x16xf32> to vector<16xf32>
    %142 = vector.shape_cast %141 : vector<16xf32> to vector<16x1xf32>
    %143 = vector.broadcast %142 : vector<16x1xf32> to vector<16x16xf32>
    %144 = arith.subf %140, %143 : vector<16x16xf32>
    %145 = math.exp %144 : vector<16x16xf32>
    %cst_57 = arith.constant dense<0.000000e+00> : vector<16xf32>
    %146 = vector.multi_reduction <add>, %145, %cst_57 [1] : vector<16x16xf32> to vector<16xf32>
    %147 = vector.shape_cast %146 : vector<16xf32> to vector<16x1xf32>
    %148 = tpu.reciprocal %147 {approx = true} : vector<16x1xf32> -> vector<16x1xf32>
    %149 = vector.broadcast %148 : vector<16x1xf32> to vector<16x16xf32>
    %150 = arith.mulf %145, %149 : vector<16x16xf32>
    %cst_58 = arith.constant dense<0.000000e+00> : vector<16x8xf32>
    %151 = tpu.matmul %150, %136, %cst_58 {dimension_numbers = #tpu.dot_dimension_numbers<[1], [0], [0], [1], [0, 0, 1, 1], [], []>} : vector<16x16xf32>, vector<16x8xf32>, vector<16x8xf32> -> vector<16x8xf32>
    %c0_59 = arith.constant 0 : index
    %c8 = arith.constant 8 : index
    %c0_60 = arith.constant 0 : index
    %152 = vector.load %arg8[%c0_59, %c8, %c0_60] : memref<2x32x32xf32, #tpu.memory_space<vmem>>, vector<1x8x32xf32>
    %153 = vector.shape_cast %152 : vector<1x8x32xf32> to vector<8x32xf32>
    %cst_61 = arith.constant dense<0.000000e+00> : vector<16x32xf32>
    %154 = tpu.matmul %151, %153, %cst_61 {dimension_numbers = #tpu.dot_dimension_numbers<[1], [0], [0], [1], [0, 0, 1, 1], [], []>} : vector<16x8xf32>, vector<8x32xf32>, vector<16x32xf32> -> vector<16x32xf32>
    %155 = arith.addf %133, %154 : vector<16x32xf32>
    %156 = vector.extract_strided_slice %109 {offsets = [0, 16], sizes = [16, 8], strides = [1, 1]} : vector<16x96xf32> to vector<16x8xf32>
    %157 = vector.extract_strided_slice %109 {offsets = [0, 48], sizes = [16, 8], strides = [1, 1]} : vector<16x96xf32> to vector<16x8xf32>
    %158 = vector.extract_strided_slice %109 {offsets = [0, 80], sizes = [16, 8], strides = [1, 1]} : vector<16x96xf32> to vector<16x8xf32>
    %cst_62 = arith.constant dense<0.000000e+00> : vector<16x16xf32>
    %159 = tpu.matmul %156, %157, %cst_62 {dimension_numbers = #tpu.dot_dimension_numbers<[1], [1], [0], [0], [0, 0, 1, 0], [], []>} : vector<16x8xf32>, vector<16x8xf32>, vector<16x16xf32> -> vector<16x16xf32>
    %cst_63 = arith.constant 0.353553385 : f32
    %160 = vector.broadcast %cst_63 : f32 to vector<16x16xf32>
    %161 = arith.mulf %159, %160 : vector<16x16xf32>
    %162 = arith.addf %161, %102 : vector<16x16xf32>
    %cst_64 = arith.constant dense<0xFF800000> : vector<16xf32>
    %163 = vector.multi_reduction <maximumf>, %162, %cst_64 [1] : vector<16x16xf32> to vector<16xf32>
    %164 = vector.shape_cast %163 : vector<16xf32> to vector<16x1xf32>
    %165 = vector.broadcast %164 : vector<16x1xf32> to vector<16x16xf32>
    %166 = arith.subf %162, %165 : vector<16x16xf32>
    %167 = math.exp %166 : vector<16x16xf32>
    %cst_65 = arith.constant dense<0.000000e+00> : vector<16xf32>
    %168 = vector.multi_reduction <add>, %167, %cst_65 [1] : vector<16x16xf32> to vector<16xf32>
    %169 = vector.shape_cast %168 : vector<16xf32> to vector<16x1xf32>
    %170 = tpu.reciprocal %169 {approx = true} : vector<16x1xf32> -> vector<16x1xf32>
    %171 = vector.broadcast %170 : vector<16x1xf32> to vector<16x16xf32>
    %172 = arith.mulf %167, %171 : vector<16x16xf32>
    %cst_66 = arith.constant dense<0.000000e+00> : vector<16x8xf32>
    %173 = tpu.matmul %172, %158, %cst_66 {dimension_numbers = #tpu.dot_dimension_numbers<[1], [0], [0], [1], [0, 0, 1, 1], [], []>} : vector<16x16xf32>, vector<16x8xf32>, vector<16x8xf32> -> vector<16x8xf32>
    %c0_67 = arith.constant 0 : index
    %c16 = arith.constant 16 : index
    %c0_68 = arith.constant 0 : index
    %174 = vector.load %arg8[%c0_67, %c16, %c0_68] : memref<2x32x32xf32, #tpu.memory_space<vmem>>, vector<1x8x32xf32>
    %175 = vector.shape_cast %174 : vector<1x8x32xf32> to vector<8x32xf32>
    %cst_69 = arith.constant dense<0.000000e+00> : vector<16x32xf32>
    %176 = tpu.matmul %173, %175, %cst_69 {dimension_numbers = #tpu.dot_dimension_numbers<[1], [0], [0], [1], [0, 0, 1, 1], [], []>} : vector<16x8xf32>, vector<8x32xf32>, vector<16x32xf32> -> vector<16x32xf32>
    %177 = arith.addf %155, %176 : vector<16x32xf32>
    %178 = vector.extract_strided_slice %109 {offsets = [0, 24], sizes = [16, 8], strides = [1, 1]} : vector<16x96xf32> to vector<16x8xf32>
    %179 = vector.extract_strided_slice %109 {offsets = [0, 56], sizes = [16, 8], strides = [1, 1]} : vector<16x96xf32> to vector<16x8xf32>
    %180 = vector.extract_strided_slice %109 {offsets = [0, 88], sizes = [16, 8], strides = [1, 1]} : vector<16x96xf32> to vector<16x8xf32>
    %cst_70 = arith.constant dense<0.000000e+00> : vector<16x16xf32>
    %181 = tpu.matmul %178, %179, %cst_70 {dimension_numbers = #tpu.dot_dimension_numbers<[1], [1], [0], [0], [0, 0, 1, 0], [], []>} : vector<16x8xf32>, vector<16x8xf32>, vector<16x16xf32> -> vector<16x16xf32>
    %cst_71 = arith.constant 0.353553385 : f32
    %182 = vector.broadcast %cst_71 : f32 to vector<16x16xf32>
    %183 = arith.mulf %181, %182 : vector<16x16xf32>
    %184 = arith.addf %183, %102 : vector<16x16xf32>
    %cst_72 = arith.constant dense<0xFF800000> : vector<16xf32>
    %185 = vector.multi_reduction <maximumf>, %184, %cst_72 [1] : vector<16x16xf32> to vector<16xf32>
    %186 = vector.shape_cast %185 : vector<16xf32> to vector<16x1xf32>
    %187 = vector.broadcast %186 : vector<16x1xf32> to vector<16x16xf32>
    %188 = arith.subf %184, %187 : vector<16x16xf32>
    %189 = math.exp %188 : vector<16x16xf32>
    %cst_73 = arith.constant dense<0.000000e+00> : vector<16xf32>
    %190 = vector.multi_reduction <add>, %189, %cst_73 [1] : vector<16x16xf32> to vector<16xf32>
    %191 = vector.shape_cast %190 : vector<16xf32> to vector<16x1xf32>
    %192 = tpu.reciprocal %191 {approx = true} : vector<16x1xf32> -> vector<16x1xf32>
    %193 = vector.broadcast %192 : vector<16x1xf32> to vector<16x16xf32>
    %194 = arith.mulf %189, %193 : vector<16x16xf32>
    %cst_74 = arith.constant dense<0.000000e+00> : vector<16x8xf32>
    %195 = tpu.matmul %194, %180, %cst_74 {dimension_numbers = #tpu.dot_dimension_numbers<[1], [0], [0], [1], [0, 0, 1, 1], [], []>} : vector<16x16xf32>, vector<16x8xf32>, vector<16x8xf32> -> vector<16x8xf32>
    %c0_75 = arith.constant 0 : index
    %c24 = arith.constant 24 : index
    %c0_76 = arith.constant 0 : index
    %196 = vector.load %arg8[%c0_75, %c24, %c0_76] : memref<2x32x32xf32, #tpu.memory_space<vmem>>, vector<1x8x32xf32>
    %197 = vector.shape_cast %196 : vector<1x8x32xf32> to vector<8x32xf32>
    %cst_77 = arith.constant dense<0.000000e+00> : vector<16x32xf32>
    %198 = tpu.matmul %195, %197, %cst_77 {dimension_numbers = #tpu.dot_dimension_numbers<[1], [0], [0], [1], [0, 0, 1, 1], [], []>} : vector<16x8xf32>, vector<8x32xf32>, vector<16x32xf32> -> vector<16x32xf32>
    %199 = arith.addf %177, %198 : vector<16x32xf32>
    %200 = arith.addf %57, %199 : vector<16x32xf32>
    %c6 = arith.constant 6 : index
    %c0_78 = arith.constant 0 : index
    %201 = vector.load %arg5[%c6, %c0_78] : memref<17x32xf32, #tpu.memory_space<vmem>>, vector<1x32xf32>
    %c7 = arith.constant 7 : index
    %c0_79 = arith.constant 0 : index
    %202 = vector.load %arg5[%c7, %c0_79] : memref<17x32xf32, #tpu.memory_space<vmem>>, vector<1x32xf32>
    %cst_80 = arith.constant dense<0.000000e+00> : vector<16xf32>
    %203 = vector.multi_reduction <add>, %200, %cst_80 [1] : vector<16x32xf32> to vector<16xf32>
    %204 = vector.shape_cast %203 : vector<16xf32> to vector<16x1xf32>
    %cst_81 = arith.constant 3.200000e+01 : f32
    %205 = vector.broadcast %cst_81 : f32 to vector<16x1xf32>
    %206 = arith.divf %204, %205 : vector<16x1xf32>
    %207 = vector.broadcast %206 : vector<16x1xf32> to vector<16x32xf32>
    %208 = arith.subf %200, %207 : vector<16x32xf32>
    %209 = arith.mulf %208, %208 : vector<16x32xf32>
    %cst_82 = arith.constant dense<0.000000e+00> : vector<16xf32>
    %210 = vector.multi_reduction <add>, %209, %cst_82 [1] : vector<16x32xf32> to vector<16xf32>
    %211 = vector.shape_cast %210 : vector<16xf32> to vector<16x1xf32>
    %cst_83 = arith.constant 3.200000e+01 : f32
    %212 = vector.broadcast %cst_83 : f32 to vector<16x1xf32>
    %213 = arith.divf %211, %212 : vector<16x1xf32>
    %214 = vector.broadcast %206 : vector<16x1xf32> to vector<16x32xf32>
    %215 = arith.subf %200, %214 : vector<16x32xf32>
    %cst_84 = arith.constant 9.99999974E-6 : f32
    %216 = vector.broadcast %cst_84 : f32 to vector<16x1xf32>
    %217 = arith.addf %213, %216 : vector<16x1xf32>
    %218 = math.rsqrt %217 : vector<16x1xf32>
    %219 = vector.broadcast %218 : vector<16x1xf32> to vector<16x32xf32>
    %220 = arith.mulf %215, %219 : vector<16x32xf32>
    %221 = vector.broadcast %201 : vector<1x32xf32> to vector<16x32xf32>
    %222 = arith.mulf %220, %221 : vector<16x32xf32>
    %223 = vector.broadcast %202 : vector<1x32xf32> to vector<16x32xf32>
    %224 = arith.addf %222, %223 : vector<16x32xf32>
    %225 = arith.truncf %224 : vector<16x32xf32> to vector<16x32xbf16>
    %c0_85 = arith.constant 0 : index
    %c0_86 = arith.constant 0 : index
    %c0_87 = arith.constant 0 : index
    %226 = vector.load %arg9[%c0_85, %c0_86, %c0_87] : memref<2x32x2048xbf16, #tpu.memory_space<vmem>>, vector<1x32x2048xbf16>
    %227 = vector.shape_cast %226 : vector<1x32x2048xbf16> to vector<32x2048xbf16>
    %cst_88 = arith.constant dense<0.000000e+00> : vector<16x2048xf32>
    %228 = tpu.matmul %225, %227, %cst_88 {dimension_numbers = #tpu.dot_dimension_numbers<[1], [0], [0], [1], [0, 0, 1, 1], [], []>} : vector<16x32xbf16>, vector<32x2048xbf16>, vector<16x2048xf32> -> vector<16x2048xf32>
    %c0_89 = arith.constant 0 : index
    %c0_90 = arith.constant 0 : index
    %229 = vector.load %arg10[%c0_89, %c0_90] : memref<2x2048xf32, #tpu.memory_space<vmem>>, vector<1x2048xf32>
    %230 = vector.broadcast %229 : vector<1x2048xf32> to vector<16x2048xf32>
    %231 = arith.addf %228, %230 : vector<16x2048xf32>
    %cst_91 = arith.constant 0.000000e+00 : f32
    %232 = vector.broadcast %cst_91 : f32 to vector<16x2048xf32>
    %233 = arith.maximumf %231, %232 : vector<16x2048xf32>
    %234 = arith.truncf %233 : vector<16x2048xf32> to vector<16x2048xbf16>
    %c0_92 = arith.constant 0 : index
    %c0_93 = arith.constant 0 : index
    %c0_94 = arith.constant 0 : index
    %235 = vector.load %arg11[%c0_92, %c0_93, %c0_94] : memref<2x32x2048xbf16, #tpu.memory_space<vmem>>, vector<1x32x2048xbf16>
    %236 = vector.shape_cast %235 : vector<1x32x2048xbf16> to vector<32x2048xbf16>
    %cst_95 = arith.constant dense<0.000000e+00> : vector<16x32xf32>
    %237 = tpu.matmul %234, %236, %cst_95 {dimension_numbers = #tpu.dot_dimension_numbers<[1], [1], [0], [0], [0, 0, 1, 0], [], []>} : vector<16x2048xbf16>, vector<32x2048xbf16>, vector<16x32xf32> -> vector<16x32xf32>
    %c8_96 = arith.constant 8 : index
    %c0_97 = arith.constant 0 : index
    %238 = vector.load %arg5[%c8_96, %c0_97] : memref<17x32xf32, #tpu.memory_space<vmem>>, vector<1x32xf32>
    %239 = vector.broadcast %238 : vector<1x32xf32> to vector<16x32xf32>
    %240 = arith.addf %237, %239 : vector<16x32xf32>
    %241 = arith.addf %224, %240 : vector<16x32xf32>
    %c9 = arith.constant 9 : index
    %c0_98 = arith.constant 0 : index
    %242 = vector.load %arg5[%c9, %c0_98] : memref<17x32xf32, #tpu.memory_space<vmem>>, vector<1x32xf32>
    %c10 = arith.constant 10 : index
    %c0_99 = arith.constant 0 : index
    %243 = vector.load %arg5[%c10, %c0_99] : memref<17x32xf32, #tpu.memory_space<vmem>>, vector<1x32xf32>
    %cst_100 = arith.constant dense<0.000000e+00> : vector<16xf32>
    %244 = vector.multi_reduction <add>, %241, %cst_100 [1] : vector<16x32xf32> to vector<16xf32>
    %245 = vector.shape_cast %244 : vector<16xf32> to vector<16x1xf32>
    %cst_101 = arith.constant 3.200000e+01 : f32
    %246 = vector.broadcast %cst_101 : f32 to vector<16x1xf32>
    %247 = arith.divf %245, %246 : vector<16x1xf32>
    %248 = vector.broadcast %247 : vector<16x1xf32> to vector<16x32xf32>
    %249 = arith.subf %241, %248 : vector<16x32xf32>
    %250 = arith.mulf %249, %249 : vector<16x32xf32>
    %cst_102 = arith.constant dense<0.000000e+00> : vector<16xf32>
    %251 = vector.multi_reduction <add>, %250, %cst_102 [1] : vector<16x32xf32> to vector<16xf32>
    %252 = vector.shape_cast %251 : vector<16xf32> to vector<16x1xf32>
    %cst_103 = arith.constant 3.200000e+01 : f32
    %253 = vector.broadcast %cst_103 : f32 to vector<16x1xf32>
    %254 = arith.divf %252, %253 : vector<16x1xf32>
    %255 = vector.broadcast %247 : vector<16x1xf32> to vector<16x32xf32>
    %256 = arith.subf %241, %255 : vector<16x32xf32>
    %cst_104 = arith.constant 9.99999974E-6 : f32
    %257 = vector.broadcast %cst_104 : f32 to vector<16x1xf32>
    %258 = arith.addf %254, %257 : vector<16x1xf32>
    %259 = math.rsqrt %258 : vector<16x1xf32>
    %260 = vector.broadcast %259 : vector<16x1xf32> to vector<16x32xf32>
    %261 = arith.mulf %256, %260 : vector<16x32xf32>
    %262 = vector.broadcast %242 : vector<1x32xf32> to vector<16x32xf32>
    %263 = arith.mulf %261, %262 : vector<16x32xf32>
    %264 = vector.broadcast %243 : vector<1x32xf32> to vector<16x32xf32>
    %265 = arith.addf %263, %264 : vector<16x32xf32>
    %c1_105 = arith.constant 1 : index
    %c0_106 = arith.constant 0 : index
    %c0_107 = arith.constant 0 : index
    %266 = vector.load %arg6[%c1_105, %c0_106, %c0_107] : memref<2x32x96xf32, #tpu.memory_space<vmem>>, vector<1x32x96xf32>
    %267 = vector.shape_cast %266 : vector<1x32x96xf32> to vector<32x96xf32>
    %cst_108 = arith.constant dense<0.000000e+00> : vector<16x96xf32>
    %268 = tpu.matmul %265, %267, %cst_108 {dimension_numbers = #tpu.dot_dimension_numbers<[1], [0], [0], [1], [0, 0, 1, 1], [], []>} : vector<16x32xf32>, vector<32x96xf32>, vector<16x96xf32> -> vector<16x96xf32>
    %c1_109 = arith.constant 1 : index
    %c0_110 = arith.constant 0 : index
    %c0_111 = arith.constant 0 : index
    %269 = vector.load %arg7[%c1_109, %c0_110, %c0_111] : memref<2x1x96xf32, #tpu.memory_space<vmem>>, vector<1x1x96xf32>
    %270 = vector.shape_cast %269 : vector<1x1x96xf32> to vector<1x96xf32>
    %271 = vector.broadcast %270 : vector<1x96xf32> to vector<16x96xf32>
    %272 = arith.addf %268, %271 : vector<16x96xf32>
    %c11 = arith.constant 11 : index
    %c0_112 = arith.constant 0 : index
    %273 = vector.load %arg5[%c11, %c0_112] : memref<17x32xf32, #tpu.memory_space<vmem>>, vector<1x32xf32>
    %274 = vector.extract_strided_slice %272 {offsets = [0, 0], sizes = [16, 8], strides = [1, 1]} : vector<16x96xf32> to vector<16x8xf32>
    %275 = vector.extract_strided_slice %272 {offsets = [0, 32], sizes = [16, 8], strides = [1, 1]} : vector<16x96xf32> to vector<16x8xf32>
    %276 = vector.extract_strided_slice %272 {offsets = [0, 64], sizes = [16, 8], strides = [1, 1]} : vector<16x96xf32> to vector<16x8xf32>
    %cst_113 = arith.constant dense<0.000000e+00> : vector<16x16xf32>
    %277 = tpu.matmul %274, %275, %cst_113 {dimension_numbers = #tpu.dot_dimension_numbers<[1], [1], [0], [0], [0, 0, 1, 0], [], []>} : vector<16x8xf32>, vector<16x8xf32>, vector<16x16xf32> -> vector<16x16xf32>
    %cst_114 = arith.constant 0.353553385 : f32
    %278 = vector.broadcast %cst_114 : f32 to vector<16x16xf32>
    %279 = arith.mulf %277, %278 : vector<16x16xf32>
    %280 = arith.addf %279, %102 : vector<16x16xf32>
    %cst_115 = arith.constant dense<0xFF800000> : vector<16xf32>
    %281 = vector.multi_reduction <maximumf>, %280, %cst_115 [1] : vector<16x16xf32> to vector<16xf32>
    %282 = vector.shape_cast %281 : vector<16xf32> to vector<16x1xf32>
    %283 = vector.broadcast %282 : vector<16x1xf32> to vector<16x16xf32>
    %284 = arith.subf %280, %283 : vector<16x16xf32>
    %285 = math.exp %284 : vector<16x16xf32>
    %cst_116 = arith.constant dense<0.000000e+00> : vector<16xf32>
    %286 = vector.multi_reduction <add>, %285, %cst_116 [1] : vector<16x16xf32> to vector<16xf32>
    %287 = vector.shape_cast %286 : vector<16xf32> to vector<16x1xf32>
    %288 = tpu.reciprocal %287 {approx = true} : vector<16x1xf32> -> vector<16x1xf32>
    %289 = vector.broadcast %288 : vector<16x1xf32> to vector<16x16xf32>
    %290 = arith.mulf %285, %289 : vector<16x16xf32>
    %cst_117 = arith.constant dense<0.000000e+00> : vector<16x8xf32>
    %291 = tpu.matmul %290, %276, %cst_117 {dimension_numbers = #tpu.dot_dimension_numbers<[1], [0], [0], [1], [0, 0, 1, 1], [], []>} : vector<16x16xf32>, vector<16x8xf32>, vector<16x8xf32> -> vector<16x8xf32>
    %c1_118 = arith.constant 1 : index
    %c0_119 = arith.constant 0 : index
    %c0_120 = arith.constant 0 : index
    %292 = vector.load %arg8[%c1_118, %c0_119, %c0_120] : memref<2x32x32xf32, #tpu.memory_space<vmem>>, vector<1x8x32xf32>
    %293 = vector.shape_cast %292 : vector<1x8x32xf32> to vector<8x32xf32>
    %cst_121 = arith.constant dense<0.000000e+00> : vector<16x32xf32>
    %294 = tpu.matmul %291, %293, %cst_121 {dimension_numbers = #tpu.dot_dimension_numbers<[1], [0], [0], [1], [0, 0, 1, 1], [], []>} : vector<16x8xf32>, vector<8x32xf32>, vector<16x32xf32> -> vector<16x32xf32>
    %295 = vector.broadcast %273 : vector<1x32xf32> to vector<16x32xf32>
    %296 = arith.addf %295, %294 : vector<16x32xf32>
    %297 = vector.extract_strided_slice %272 {offsets = [0, 8], sizes = [16, 8], strides = [1, 1]} : vector<16x96xf32> to vector<16x8xf32>
    %298 = vector.extract_strided_slice %272 {offsets = [0, 40], sizes = [16, 8], strides = [1, 1]} : vector<16x96xf32> to vector<16x8xf32>
    %299 = vector.extract_strided_slice %272 {offsets = [0, 72], sizes = [16, 8], strides = [1, 1]} : vector<16x96xf32> to vector<16x8xf32>
    %cst_122 = arith.constant dense<0.000000e+00> : vector<16x16xf32>
    %300 = tpu.matmul %297, %298, %cst_122 {dimension_numbers = #tpu.dot_dimension_numbers<[1], [1], [0], [0], [0, 0, 1, 0], [], []>} : vector<16x8xf32>, vector<16x8xf32>, vector<16x16xf32> -> vector<16x16xf32>
    %cst_123 = arith.constant 0.353553385 : f32
    %301 = vector.broadcast %cst_123 : f32 to vector<16x16xf32>
    %302 = arith.mulf %300, %301 : vector<16x16xf32>
    %303 = arith.addf %302, %102 : vector<16x16xf32>
    %cst_124 = arith.constant dense<0xFF800000> : vector<16xf32>
    %304 = vector.multi_reduction <maximumf>, %303, %cst_124 [1] : vector<16x16xf32> to vector<16xf32>
    %305 = vector.shape_cast %304 : vector<16xf32> to vector<16x1xf32>
    %306 = vector.broadcast %305 : vector<16x1xf32> to vector<16x16xf32>
    %307 = arith.subf %303, %306 : vector<16x16xf32>
    %308 = math.exp %307 : vector<16x16xf32>
    %cst_125 = arith.constant dense<0.000000e+00> : vector<16xf32>
    %309 = vector.multi_reduction <add>, %308, %cst_125 [1] : vector<16x16xf32> to vector<16xf32>
    %310 = vector.shape_cast %309 : vector<16xf32> to vector<16x1xf32>
    %311 = tpu.reciprocal %310 {approx = true} : vector<16x1xf32> -> vector<16x1xf32>
    %312 = vector.broadcast %311 : vector<16x1xf32> to vector<16x16xf32>
    %313 = arith.mulf %308, %312 : vector<16x16xf32>
    %cst_126 = arith.constant dense<0.000000e+00> : vector<16x8xf32>
    %314 = tpu.matmul %313, %299, %cst_126 {dimension_numbers = #tpu.dot_dimension_numbers<[1], [0], [0], [1], [0, 0, 1, 1], [], []>} : vector<16x16xf32>, vector<16x8xf32>, vector<16x8xf32> -> vector<16x8xf32>
    %c1_127 = arith.constant 1 : index
    %c8_128 = arith.constant 8 : index
    %c0_129 = arith.constant 0 : index
    %315 = vector.load %arg8[%c1_127, %c8_128, %c0_129] : memref<2x32x32xf32, #tpu.memory_space<vmem>>, vector<1x8x32xf32>
    %316 = vector.shape_cast %315 : vector<1x8x32xf32> to vector<8x32xf32>
    %cst_130 = arith.constant dense<0.000000e+00> : vector<16x32xf32>
    %317 = tpu.matmul %314, %316, %cst_130 {dimension_numbers = #tpu.dot_dimension_numbers<[1], [0], [0], [1], [0, 0, 1, 1], [], []>} : vector<16x8xf32>, vector<8x32xf32>, vector<16x32xf32> -> vector<16x32xf32>
    %318 = arith.addf %296, %317 : vector<16x32xf32>
    %319 = vector.extract_strided_slice %272 {offsets = [0, 16], sizes = [16, 8], strides = [1, 1]} : vector<16x96xf32> to vector<16x8xf32>
    %320 = vector.extract_strided_slice %272 {offsets = [0, 48], sizes = [16, 8], strides = [1, 1]} : vector<16x96xf32> to vector<16x8xf32>
    %321 = vector.extract_strided_slice %272 {offsets = [0, 80], sizes = [16, 8], strides = [1, 1]} : vector<16x96xf32> to vector<16x8xf32>
    %cst_131 = arith.constant dense<0.000000e+00> : vector<16x16xf32>
    %322 = tpu.matmul %319, %320, %cst_131 {dimension_numbers = #tpu.dot_dimension_numbers<[1], [1], [0], [0], [0, 0, 1, 0], [], []>} : vector<16x8xf32>, vector<16x8xf32>, vector<16x16xf32> -> vector<16x16xf32>
    %cst_132 = arith.constant 0.353553385 : f32
    %323 = vector.broadcast %cst_132 : f32 to vector<16x16xf32>
    %324 = arith.mulf %322, %323 : vector<16x16xf32>
    %325 = arith.addf %324, %102 : vector<16x16xf32>
    %cst_133 = arith.constant dense<0xFF800000> : vector<16xf32>
    %326 = vector.multi_reduction <maximumf>, %325, %cst_133 [1] : vector<16x16xf32> to vector<16xf32>
    %327 = vector.shape_cast %326 : vector<16xf32> to vector<16x1xf32>
    %328 = vector.broadcast %327 : vector<16x1xf32> to vector<16x16xf32>
    %329 = arith.subf %325, %328 : vector<16x16xf32>
    %330 = math.exp %329 : vector<16x16xf32>
    %cst_134 = arith.constant dense<0.000000e+00> : vector<16xf32>
    %331 = vector.multi_reduction <add>, %330, %cst_134 [1] : vector<16x16xf32> to vector<16xf32>
    %332 = vector.shape_cast %331 : vector<16xf32> to vector<16x1xf32>
    %333 = tpu.reciprocal %332 {approx = true} : vector<16x1xf32> -> vector<16x1xf32>
    %334 = vector.broadcast %333 : vector<16x1xf32> to vector<16x16xf32>
    %335 = arith.mulf %330, %334 : vector<16x16xf32>
    %cst_135 = arith.constant dense<0.000000e+00> : vector<16x8xf32>
    %336 = tpu.matmul %335, %321, %cst_135 {dimension_numbers = #tpu.dot_dimension_numbers<[1], [0], [0], [1], [0, 0, 1, 1], [], []>} : vector<16x16xf32>, vector<16x8xf32>, vector<16x8xf32> -> vector<16x8xf32>
    %c1_136 = arith.constant 1 : index
    %c16_137 = arith.constant 16 : index
    %c0_138 = arith.constant 0 : index
    %337 = vector.load %arg8[%c1_136, %c16_137, %c0_138] : memref<2x32x32xf32, #tpu.memory_space<vmem>>, vector<1x8x32xf32>
    %338 = vector.shape_cast %337 : vector<1x8x32xf32> to vector<8x32xf32>
    %cst_139 = arith.constant dense<0.000000e+00> : vector<16x32xf32>
    %339 = tpu.matmul %336, %338, %cst_139 {dimension_numbers = #tpu.dot_dimension_numbers<[1], [0], [0], [1], [0, 0, 1, 1], [], []>} : vector<16x8xf32>, vector<8x32xf32>, vector<16x32xf32> -> vector<16x32xf32>
    %340 = arith.addf %318, %339 : vector<16x32xf32>
    %341 = vector.extract_strided_slice %272 {offsets = [0, 24], sizes = [16, 8], strides = [1, 1]} : vector<16x96xf32> to vector<16x8xf32>
    %342 = vector.extract_strided_slice %272 {offsets = [0, 56], sizes = [16, 8], strides = [1, 1]} : vector<16x96xf32> to vector<16x8xf32>
    %343 = vector.extract_strided_slice %272 {offsets = [0, 88], sizes = [16, 8], strides = [1, 1]} : vector<16x96xf32> to vector<16x8xf32>
    %cst_140 = arith.constant dense<0.000000e+00> : vector<16x16xf32>
    %344 = tpu.matmul %341, %342, %cst_140 {dimension_numbers = #tpu.dot_dimension_numbers<[1], [1], [0], [0], [0, 0, 1, 0], [], []>} : vector<16x8xf32>, vector<16x8xf32>, vector<16x16xf32> -> vector<16x16xf32>
    %cst_141 = arith.constant 0.353553385 : f32
    %345 = vector.broadcast %cst_141 : f32 to vector<16x16xf32>
    %346 = arith.mulf %344, %345 : vector<16x16xf32>
    %347 = arith.addf %346, %102 : vector<16x16xf32>
    %cst_142 = arith.constant dense<0xFF800000> : vector<16xf32>
    %348 = vector.multi_reduction <maximumf>, %347, %cst_142 [1] : vector<16x16xf32> to vector<16xf32>
    %349 = vector.shape_cast %348 : vector<16xf32> to vector<16x1xf32>
    %350 = vector.broadcast %349 : vector<16x1xf32> to vector<16x16xf32>
    %351 = arith.subf %347, %350 : vector<16x16xf32>
    %352 = math.exp %351 : vector<16x16xf32>
    %cst_143 = arith.constant dense<0.000000e+00> : vector<16xf32>
    %353 = vector.multi_reduction <add>, %352, %cst_143 [1] : vector<16x16xf32> to vector<16xf32>
    %354 = vector.shape_cast %353 : vector<16xf32> to vector<16x1xf32>
    %355 = tpu.reciprocal %354 {approx = true} : vector<16x1xf32> -> vector<16x1xf32>
    %356 = vector.broadcast %355 : vector<16x1xf32> to vector<16x16xf32>
    %357 = arith.mulf %352, %356 : vector<16x16xf32>
    %cst_144 = arith.constant dense<0.000000e+00> : vector<16x8xf32>
    %358 = tpu.matmul %357, %343, %cst_144 {dimension_numbers = #tpu.dot_dimension_numbers<[1], [0], [0], [1], [0, 0, 1, 1], [], []>} : vector<16x16xf32>, vector<16x8xf32>, vector<16x8xf32> -> vector<16x8xf32>
    %c1_145 = arith.constant 1 : index
    %c24_146 = arith.constant 24 : index
    %c0_147 = arith.constant 0 : index
    %359 = vector.load %arg8[%c1_145, %c24_146, %c0_147] : memref<2x32x32xf32, #tpu.memory_space<vmem>>, vector<1x8x32xf32>
    %360 = vector.shape_cast %359 : vector<1x8x32xf32> to vector<8x32xf32>
    %cst_148 = arith.constant dense<0.000000e+00> : vector<16x32xf32>
    %361 = tpu.matmul %358, %360, %cst_148 {dimension_numbers = #tpu.dot_dimension_numbers<[1], [0], [0], [1], [0, 0, 1, 1], [], []>} : vector<16x8xf32>, vector<8x32xf32>, vector<16x32xf32> -> vector<16x32xf32>
    %362 = arith.addf %340, %361 : vector<16x32xf32>
    %363 = arith.addf %265, %362 : vector<16x32xf32>
    %c12 = arith.constant 12 : index
    %c0_149 = arith.constant 0 : index
    %364 = vector.load %arg5[%c12, %c0_149] : memref<17x32xf32, #tpu.memory_space<vmem>>, vector<1x32xf32>
    %c13 = arith.constant 13 : index
    %c0_150 = arith.constant 0 : index
    %365 = vector.load %arg5[%c13, %c0_150] : memref<17x32xf32, #tpu.memory_space<vmem>>, vector<1x32xf32>
    %cst_151 = arith.constant dense<0.000000e+00> : vector<16xf32>
    %366 = vector.multi_reduction <add>, %363, %cst_151 [1] : vector<16x32xf32> to vector<16xf32>
    %367 = vector.shape_cast %366 : vector<16xf32> to vector<16x1xf32>
    %cst_152 = arith.constant 3.200000e+01 : f32
    %368 = vector.broadcast %cst_152 : f32 to vector<16x1xf32>
    %369 = arith.divf %367, %368 : vector<16x1xf32>
    %370 = vector.broadcast %369 : vector<16x1xf32> to vector<16x32xf32>
    %371 = arith.subf %363, %370 : vector<16x32xf32>
    %372 = arith.mulf %371, %371 : vector<16x32xf32>
    %cst_153 = arith.constant dense<0.000000e+00> : vector<16xf32>
    %373 = vector.multi_reduction <add>, %372, %cst_153 [1] : vector<16x32xf32> to vector<16xf32>
    %374 = vector.shape_cast %373 : vector<16xf32> to vector<16x1xf32>
    %cst_154 = arith.constant 3.200000e+01 : f32
    %375 = vector.broadcast %cst_154 : f32 to vector<16x1xf32>
    %376 = arith.divf %374, %375 : vector<16x1xf32>
    %377 = vector.broadcast %369 : vector<16x1xf32> to vector<16x32xf32>
    %378 = arith.subf %363, %377 : vector<16x32xf32>
    %cst_155 = arith.constant 9.99999974E-6 : f32
    %379 = vector.broadcast %cst_155 : f32 to vector<16x1xf32>
    %380 = arith.addf %376, %379 : vector<16x1xf32>
    %381 = math.rsqrt %380 : vector<16x1xf32>
    %382 = vector.broadcast %381 : vector<16x1xf32> to vector<16x32xf32>
    %383 = arith.mulf %378, %382 : vector<16x32xf32>
    %384 = vector.broadcast %364 : vector<1x32xf32> to vector<16x32xf32>
    %385 = arith.mulf %383, %384 : vector<16x32xf32>
    %386 = vector.broadcast %365 : vector<1x32xf32> to vector<16x32xf32>
    %387 = arith.addf %385, %386 : vector<16x32xf32>
    %388 = arith.truncf %387 : vector<16x32xf32> to vector<16x32xbf16>
    %c1_156 = arith.constant 1 : index
    %c0_157 = arith.constant 0 : index
    %c0_158 = arith.constant 0 : index
    %389 = vector.load %arg9[%c1_156, %c0_157, %c0_158] : memref<2x32x2048xbf16, #tpu.memory_space<vmem>>, vector<1x32x2048xbf16>
    %390 = vector.shape_cast %389 : vector<1x32x2048xbf16> to vector<32x2048xbf16>
    %cst_159 = arith.constant dense<0.000000e+00> : vector<16x2048xf32>
    %391 = tpu.matmul %388, %390, %cst_159 {dimension_numbers = #tpu.dot_dimension_numbers<[1], [0], [0], [1], [0, 0, 1, 1], [], []>} : vector<16x32xbf16>, vector<32x2048xbf16>, vector<16x2048xf32> -> vector<16x2048xf32>
    %c1_160 = arith.constant 1 : index
    %c0_161 = arith.constant 0 : index
    %392 = vector.load %arg10[%c1_160, %c0_161] : memref<2x2048xf32, #tpu.memory_space<vmem>>, vector<1x2048xf32>
    %393 = vector.broadcast %392 : vector<1x2048xf32> to vector<16x2048xf32>
    %394 = arith.addf %391, %393 : vector<16x2048xf32>
    %cst_162 = arith.constant 0.000000e+00 : f32
    %395 = vector.broadcast %cst_162 : f32 to vector<16x2048xf32>
    %396 = arith.maximumf %394, %395 : vector<16x2048xf32>
    %397 = arith.truncf %396 : vector<16x2048xf32> to vector<16x2048xbf16>
    %c1_163 = arith.constant 1 : index
    %c0_164 = arith.constant 0 : index
    %c0_165 = arith.constant 0 : index
    %398 = vector.load %arg11[%c1_163, %c0_164, %c0_165] : memref<2x32x2048xbf16, #tpu.memory_space<vmem>>, vector<1x32x2048xbf16>
    %399 = vector.shape_cast %398 : vector<1x32x2048xbf16> to vector<32x2048xbf16>
    %cst_166 = arith.constant dense<0.000000e+00> : vector<16x32xf32>
    %400 = tpu.matmul %397, %399, %cst_166 {dimension_numbers = #tpu.dot_dimension_numbers<[1], [1], [0], [0], [0, 0, 1, 0], [], []>} : vector<16x2048xbf16>, vector<32x2048xbf16>, vector<16x32xf32> -> vector<16x32xf32>
    %c14 = arith.constant 14 : index
    %c0_167 = arith.constant 0 : index
    %401 = vector.load %arg5[%c14, %c0_167] : memref<17x32xf32, #tpu.memory_space<vmem>>, vector<1x32xf32>
    %402 = vector.broadcast %401 : vector<1x32xf32> to vector<16x32xf32>
    %403 = arith.addf %400, %402 : vector<16x32xf32>
    %404 = arith.addf %387, %403 : vector<16x32xf32>
    %c15 = arith.constant 15 : index
    %c0_168 = arith.constant 0 : index
    %405 = vector.load %arg5[%c15, %c0_168] : memref<17x32xf32, #tpu.memory_space<vmem>>, vector<1x32xf32>
    %c16_169 = arith.constant 16 : index
    %c0_170 = arith.constant 0 : index
    %406 = vector.load %arg5[%c16_169, %c0_170] : memref<17x32xf32, #tpu.memory_space<vmem>>, vector<1x32xf32>
    %cst_171 = arith.constant dense<0.000000e+00> : vector<16xf32>
    %407 = vector.multi_reduction <add>, %404, %cst_171 [1] : vector<16x32xf32> to vector<16xf32>
    %408 = vector.shape_cast %407 : vector<16xf32> to vector<16x1xf32>
    %cst_172 = arith.constant 3.200000e+01 : f32
    %409 = vector.broadcast %cst_172 : f32 to vector<16x1xf32>
    %410 = arith.divf %408, %409 : vector<16x1xf32>
    %411 = vector.broadcast %410 : vector<16x1xf32> to vector<16x32xf32>
    %412 = arith.subf %404, %411 : vector<16x32xf32>
    %413 = arith.mulf %412, %412 : vector<16x32xf32>
    %cst_173 = arith.constant dense<0.000000e+00> : vector<16xf32>
    %414 = vector.multi_reduction <add>, %413, %cst_173 [1] : vector<16x32xf32> to vector<16xf32>
    %415 = vector.shape_cast %414 : vector<16xf32> to vector<16x1xf32>
    %cst_174 = arith.constant 3.200000e+01 : f32
    %416 = vector.broadcast %cst_174 : f32 to vector<16x1xf32>
    %417 = arith.divf %415, %416 : vector<16x1xf32>
    %418 = vector.broadcast %410 : vector<16x1xf32> to vector<16x32xf32>
    %419 = arith.subf %404, %418 : vector<16x32xf32>
    %cst_175 = arith.constant 9.99999974E-6 : f32
    %420 = vector.broadcast %cst_175 : f32 to vector<16x1xf32>
    %421 = arith.addf %417, %420 : vector<16x1xf32>
    %422 = math.rsqrt %421 : vector<16x1xf32>
    %423 = vector.broadcast %422 : vector<16x1xf32> to vector<16x32xf32>
    %424 = arith.mulf %419, %423 : vector<16x32xf32>
    %425 = vector.broadcast %405 : vector<1x32xf32> to vector<16x32xf32>
    %426 = arith.mulf %424, %425 : vector<16x32xf32>
    %427 = vector.broadcast %406 : vector<1x32xf32> to vector<16x32xf32>
    %428 = arith.addf %426, %427 : vector<16x32xf32>
    %c3 = arith.constant 3 : index
    %c0_176 = arith.constant 0 : index
    %429 = vector.load %arg5[%c3, %c0_176] : memref<17x32xf32, #tpu.memory_space<vmem>>, vector<1x32xf32>
    %c4 = arith.constant 4 : index
    %c0_177 = arith.constant 0 : index
    %430 = vector.load %arg5[%c4, %c0_177] : memref<17x32xf32, #tpu.memory_space<vmem>>, vector<1x32xf32>
    %cst_178 = arith.constant dense<0.000000e+00> : vector<16xf32>
    %431 = vector.multi_reduction <add>, %428, %cst_178 [1] : vector<16x32xf32> to vector<16xf32>
    %432 = vector.shape_cast %431 : vector<16xf32> to vector<16x1xf32>
    %cst_179 = arith.constant 3.200000e+01 : f32
    %433 = vector.broadcast %cst_179 : f32 to vector<16x1xf32>
    %434 = arith.divf %432, %433 : vector<16x1xf32>
    %435 = vector.broadcast %434 : vector<16x1xf32> to vector<16x32xf32>
    %436 = arith.subf %428, %435 : vector<16x32xf32>
    %437 = arith.mulf %436, %436 : vector<16x32xf32>
    %cst_180 = arith.constant dense<0.000000e+00> : vector<16xf32>
    %438 = vector.multi_reduction <add>, %437, %cst_180 [1] : vector<16x32xf32> to vector<16xf32>
    %439 = vector.shape_cast %438 : vector<16xf32> to vector<16x1xf32>
    %cst_181 = arith.constant 3.200000e+01 : f32
    %440 = vector.broadcast %cst_181 : f32 to vector<16x1xf32>
    %441 = arith.divf %439, %440 : vector<16x1xf32>
    %442 = vector.broadcast %434 : vector<16x1xf32> to vector<16x32xf32>
    %443 = arith.subf %428, %442 : vector<16x32xf32>
    %cst_182 = arith.constant 9.99999974E-6 : f32
    %444 = vector.broadcast %cst_182 : f32 to vector<16x1xf32>
    %445 = arith.addf %441, %444 : vector<16x1xf32>
    %446 = math.rsqrt %445 : vector<16x1xf32>
    %447 = vector.broadcast %446 : vector<16x1xf32> to vector<16x32xf32>
    %448 = arith.mulf %443, %447 : vector<16x32xf32>
    %449 = vector.broadcast %429 : vector<1x32xf32> to vector<16x32xf32>
    %450 = arith.mulf %448, %449 : vector<16x32xf32>
    %451 = vector.broadcast %430 : vector<1x32xf32> to vector<16x32xf32>
    %452 = arith.addf %450, %451 : vector<16x32xf32>
    %453 = vector.extract_strided_slice %452 {offsets = [8, 0], sizes = [8, 32], strides = [1, 1]} : vector<16x32xf32> to vector<8x32xf32>
    %c0_183 = arith.constant 0 : index
    %c0_184 = arith.constant 0 : index
    %454 = vector.load %arg12[%c0_183, %c0_184] : memref<32x128xf32, #tpu.memory_space<vmem>>, vector<32x128xf32>
    %cst_185 = arith.constant dense<0.000000e+00> : vector<8x128xf32>
    %455 = tpu.matmul %453, %454, %cst_185 {dimension_numbers = #tpu.dot_dimension_numbers<[1], [0], [0], [1], [0, 0, 1, 1], [], []>} : vector<8x32xf32>, vector<32x128xf32>, vector<8x128xf32> -> vector<8x128xf32>
    %c0_186 = arith.constant 0 : index
    %c0_187 = arith.constant 0 : index
    %456 = vector.load %arg13[%c0_186, %c0_187] : memref<1x128xf32, #tpu.memory_space<vmem>>, vector<1x128xf32>
    %457 = vector.broadcast %456 : vector<1x128xf32> to vector<8x128xf32>
    %458 = arith.addf %455, %457 : vector<8x128xf32>
    %c0_188 = arith.constant 0 : index
    %c0_189 = arith.constant 0 : index
    %459 = vector.load %arg14[%c0_188, %c0_189] : memref<8x128xf32, #tpu.memory_space<vmem>>, vector<8x128xf32>
    tpu.vector_store %arg14[%c0_188, %c0_189], %458 {strides = array<i32>} : memref<8x128xf32, #tpu.memory_space<vmem>>, vector<8x128xf32>,
    return
  }
}

</mosaic_0001>

<llo_original>
// kernel: split.1
$region0: #{split.1}
  #allocation0 [shape = 'u32[2048]{0}', space=vmem, size = 0x2000, scoped, tag = 'scoped memory for split.1']
  #allocation1 [shape = 'u32[2048]{0}', space=vmem, size = 0x2000, scoped, tag = 'scoped memory for split.1']
  #allocation2 [shape = 'u32[2048]{0}', space=vmem, size = 0x2000, scoped, tag = 'scoped memory for split.1']
  #allocation3 [shape = 'u32[2048]{0}', space=vmem, size = 0x2000, scoped, tag = 'scoped memory for split.1']
  #allocation4 [shape = 'u32[2048]{0}', space=vmem, size = 0x2000, scoped, tag = 'scoped memory for split.1']
  #allocation5 [shape = 's32[1]{0}', space=sflag, size = 0x4, scoped, tag = 'scoped memory for split.1']
  %s0 = inlined_call_operand.vmem [shape: f32[2,3,20], index: 0, kind: input, shape index: {}]
  %s1 = inlined_call_operand.vmem [shape: f32[2,3,12], index: 1, kind: output, shape index: {}]
  %v2 = vld [vmem:[%s0] sm:$0x7]
  %v3 = vlaneseq
  %v4 = vand.u32 %v3, 127
  %vm5 = vcmp.lt.s32.totalorder %v4, 8
  %v6 = vsel %vm5, 0, %v2
  %7 = vrot.lane.b32.xlu0 %v6, 120
  %v8 = vpop.permute.xlu0 %7
  %9 = vst [vmem:[%s1] sm:$0xf] %v8
  %s10 = scalar_lea.vmem %s0, 4
  %v11 = vld [vmem:[%s10] sm:$0x7]
  %v12 = vlaneseq
  %v13 = vand.u32 %v12, 127
  %vm14 = vcmp.lt.s32.totalorder %v13, 8
  %v15 = vsel %vm14, 0, %v11
  %16 = vrot.lane.b32.xlu0 %v15, 120
  %v17 = vpop.permute.xlu0 %16
  %s18 = scalar_lea.vmem %s1, 4
  %19 = vst [vmem:[%s18] sm:$0xf] %v17

// kernel: classification_forward.1
$region0: #{classification_forward.1}
  #allocation0 [shape = 'u32[]', space=smem, size = 0x4, offset = 0x4, fixed_abs, tag = 'smem constant byte address 0x4 - core index']
  #allocation1 [shape = 'u32[72,128]{1,0:T(1,128)}', space=vmem, size = 0x9000, scoped, tag = 'internal scratch']
  %s0 = inlined_call_operand.vmem [shape: f32[1,16], index: 0, kind: input, shape index: {}]
  %s1 = inlined_call_operand.hbm [shape: f32[8,64], index: 1, kind: input, shape index: {}]
  %s2 = inlined_call_operand.hbm [shape: f32[8,32], index: 2, kind: input, shape index: {}]
  %s3 = inlined_call_operand.hbm [shape: f32[8,32], index: 3, kind: input, shape index: {}]
  %s4 = inlined_call_operand.vmem [shape: f32[64,32], index: 4, kind: input, shape index: {}]
  %s5 = inlined_call_operand.hbm [shape: f32[17,32], index: 5, kind: input, shape index: {}]
  %s6 = inlined_call_operand.vmem [shape: f32[2,32,96], index: 6, kind: input, shape index: {}]
  %s7 = inlined_call_operand.vmem [shape: f32[2,1,96], index: 7, kind: input, shape index: {}]
  %s8 = inlined_call_operand.hbm [shape: f32[2,32,32], index: 8, kind: input, shape index: {}]
  %s9 = inlined_call_operand.hbm [shape: bf16[2,32,2048], index: 9, kind: input, shape index: {}]
  %s10 = inlined_call_operand.vmem [shape: f32[2,2048], index: 10, kind: input, shape index: {}]
  %s11 = inlined_call_operand.hbm [shape: bf16[2,32,2048], index: 11, kind: input, shape index: {}]
  %s12 = inlined_call_operand.hbm [shape: f32[32,128], index: 12, kind: input, shape index: {}]
  %s13 = inlined_call_operand.vmem [shape: f32[1,128], index: 13, kind: input, shape index: {}]
  %s14 = inlined_call_operand.vmem [shape: f32[8,128], index: 14, kind: output, shape index: {}]
  %s15 = sld [smem:[#allocation0]]
  $region98: #{classification_forward.1} parent=0
    _
  %s17 = ssub.s32 1, %s15
  %s18 = scalar_select 0, %s17, %s15
  $region1: #{classification_forward.1} parent=0
    #allocation2 [shape = 'u8[4096]{0}', space=vmem, size = 0x1000, scoped, tag = 'input window, operand 1, single buffered']
    #allocation3 [shape = 's32[1]{0}', space=sflag, size = 0x4, scoped, tag = 'scoped memory for classification_forward.1']
    #allocation4 [shape = 'u8[4096]{0}', space=vmem, size = 0x1000, scoped, tag = 'input window, operand 2, single buffered']
    #allocation5 [shape = 's32[1]{0}', space=sflag, size = 0x4, scoped, tag = 'scoped memory for classification_forward.1']
    #allocation6 [shape = 'u8[4096]{0}', space=vmem, size = 0x1000, scoped, tag = 'input window, operand 3, single buffered']
    #allocation7 [shape = 'u8[12288]{0}', space=vmem, size = 0x3000, scoped, tag = 'input window, operand 5, single buffered']
    #allocation8 [shape = 's32[1]{0}', space=sflag, size = 0x4, scoped, tag = 'scoped memory for classification_forward.1']
    #allocation9 [shape = 'u8[32768]{0}', space=vmem, size = 0x8000, scoped, tag = 'input window, operand 8, single buffered']
    #allocation10 [shape = 'u8[262144]{0}', space=vmem, size = 0x40000, scoped, tag = 'input window, operand 9, single buffered']
    #allocation11 [shape = 's32[1]{0}', space=sflag, size = 0x4, scoped, tag = 'scoped memory for classification_forward.1']
    #allocation12 [shape = 'u8[262144]{0}', space=vmem, size = 0x40000, scoped, tag = 'input window, operand 11, single buffered']
    #allocation13 [shape = 'u8[16384]{0}', space=vmem, size = 0x4000, scoped, tag = 'input window, operand 12, single buffered']
    #allocation14 [shape = 's32[1]{0}', space=sflag, size = 0x4, scoped, tag = 'scoped memory for classification_forward.1']
    %19 = vsyncpa [#allocation3], 0
    %20 = vsyncpa [#allocation5], 0
    %21 = vsyncpa [#allocation8], 0
    %22 = vsyncpa [#allocation11], 0
    %23 = vsyncpa [#allocation14], 0
    // Predicated region
    $region2: #{classification_forward.1} parent=1 // pred_check
      _
    $region3: #{classification_forward.1} parent=1 // pred_check_branch
      %25 = sbr.rel (0) target = $region5
    $region4: #{classification_forward.1} parent=1 // pred_region
      _
    $region5: #{classification_forward.1} parent=1 // pred_fallthru
      _
    // Predicated region
    $region6: #{classification_forward.1} parent=1 // pred_check
      _
    $region7: #{classification_forward.1} parent=1 // pred_check_branch
      %27 = sbr.rel (0) target = $region9
    $region8: #{classification_forward.1} parent=1 // pred_region
      %29 = vsyncadd [#allocation3], 0
      %s31 = sshll.u32 %s1, 4
      %s32 = int_to_ptr.hbm [resolvable:$true] %s31
      %s33 = sshll.u32 [#allocation2], 4
      %s34 = int_to_ptr.vmem [resolvable:$true] %s33
      %36 = dma.hbm_to_vmem [thread:$0]  %s32, 128, %s34, [#allocation3]
    $region9: #{classification_forward.1} parent=1 // pred_fallthru
      _
    // Predicated region
    $region10: #{classification_forward.1} parent=1 // pred_check
      _
    $region11: #{classification_forward.1} parent=1 // pred_check_branch
      %38 = sbr.rel (0) target = $region13
    $region12: #{classification_forward.1} parent=1 // pred_region
      %40 = vsyncadd [#allocation5], 0
      %s42 = sshll.u32 %s2, 4
      %s43 = int_to_ptr.hbm [resolvable:$true] %s42
      %s44 = sshll.u32 [#allocation4], 4
      %s45 = int_to_ptr.vmem [resolvable:$true] %s44
      %47 = dma.hbm_to_vmem [thread:$0]  %s43, 128, %s45, [#allocation5]
    $region13: #{classification_forward.1} parent=1 // pred_fallthru
      _
    // Predicated region
    $region14: #{classification_forward.1} parent=1 // pred_check
      _
    $region15: #{classification_forward.1} parent=1 // pred_check_branch
      %49 = sbr.rel (0) target = $region17
    $region16: #{classification_forward.1} parent=1 // pred_region
      %51 = vsyncadd [#allocation5], 0
      %s53 = sshll.u32 %s3, 4
      %s54 = int_to_ptr.hbm [resolvable:$true] %s53
      %s55 = sshll.u32 [#allocation6], 4
      %s56 = int_to_ptr.vmem [resolvable:$true] %s55
      %58 = dma.hbm_to_vmem [thread:$0]  %s54, 128, %s56, [#allocation5]
    $region17: #{classification_forward.1} parent=1 // pred_fallthru
      _
    // Predicated region
    $region18: #{classification_forward.1} parent=1 // pred_check
      _
    $region19: #{classification_forward.1} parent=1 // pred_check_branch
      %60 = sbr.rel (0) target = $region21
    $region20: #{classification_forward.1} parent=1 // pred_region
      _
    $region21: #{classification_forward.1} parent=1 // pred_fallthru
      _
    // Predicated region
    $region22: #{classification_forward.1} parent=1 // pred_check
      _
    $region23: #{classification_forward.1} parent=1 // pred_check_branch
      %62 = sbr.rel (0) target = $region25
    $region24: #{classification_forward.1} parent=1 // pred_region
      %64 = vsyncadd [#allocation8], 0
      %s65 = sshll.u32 %s5, 4
      %s66 = int_to_ptr.hbm [resolvable:$true] %s65
      %s67 = sshll.u32 [#allocation7], 4
      %s68 = int_to_ptr.vmem [resolvable:$true] %s67
      %73 = dma.hbm_to_vmem [thread:$0]  %s66, 384, %s68, [#allocation8], 128, 128, 8
    $region25: #{classification_forward.1} parent=1 // pred_fallthru
      _
    // Predicated region
    $region26: #{classification_forward.1} parent=1 // pred_check
      _
    $region27: #{classification_forward.1} parent=1 // pred_check_branch
      %75 = sbr.rel (0) target = $region29
    $region28: #{classification_forward.1} parent=1 // pred_region
      _
    $region29: #{classification_forward.1} parent=1 // pred_fallthru
      _
    // Predicated region
    $region30: #{classification_forward.1} parent=1 // pred_check
      _
    $region31: #{classification_forward.1} parent=1 // pred_check_branch
      %77 = sbr.rel (0) target = $region33
    $region32: #{classification_forward.1} parent=1 // pred_region
      _
    $region33: #{classification_forward.1} parent=1 // pred_fallthru
      _
    // Predicated region
    $region34: #{classification_forward.1} parent=1 // pred_check
      _
    $region35: #{classification_forward.1} parent=1 // pred_check_branch
      %79 = sbr.rel (0) target = $region37
    $region36: #{classification_forward.1} parent=1 // pred_region
      %81 = vsyncadd [#allocation8], 0
      %s82 = sshll.u32 %s8, 4
      %s83 = int_to_ptr.hbm [resolvable:$true] %s82
      %s84 = sshll.u32 [#allocation9], 4
      %s85 = int_to_ptr.vmem [resolvable:$true] %s84
      %90 = dma.hbm_to_vmem [thread:$0]  %s83, 1024, %s85, [#allocation8], 128, 128, 8
    $region37: #{classification_forward.1} parent=1 // pred_fallthru
      _
    // Predicated region
    $region38: #{classification_forward.1} parent=1 // pred_check
      _
    $region39: #{classification_forward.1} parent=1 // pred_check_branch
      %92 = sbr.rel (0) target = $region41
    $region40: #{classification_forward.1} parent=1 // pred_region
      %94 = vsyncadd [#allocation11], 0
      %s95 = sshll.u32 %s9, 4
      %s96 = int_to_ptr.hbm [resolvable:$true] %s95
      %s97 = sshll.u32 [#allocation10], 4
      %s98 = int_to_ptr.vmem [resolvable:$true] %s97
      %103 = dma.hbm_to_vmem [thread:$0]  %s96, 8192, %s98, [#allocation11], 1024, 1024, 64
    $region41: #{classification_forward.1} parent=1 // pred_fallthru
      _
    // Predicated region
    $region42: #{classification_forward.1} parent=1 // pred_check
      _
    $region43: #{classification_forward.1} parent=1 // pred_check_branch
      %105 = sbr.rel (0) target = $region45
    $region44: #{classification_forward.1} parent=1 // pred_region
      _
    $region45: #{classification_forward.1} parent=1 // pred_fallthru
      _
    // Predicated region
    $region46: #{classification_forward.1} parent=1 // pred_check
      _
    $region47: #{classification_forward.1} parent=1 // pred_check_branch
      %107 = sbr.rel (0) target = $region49
    $region48: #{classification_forward.1} parent=1 // pred_region
      %109 = vsyncadd [#allocation11], 0
      %s110 = sshll.u32 %s11, 4
      %s111 = int_to_ptr.hbm [resolvable:$true] %s110
      %s112 = sshll.u32 [#allocation12], 4
      %s113 = int_to_ptr.vmem [resolvable:$true] %s112
      %118 = dma.hbm_to_vmem [thread:$0]  %s111, 8192, %s113, [#allocation11], 1024, 1024, 64
    $region49: #{classification_forward.1} parent=1 // pred_fallthru
      _
    // Predicated region
    $region50: #{classification_forward.1} parent=1 // pred_check
      _
    $region51: #{classification_forward.1} parent=1 // pred_check_branch
      %120 = sbr.rel (0) target = $region53
    $region52: #{classification_forward.1} parent=1 // pred_region
      %122 = vsyncadd [#allocation14], 0
      %s123 = sshll.u32 %s12, 4
      %s124 = int_to_ptr.hbm [resolvable:$true] %s123
      %s125 = sshll.u32 [#allocation13], 4
      %s126 = int_to_ptr.vmem [resolvable:$true] %s125
      %131 = dma.hbm_to_vmem [thread:$0]  %s124, 512, %s126, [#allocation14], 128, 128, 8
    $region53: #{classification_forward.1} parent=1 // pred_fallthru
      _
    // Predicated region
    $region54: #{classification_forward.1} parent=1 // pred_check
      _
    $region55: #{classification_forward.1} parent=1 // pred_check_branch
      %133 = sbr.rel (0) target = $region57
    $region56: #{classification_forward.1} parent=1 // pred_region
      _
    $region57: #{classification_forward.1} parent=1 // pred_fallthru
      _
    // Predicated region
    $region58: #{classification_forward.1} parent=1 // pred_check
      _
    $region59: #{classification_forward.1} parent=1 // pred_check_branch
      %135 = sbr.rel (0) target = $region61
    $region60: #{classification_forward.1} parent=1 // pred_region
      %137 = dma.done [#allocation3], 128
    $region61: #{classification_forward.1} parent=1 // pred_fallthru
      _
    // Predicated region
    $region62: #{classification_forward.1} parent=1 // pred_check
      _
    $region63: #{classification_forward.1} parent=1 // pred_check_branch
      %139 = sbr.rel (0) target = $region65
    $region64: #{classification_forward.1} parent=1 // pred_region
      %141 = dma.done [#allocation5], 128
    $region65: #{classification_forward.1} parent=1 // pred_fallthru
      _
    // Predicated region
    $region66: #{classification_forward.1} parent=1 // pred_check
      _
    $region67: #{classification_forward.1} parent=1 // pred_check_branch
      %143 = sbr.rel (0) target = $region69
    $region68: #{classification_forward.1} parent=1 // pred_region
      %145 = dma.done [#allocation5], 128
    $region69: #{classification_forward.1} parent=1 // pred_fallthru
      _
    // Predicated region
    $region70: #{classification_forward.1} parent=1 // pred_check
      _
    $region71: #{classification_forward.1} parent=1 // pred_check_branch
      %147 = sbr.rel (0) target = $region73
    $region72: #{classification_forward.1} parent=1 // pred_region
      %149 = dma.done [#allocation8], 384
    $region73: #{classification_forward.1} parent=1 // pred_fallthru
      _
    // Predicated region
    $region74: #{classification_forward.1} parent=1 // pred_check
      _
    $region75: #{classification_forward.1} parent=1 // pred_check_branch
      %151 = sbr.rel (0) target = $region77
    $region76: #{classification_forward.1} parent=1 // pred_region
      %153 = dma.done [#allocation8], 1024
    $region77: #{classification_forward.1} parent=1 // pred_fallthru
      _
    // Predicated region
    $region78: #{classification_forward.1} parent=1 // pred_check
      _
    $region79: #{classification_forward.1} parent=1 // pred_check_branch
      %155 = sbr.rel (0) target = $region81
    $region80: #{classification_forward.1} parent=1 // pred_region
      %157 = dma.done [#allocation11], 8192
    $region81: #{classification_forward.1} parent=1 // pred_fallthru
      _
    // Predicated region
    $region82: #{classification_forward.1} parent=1 // pred_check
      _
    $region83: #{classification_forward.1} parent=1 // pred_check_branch
      %159 = sbr.rel (0) target = $region85
    $region84: #{classification_forward.1} parent=1 // pred_region
      %161 = dma.done [#allocation11], 8192
    $region85: #{classification_forward.1} parent=1 // pred_fallthru
      _
    // Predicated region
    $region86: #{classification_forward.1} parent=1 // pred_check
      _
    $region87: #{classification_forward.1} parent=1 // pred_check_branch
      %163 = sbr.rel (0) target = $region89
    $region88: #{classification_forward.1} parent=1 // pred_region
      %165 = dma.done [#allocation14], 512
    $region89: #{classification_forward.1} parent=1 // pred_fallthru
      _
    %v167 = vld [vmem:[#allocation2] sm:$0xff]
    %v168 = vld [vmem:[%s4] sm:$0xff]
    %v169 = vld [vmem:[%s4 + $0x8] sm:$0xff]
    %v170 = vld [vmem:[%s4 + $0x10] sm:$0xff]
    %v171 = vld [vmem:[%s4 + $0x18] sm:$0xff]
    %v172 = vld [vmem:[%s4 + $0x20] sm:$0xff]
    %v173 = vld [vmem:[%s4 + $0x28] sm:$0xff]
    %v174 = vld [vmem:[%s4 + $0x30] sm:$0xff]
    %v175 = vld [vmem:[%s4 + $0x38] sm:$0xff]
    %v176 = vld [vmem:[#allocation7] sm:$0x1]
    %v177 = vperm.slane %v176, 0
    %vm178 = vcmask 523264
    %v180 = vsel %vm178, %v167, 0
    %182 = vmatpush.msra.mxu0 0.0
    %183 = vmatpush.msra.mxu0 0.0
    %184 = vmatpush.msra.mxu0 0.0
    %185 = vmatpush.msra.mxu0 0.0
    %186 = vmatpush.msra.mxu0 0.0
    %187 = vmatpush.msra.mxu0 0.0
    %188 = vmatpush.msra.mxu0 0.0
    %189 = vmatpush.msra.mxu0 0.0
    %190 = vmatpush.msra.mxu0 %v175
    %191 = vmatpush.msra.mxu0 %v174
    %192 = vmatpush.msra.mxu0 %v173
    %193 = vmatpush.msra.mxu0 %v172
    %194 = vmatpush.msra.mxu0 %v171
    %195 = vmatpush.msra.mxu0 %v170
    %196 = vmatpush.msra.mxu0 %v169
    %197 = vmatpush.msra.mxu0 %v168
    %198 = vmatmul.f32.gmra.mxu0 %v180
    %v199 = vpop.f32.mrf.mxu0
    %v200 = vadd.f32 %v177, %v199
    %201 = vdwg.mxu0
    %v202 = vld [vmem:[#allocation4] sm:$0xff]
    %v203 = vadd.f32 %v200, %v202
    %v204 = vld [vmem:[#allocation7 + $0x1] sm:$0x1]
    %v205 = vld [vmem:[#allocation7 + $0x2] sm:$0x1]
    %vm206 = vcmask 261120
    %v207 = vsel %vm206, %v203, 0.0
    %208 = vadd.xlane.f32.xlu0 %v207
    %v209 = vpop.xlane.xlu0 %208
    %v210 = vrcp.pop 32.0
    %v211 = vmul.f32 32.0, %v210
    %v212 = vsub.f32 1.0, %v211
    %v213 = vmul.f32 %v210, %v212
    %v214 = vadd.f32 %v210, %v213
    %vm215 = vweird.f32 %v210
    %v216 = vsel %vm215, %v210, %v214
    %v217 = vmul.f32 %v209, %v216
    %v218 = vsub.f32 %v203, %v217
    %v219 = vmul.f32 %v218, %v218
    %v220 = vsel %vm206, %v219, 0.0
    %221 = vadd.xlane.f32.xlu0 %v220
    %v222 = vpop.xlane.xlu0 %221
    %v223 = vmul.f32 %v222, %v216
    %v224 = vadd.f32 %v223, 1e-05
    %v225 = vrsqrt.pop %v224
    %v226 = vmul.f32 %v225, %v224
    %v227 = vmul.f32 %v226, %v225
    %v228 = vmul.f32 0.5, %v227
    %v229 = vsub.f32 1.5, %v228
    %v230 = vmul.f32 %v225, %v229
    %vm231 = vweird.f32 %v224
    %vm232 = vweird.f32 %v225
    %vm233 = vmor %vm231, %vm232
    %v234 = vsel %vm233, %v225, %v230
    %v235 = vmul.f32 %v218, %v234
    %v236 = vperm.slane %v204, 0
    %v237 = vmul.f32 %v235, %v236
    %v238 = vperm.slane %v205, 0
    %v239 = vadd.f32 %v237, %v238
    %v240 = vld [vmem:[#allocation6] sm:$0xff]
    %v241 = vsel %vm206, %v240, 0.0
    %242 = vadd.xlane.f32.xlu0 %v241
    %v243 = vpop.xlane.xlu0 %242
    %v244 = vmul.f32 %v243, %v216
    %v245 = vsub.f32 %v240, %v244
    %v246 = vmul.f32 %v245, %v245
    %v247 = vsel %vm206, %v246, 0.0
    %248 = vadd.xlane.f32.xlu0 %v247
    %v249 = vpop.xlane.xlu0 %248
    %v250 = vmul.f32 %v249, %v216
    %v251 = vadd.f32 %v250, 1e-05
    %v252 = vrsqrt.pop %v251
    %v253 = vmul.f32 %v252, %v251
    %v254 = vmul.f32 %v253, %v252
    %v255 = vmul.f32 0.5, %v254
    %v256 = vsub.f32 1.5, %v255
    %v257 = vmul.f32 %v252, %v256
    %vm258 = vweird.f32 %v251
    %vm259 = vweird.f32 %v252
    %vm260 = vmor %vm258, %vm259
    %v261 = vsel %vm260, %v252, %v257
    %v262 = vmul.f32 %v245, %v261
    %v263 = vmul.f32 %v262, %v236
    %v264 = vadd.f32 %v263, %v238
    %v265 = vlaneseq
    %v266 = vshrl.u32 %v265, 7
    %v267 = vadd.s32 %v266, 8
    %v268 = vlaneseq
    %v269 = vand.u32 %v268, 127
    %vm270 = vcmp.ge.s32.totalorder %v266, 4
    %vm271 = vcmp.ge.s32.totalorder %v267, 4
    %v272 = vsel %vm270, 1, 0
    %v273 = vsel %vm271, 1, 0
    %vm274 = vcmp.ge.s32.totalorder %v266, 11
    %vm275 = vcmp.ge.s32.totalorder %v267, 11
    %v276 = vsel %vm274, 1, 0
    %v277 = vsel %vm275, 1, 0
    %vm278 = vcmp.ge.s32.totalorder %v266, 14
    %vm279 = vcmp.ge.s32.totalorder %v267, 14
    %v280 = vsel %vm278, 1, 0
    %v281 = vsel %vm279, 1, 0
    %v282 = vadd.s32 %v276, %v280
    %v283 = vadd.s32 %v277, %v281
    %vm284 = vcmp.lt.s32.totalorder %v266, 8
    %vm285 = vcmp.lt.s32.totalorder %v267, 8
    %v286 = vsel %vm284, %v272, %v282
    %v287 = vsel %vm285, %v273, %v283
    %vm288 = vcmp.ge.s32.totalorder %v269, 4
    %v289 = vsel %vm288, 1, 0
    %vm290 = vcmp.ge.s32.totalorder %v269, 11
    %v291 = vsel %vm290, 1, 0
    %vm292 = vcmp.ge.s32.totalorder %v269, 14
    %v293 = vsel %vm292, 1, 0
    %v294 = vadd.s32 %v291, %v293
    %vm295 = vcmp.lt.s32.totalorder %v269, 8
    %v296 = vsel %vm295, %v289, %v294
    %vm297 = vcmp.eq.s32.totalorder %v286, %v296
    %vm298 = vcmp.eq.s32.totalorder %v287, %v296
    %v299 = vld [vmem:[%s0] sm:$0x1]
    %vm300 = vcmp.lt.f32.partialorder %v299, 0.5
    %v301 = vsel %vm300, 1, 0
    %v302 = vperm.slane %v301, 0
    %vm303 = vcmp.eq.s32.totalorder %v302, 1
    %vm304 = vmand %vm297, %vm303
    %vm305 = vmand %vm298, %vm303
    %v306 = vsel %vm304, 0.0, -1e+30
    %v307 = vsel %vm305, 0.0, -1e+30
    %v308 = vld [vmem:[%s6] sm:$0xff]
    %v309 = vld [vmem:[%s6 + $0x8] sm:$0xff]
    %v310 = vld [vmem:[%s6 + $0x10] sm:$0xff]
    %v311 = vld [vmem:[%s6 + $0x18] sm:$0xff]
    %v312 = vld [vmem:[%s7] sm:$0x1]
    %v314 = vperm.slane %v312, 0
    %v317 = vsel %vm206, %v239, 0
    %v320 = vsel %vm206, %v264, 0
    %322 = vmatpush.msra.mxu0 0.0
    %323 = vmatpush.msra.mxu0 0.0
    %324 = vmatpush.msra.mxu0 0.0
    %325 = vmatpush.msra.mxu0 0.0
    %326 = vmatpush.msra.mxu0 0.0
    %327 = vmatpush.msra.mxu0 0.0
    %328 = vmatpush.msra.mxu0 0.0
    %329 = vmatpush.msra.mxu0 0.0
    %330 = vmatpush.msra.mxu0 0.0
    %331 = vmatpush.msra.mxu0 0.0
    %332 = vmatpush.msra.mxu0 0.0
    %333 = vmatpush.msra.mxu0 0.0
    %334 = vmatpush.msra.mxu0 %v311
    %335 = vmatpush.msra.mxu0 %v310
    %336 = vmatpush.msra.mxu0 %v309
    %337 = vmatpush.msra.mxu0 %v308
    %338 = vmatmul.f32.gmra.mxu0 %v317
    %v339 = vpop.f32.mrf.mxu0
    %v340 = vadd.f32 %v314, %v339
    %341 = vmatmul.f32.gmra.mxu0 %v320
    %v342 = vpop.f32.mrf.mxu0
    %v343 = vadd.f32 %v314, %v342
    %344 = vdwg.mxu0
    %v345 = vld [vmem:[#allocation7 + $0x5] sm:$0x1]
    %348 = vrot.lane.b32.xlu0 %v340, 96
    %v349 = vpop.permute.xlu0 %348
    %350 = vrot.lane.b32.xlu0 %v343, 96
    %v351 = vpop.permute.xlu0 %350
    %vm352 = vcmask 64512
    %v353 = vsel %vm352, %v340, 0
    %v355 = vsel %vm352, %v343, 0
    %v357 = vsel %vm352, %v349, 0
    %v359 = vsel %vm352, %v351, 0
    %361 = vmatpush.xpose.msra.mxu0 0.0
    %362 = vmatpush.xpose.msra.mxu0 0.0
    %363 = vmatpush.xpose.msra.mxu0 0.0
    %364 = vmatpush.xpose.msra.mxu0 0.0
    %365 = vmatpush.xpose.msra.mxu0 0.0
    %366 = vmatpush.xpose.msra.mxu0 0.0
    %367 = vmatpush.xpose.msra.mxu0 0.0
    %368 = vmatpush.xpose.msra.mxu0 0.0
    %369 = vmatpush.xpose.msra.mxu0 0.0
    %370 = vmatpush.xpose.msra.mxu0 0.0
    %371 = vmatpush.xpose.msra.mxu0 0.0
    %372 = vmatpush.xpose.msra.mxu0 0.0
    %373 = vmatpush.xpose.msra.mxu0 0.0
    %374 = vmatpush.xpose.msra.mxu0 0.0
    %375 = vmatpush.xpose.msra.mxu0 %v359
    %376 = vmatpush.xpose.msra.mxu0 %v357
    %377 = vmatmul.f32.gmra.mxu0 %v353
    %v378 = vpop.f32.mrf.mxu0
    %v379 = vadd.f32 0.0, %v378
    %380 = vmatmul.f32.gmra.mxu0 %v355
    %v381 = vpop.f32.mrf.mxu0
    %v382 = vadd.f32 0.0, %v381
    %383 = vdwg.mxu0
    %v384 = vmul.f32 %v379, 0.35355338
    %v385 = vmul.f32 %v382, 0.35355338
    %v386 = vadd.f32 %v384, %v306
    %v387 = vadd.f32 %v385, %v307
    %vm388 = vcmask 130048
    %v389 = vsel %vm388, %v386, -inf
    %390 = vmax.xlane.f32.xlu0 %v389
    %v391 = vpop.xlane.xlu0 %390
    %v392 = vsel %vm388, %v387, -inf
    %393 = vmax.xlane.f32.xlu0 %v392
    %v394 = vpop.xlane.xlu0 %393
    %v395 = vsub.f32 %v386, %v391
    %v396 = vsub.f32 %v387, %v394
    %v397 = vmul.f32 %v395, 1.442695
    %v398 = vpow.pop %v397
    %v399 = vmul.f32 %v396, 1.442695
    %v400 = vpow.pop %v399
    %v401 = vsel %vm388, %v398, 0.0
    %402 = vadd.xlane.f32.xlu0 %v401
    %v403 = vpop.xlane.xlu0 %402
    %v404 = vsel %vm388, %v400, 0.0
    %405 = vadd.xlane.f32.xlu0 %v404
    %v406 = vpop.xlane.xlu0 %405
    %v407 = vrcp.pop %v403
    %v408 = vrcp.pop %v406
    %v409 = vmul.f32 %v398, %v407
    %v410 = vmul.f32 %v400, %v408
    %411 = vrot.lane.b32.xlu0 %v340, 64
    %v412 = vpop.permute.xlu0 %411
    %413 = vrot.lane.b32.xlu0 %v343, 64
    %v414 = vpop.permute.xlu0 %413
    %v418 = vsel %vm388, %v409, 0
    %v421 = vsel %vm388, %v410, 0
    %423 = vmatpush.msra.mxu0 0.0
    %424 = vmatpush.msra.mxu0 0.0
    %425 = vmatpush.msra.mxu0 0.0
    %426 = vmatpush.msra.mxu0 0.0
    %427 = vmatpush.msra.mxu0 0.0
    %428 = vmatpush.msra.mxu0 0.0
    %429 = vmatpush.msra.mxu0 0.0
    %430 = vmatpush.msra.mxu0 0.0
    %431 = vmatpush.msra.mxu0 0.0
    %432 = vmatpush.msra.mxu0 0.0
    %433 = vmatpush.msra.mxu0 0.0
    %434 = vmatpush.msra.mxu0 0.0
    %435 = vmatpush.msra.mxu0 0.0
    %436 = vmatpush.msra.mxu0 0.0
    %437 = vmatpush.msra.mxu0 %v414
    %438 = vmatpush.msra.mxu0 %v412
    %439 = vmatmul.f32.gmra.mxu0 %v418
    %v440 = vpop.f32.mrf.mxu0
    %v441 = vadd.f32 0.0, %v440
    %442 = vmatmul.f32.gmra.mxu0 %v421
    %v443 = vpop.f32.mrf.mxu0
    %v444 = vadd.f32 0.0, %v443
    %445 = vdwg.mxu0
    %v446 = vld [vmem:[#allocation9] sm:$0xff]
    %v448 = vsel %vm352, %v441, 0
    %v451 = vsel %vm352, %v444, 0
    %453 = vmatpush.msra.mxu0 0.0
    %454 = vmatpush.msra.mxu0 0.0
    %455 = vmatpush.msra.mxu0 0.0
    %456 = vmatpush.msra.mxu0 0.0
    %457 = vmatpush.msra.mxu0 0.0
    %458 = vmatpush.msra.mxu0 0.0
    %459 = vmatpush.msra.mxu0 0.0
    %460 = vmatpush.msra.mxu0 0.0
    %461 = vmatpush.msra.mxu0 0.0
    %462 = vmatpush.msra.mxu0 0.0
    %463 = vmatpush.msra.mxu0 0.0
    %464 = vmatpush.msra.mxu0 0.0
    %465 = vmatpush.msra.mxu0 0.0
    %466 = vmatpush.msra.mxu0 0.0
    %467 = vmatpush.msra.mxu0 0.0
    %468 = vmatpush.msra.mxu0 %v446
    %469 = vmatmul.f32.gmra.mxu0 %v448
    %v470 = vpop.f32.mrf.mxu0
    %v471 = vadd.f32 0.0, %v470
    %472 = vmatmul.f32.gmra.mxu0 %v451
    %v473 = vpop.f32.mrf.mxu0
    %v474 = vadd.f32 0.0, %v473
    %475 = vdwg.mxu0
    %v476 = vperm.slane %v345, 0
    %v477 = vadd.f32 %v476, %v471
    %v478 = vadd.f32 %v476, %v474
    %479 = vrot.lane.b32.xlu0 %v340, 120
    %v480 = vpop.permute.xlu0 %479
    %481 = vrot.lane.b32.xlu0 %v343, 120
    %v482 = vpop.permute.xlu0 %481
    %483 = vrot.lane.b32.xlu0 %v340, 88
    %v484 = vpop.permute.xlu0 %483
    %485 = vrot.lane.b32.xlu0 %v343, 88
    %v486 = vpop.permute.xlu0 %485
    %v487 = vsel %vm352, %v480, 0
    %v489 = vsel %vm352, %v482, 0
    %v491 = vsel %vm352, %v484, 0
    %v493 = vsel %vm352, %v486, 0
    %495 = vmatpush.xpose.msra.mxu0 0.0
    %496 = vmatpush.xpose.msra.mxu0 0.0
    %497 = vmatpush.xpose.msra.mxu0 0.0
    %498 = vmatpush.xpose.msra.mxu0 0.0
    %499 = vmatpush.xpose.msra.mxu0 0.0
    %500 = vmatpush.xpose.msra.mxu0 0.0
    %501 = vmatpush.xpose.msra.mxu0 0.0
    %502 = vmatpush.xpose.msra.mxu0 0.0
    %503 = vmatpush.xpose.msra.mxu0 0.0
    %504 = vmatpush.xpose.msra.mxu0 0.0
    %505 = vmatpush.xpose.msra.mxu0 0.0
    %506 = vmatpush.xpose.msra.mxu0 0.0
    %507 = vmatpush.xpose.msra.mxu0 0.0
    %508 = vmatpush.xpose.msra.mxu0 0.0
    %509 = vmatpush.xpose.msra.mxu0 %v493
    %510 = vmatpush.xpose.msra.mxu0 %v491
    %511 = vmatmul.f32.gmra.mxu0 %v487
    %v512 = vpop.f32.mrf.mxu0
    %v513 = vadd.f32 0.0, %v512
    %514 = vmatmul.f32.gmra.mxu0 %v489
    %v515 = vpop.f32.mrf.mxu0
    %v516 = vadd.f32 0.0, %v515
    %517 = vdwg.mxu0
    %v518 = vmul.f32 %v513, 0.35355338
    %v519 = vmul.f32 %v516, 0.35355338
    %v520 = vadd.f32 %v518, %v306
    %v521 = vadd.f32 %v519, %v307
    %v522 = vsel %vm388, %v520, -inf
    %523 = vmax.xlane.f32.xlu0 %v522
    %v524 = vpop.xlane.xlu0 %523
    %v525 = vsel %vm388, %v521, -inf
    %526 = vmax.xlane.f32.xlu0 %v525
    %v527 = vpop.xlane.xlu0 %526
    %v528 = vsub.f32 %v520, %v524
    %v529 = vsub.f32 %v521, %v527
    %v530 = vmul.f32 %v528, 1.442695
    %v531 = vpow.pop %v530
    %v532 = vmul.f32 %v529, 1.442695
    %v533 = vpow.pop %v532
    %v534 = vsel %vm388, %v531, 0.0
    %535 = vadd.xlane.f32.xlu0 %v534
    %v536 = vpop.xlane.xlu0 %535
    %v537 = vsel %vm388, %v533, 0.0
    %538 = vadd.xlane.f32.xlu0 %v537
    %v539 = vpop.xlane.xlu0 %538
    %v540 = vrcp.pop %v536
    %v541 = vrcp.pop %v539
    %v542 = vmul.f32 %v531, %v540
    %v543 = vmul.f32 %v533, %v541
    %544 = vrot.lane.b32.xlu0 %v340, 56
    %v545 = vpop.permute.xlu0 %544
    %546 = vrot.lane.b32.xlu0 %v343, 56
    %v547 = vpop.permute.xlu0 %546
    %v551 = vsel %vm388, %v542, 0
    %v554 = vsel %vm388, %v543, 0
    %556 = vmatpush.msra.mxu0 0.0
    %557 = vmatpush.msra.mxu0 0.0
    %558 = vmatpush.msra.mxu0 0.0
    %559 = vmatpush.msra.mxu0 0.0
    %560 = vmatpush.msra.mxu0 0.0
    %561 = vmatpush.msra.mxu0 0.0
    %562 = vmatpush.msra.mxu0 0.0
    %563 = vmatpush.msra.mxu0 0.0
    %564 = vmatpush.msra.mxu0 0.0
    %565 = vmatpush.msra.mxu0 0.0
    %566 = vmatpush.msra.mxu0 0.0
    %567 = vmatpush.msra.mxu0 0.0
    %568 = vmatpush.msra.mxu0 0.0
    %569 = vmatpush.msra.mxu0 0.0
    %570 = vmatpush.msra.mxu0 %v547
    %571 = vmatpush.msra.mxu0 %v545
    %572 = vmatmul.f32.gmra.mxu0 %v551
    %v573 = vpop.f32.mrf.mxu0
    %v574 = vadd.f32 0.0, %v573
    %575 = vmatmul.f32.gmra.mxu0 %v554
    %v576 = vpop.f32.mrf.mxu0
    %v577 = vadd.f32 0.0, %v576
    %578 = vdwg.mxu0
    %v579 = vld [vmem:[#allocation9 + $0x8] sm:$0xff]
    %v581 = vsel %vm352, %v574, 0
    %v584 = vsel %vm352, %v577, 0
    %586 = vmatpush.msra.mxu0 0.0
    %587 = vmatpush.msra.mxu0 0.0
    %588 = vmatpush.msra.mxu0 0.0
    %589 = vmatpush.msra.mxu0 0.0
    %590 = vmatpush.msra.mxu0 0.0
    %591 = vmatpush.msra.mxu0 0.0
    %592 = vmatpush.msra.mxu0 0.0
    %593 = vmatpush.msra.mxu0 0.0
    %594 = vmatpush.msra.mxu0 0.0
    %595 = vmatpush.msra.mxu0 0.0
    %596 = vmatpush.msra.mxu0 0.0
    %597 = vmatpush.msra.mxu0 0.0
    %598 = vmatpush.msra.mxu0 0.0
    %599 = vmatpush.msra.mxu0 0.0
    %600 = vmatpush.msra.mxu0 0.0
    %601 = vmatpush.msra.mxu0 %v579
    %602 = vmatmul.f32.gmra.mxu0 %v581
    %v603 = vpop.f32.mrf.mxu0
    %v604 = vadd.f32 0.0, %v603
    %605 = vmatmul.f32.gmra.mxu0 %v584
    %v606 = vpop.f32.mrf.mxu0
    %v607 = vadd.f32 0.0, %v606
    %608 = vdwg.mxu0
    %v609 = vadd.f32 %v477, %v604
    %v610 = vadd.f32 %v478, %v607
    %611 = vrot.lane.b32.xlu0 %v340, 112
    %v612 = vpop.permute.xlu0 %611
    %613 = vrot.lane.b32.xlu0 %v343, 112
    %v614 = vpop.permute.xlu0 %613
    %615 = vrot.lane.b32.xlu0 %v340, 80
    %v616 = vpop.permute.xlu0 %615
    %617 = vrot.lane.b32.xlu0 %v343, 80
    %v618 = vpop.permute.xlu0 %617
    %v619 = vsel %vm352, %v612, 0
    %v621 = vsel %vm352, %v614, 0
    %v623 = vsel %vm352, %v616, 0
    %v625 = vsel %vm352, %v618, 0
    %627 = vmatpush.xpose.msra.mxu0 0.0
    %628 = vmatpush.xpose.msra.mxu0 0.0
    %629 = vmatpush.xpose.msra.mxu0 0.0
    %630 = vmatpush.xpose.msra.mxu0 0.0
    %631 = vmatpush.xpose.msra.mxu0 0.0
    %632 = vmatpush.xpose.msra.mxu0 0.0
    %633 = vmatpush.xpose.msra.mxu0 0.0
    %634 = vmatpush.xpose.msra.mxu0 0.0
    %635 = vmatpush.xpose.msra.mxu0 0.0
    %636 = vmatpush.xpose.msra.mxu0 0.0
    %637 = vmatpush.xpose.msra.mxu0 0.0
    %638 = vmatpush.xpose.msra.mxu0 0.0
    %639 = vmatpush.xpose.msra.mxu0 0.0
    %640 = vmatpush.xpose.msra.mxu0 0.0
    %641 = vmatpush.xpose.msra.mxu0 %v625
    %642 = vmatpush.xpose.msra.mxu0 %v623
    %643 = vmatmul.f32.gmra.mxu0 %v619
    %v644 = vpop.f32.mrf.mxu0
    %v645 = vadd.f32 0.0, %v644
    %646 = vmatmul.f32.gmra.mxu0 %v621
    %v647 = vpop.f32.mrf.mxu0
    %v648 = vadd.f32 0.0, %v647
    %649 = vdwg.mxu0
    %v650 = vmul.f32 %v645, 0.35355338
    %v651 = vmul.f32 %v648, 0.35355338
    %v652 = vadd.f32 %v650, %v306
    %v653 = vadd.f32 %v651, %v307
    %v654 = vsel %vm388, %v652, -inf
    %655 = vmax.xlane.f32.xlu0 %v654
    %v656 = vpop.xlane.xlu0 %655
    %v657 = vsel %vm388, %v653, -inf
    %658 = vmax.xlane.f32.xlu0 %v657
    %v659 = vpop.xlane.xlu0 %658
    %v660 = vsub.f32 %v652, %v656
    %v661 = vsub.f32 %v653, %v659
    %v662 = vmul.f32 %v660, 1.442695
    %v663 = vpow.pop %v662
    %v664 = vmul.f32 %v661, 1.442695
    %v665 = vpow.pop %v664
    %v666 = vsel %vm388, %v663, 0.0
    %667 = vadd.xlane.f32.xlu0 %v666
    %v668 = vpop.xlane.xlu0 %667
    %v669 = vsel %vm388, %v665, 0.0
    %670 = vadd.xlane.f32.xlu0 %v669
    %v671 = vpop.xlane.xlu0 %670
    %v672 = vrcp.pop %v668
    %v673 = vrcp.pop %v671
    %v674 = vmul.f32 %v663, %v672
    %v675 = vmul.f32 %v665, %v673
    %676 = vrot.lane.b32.xlu0 %v340, 48
    %v677 = vpop.permute.xlu0 %676
    %678 = vrot.lane.b32.xlu0 %v343, 48
    %v679 = vpop.permute.xlu0 %678
    %v683 = vsel %vm388, %v674, 0
    %v686 = vsel %vm388, %v675, 0
    %688 = vmatpush.msra.mxu0 0.0
    %689 = vmatpush.msra.mxu0 0.0
    %690 = vmatpush.msra.mxu0 0.0
    %691 = vmatpush.msra.mxu0 0.0
    %692 = vmatpush.msra.mxu0 0.0
    %693 = vmatpush.msra.mxu0 0.0
    %694 = vmatpush.msra.mxu0 0.0
    %695 = vmatpush.msra.mxu0 0.0
    %696 = vmatpush.msra.mxu0 0.0
    %697 = vmatpush.msra.mxu0 0.0
    %698 = vmatpush.msra.mxu0 0.0
    %699 = vmatpush.msra.mxu0 0.0
    %700 = vmatpush.msra.mxu0 0.0
    %701 = vmatpush.msra.mxu0 0.0
    %702 = vmatpush.msra.mxu0 %v679
    %703 = vmatpush.msra.mxu0 %v677
    %704 = vmatmul.f32.gmra.mxu0 %v683
    %v705 = vpop.f32.mrf.mxu0
    %v706 = vadd.f32 0.0, %v705
    %707 = vmatmul.f32.gmra.mxu0 %v686
    %v708 = vpop.f32.mrf.mxu0
    %v709 = vadd.f32 0.0, %v708
    %710 = vdwg.mxu0
    %v711 = vld [vmem:[#allocation9 + $0x10] sm:$0xff]
    %v713 = vsel %vm352, %v706, 0
    %v716 = vsel %vm352, %v709, 0
    %718 = vmatpush.msra.mxu0 0.0
    %719 = vmatpush.msra.mxu0 0.0
    %720 = vmatpush.msra.mxu0 0.0
    %721 = vmatpush.msra.mxu0 0.0
    %722 = vmatpush.msra.mxu0 0.0
    %723 = vmatpush.msra.mxu0 0.0
    %724 = vmatpush.msra.mxu0 0.0
    %725 = vmatpush.msra.mxu0 0.0
    %726 = vmatpush.msra.mxu0 0.0
    %727 = vmatpush.msra.mxu0 0.0
    %728 = vmatpush.msra.mxu0 0.0
    %729 = vmatpush.msra.mxu0 0.0
    %730 = vmatpush.msra.mxu0 0.0
    %731 = vmatpush.msra.mxu0 0.0
    %732 = vmatpush.msra.mxu0 0.0
    %733 = vmatpush.msra.mxu0 %v711
    %734 = vmatmul.f32.gmra.mxu0 %v713
    %v735 = vpop.f32.mrf.mxu0
    %v736 = vadd.f32 0.0, %v735
    %737 = vmatmul.f32.gmra.mxu0 %v716
    %v738 = vpop.f32.mrf.mxu0
    %v739 = vadd.f32 0.0, %v738
    %740 = vdwg.mxu0
    %v741 = vadd.f32 %v609, %v736
    %v742 = vadd.f32 %v610, %v739
    %743 = vrot.lane.b32.xlu0 %v340, 104
    %v744 = vpop.permute.xlu0 %743
    %745 = vrot.lane.b32.xlu0 %v343, 104
    %v746 = vpop.permute.xlu0 %745
    %747 = vrot.lane.b32.xlu0 %v340, 72
    %v748 = vpop.permute.xlu0 %747
    %749 = vrot.lane.b32.xlu0 %v343, 72
    %v750 = vpop.permute.xlu0 %749
    %v751 = vsel %vm352, %v744, 0
    %v753 = vsel %vm352, %v746, 0
    %v755 = vsel %vm352, %v748, 0
    %v757 = vsel %vm352, %v750, 0
    %759 = vmatpush.xpose.msra.mxu0 0.0
    %760 = vmatpush.xpose.msra.mxu0 0.0
    %761 = vmatpush.xpose.msra.mxu0 0.0
    %762 = vmatpush.xpose.msra.mxu0 0.0
    %763 = vmatpush.xpose.msra.mxu0 0.0
    %764 = vmatpush.xpose.msra.mxu0 0.0
    %765 = vmatpush.xpose.msra.mxu0 0.0
    %766 = vmatpush.xpose.msra.mxu0 0.0
    %767 = vmatpush.xpose.msra.mxu0 0.0
    %768 = vmatpush.xpose.msra.mxu0 0.0
    %769 = vmatpush.xpose.msra.mxu0 0.0
    %770 = vmatpush.xpose.msra.mxu0 0.0
    %771 = vmatpush.xpose.msra.mxu0 0.0
    %772 = vmatpush.xpose.msra.mxu0 0.0
    %773 = vmatpush.xpose.msra.mxu0 %v757
    %774 = vmatpush.xpose.msra.mxu0 %v755
    %775 = vmatmul.f32.gmra.mxu0 %v751
    %v776 = vpop.f32.mrf.mxu0
    %v777 = vadd.f32 0.0, %v776
    %778 = vmatmul.f32.gmra.mxu0 %v753
    %v779 = vpop.f32.mrf.mxu0
    %v780 = vadd.f32 0.0, %v779
    %781 = vdwg.mxu0
    %v782 = vmul.f32 %v777, 0.35355338
    %v783 = vmul.f32 %v780, 0.35355338
    %v784 = vadd.f32 %v782, %v306
    %v785 = vadd.f32 %v783, %v307
    %v786 = vsel %vm388, %v784, -inf
    %787 = vmax.xlane.f32.xlu0 %v786
    %v788 = vpop.xlane.xlu0 %787
    %v789 = vsel %vm388, %v785, -inf
    %790 = vmax.xlane.f32.xlu0 %v789
    %v791 = vpop.xlane.xlu0 %790
    %v792 = vsub.f32 %v784, %v788
    %v793 = vsub.f32 %v785, %v791
    %v794 = vmul.f32 %v792, 1.442695
    %v795 = vpow.pop %v794
    %v796 = vmul.f32 %v793, 1.442695
    %v797 = vpow.pop %v796
    %v798 = vsel %vm388, %v795, 0.0
    %799 = vadd.xlane.f32.xlu0 %v798
    %v800 = vpop.xlane.xlu0 %799
    %v801 = vsel %vm388, %v797, 0.0
    %802 = vadd.xlane.f32.xlu0 %v801
    %v803 = vpop.xlane.xlu0 %802
    %v804 = vrcp.pop %v800
    %v805 = vrcp.pop %v803
    %v806 = vmul.f32 %v795, %v804
    %v807 = vmul.f32 %v797, %v805
    %808 = vrot.lane.b32.xlu0 %v340, 40
    %v809 = vpop.permute.xlu0 %808
    %810 = vrot.lane.b32.xlu0 %v343, 40
    %v811 = vpop.permute.xlu0 %810
    %v815 = vsel %vm388, %v806, 0
    %v818 = vsel %vm388, %v807, 0
    %820 = vmatpush.msra.mxu0 0.0
    %821 = vmatpush.msra.mxu0 0.0
    %822 = vmatpush.msra.mxu0 0.0
    %823 = vmatpush.msra.mxu0 0.0
    %824 = vmatpush.msra.mxu0 0.0
    %825 = vmatpush.msra.mxu0 0.0
    %826 = vmatpush.msra.mxu0 0.0
    %827 = vmatpush.msra.mxu0 0.0
    %828 = vmatpush.msra.mxu0 0.0
    %829 = vmatpush.msra.mxu0 0.0
    %830 = vmatpush.msra.mxu0 0.0
    %831 = vmatpush.msra.mxu0 0.0
    %832 = vmatpush.msra.mxu0 0.0
    %833 = vmatpush.msra.mxu0 0.0
    %834 = vmatpush.msra.mxu0 %v811
    %835 = vmatpush.msra.mxu0 %v809
    %836 = vmatmul.f32.gmra.mxu0 %v815
    %v837 = vpop.f32.mrf.mxu0
    %v838 = vadd.f32 0.0, %v837
    %839 = vmatmul.f32.gmra.mxu0 %v818
    %v840 = vpop.f32.mrf.mxu0
    %v841 = vadd.f32 0.0, %v840
    %842 = vdwg.mxu0
    %v843 = vld [vmem:[#allocation9 + $0x18] sm:$0xff]
    %v845 = vsel %vm352, %v838, 0
    %v848 = vsel %vm352, %v841, 0
    %850 = vmatpush.msra.mxu0 0.0
    %851 = vmatpush.msra.mxu0 0.0
    %852 = vmatpush.msra.mxu0 0.0
    %853 = vmatpush.msra.mxu0 0.0
    %854 = vmatpush.msra.mxu0 0.0
    %855 = vmatpush.msra.mxu0 0.0
    %856 = vmatpush.msra.mxu0 0.0
    %857 = vmatpush.msra.mxu0 0.0
    %858 = vmatpush.msra.mxu0 0.0
    %859 = vmatpush.msra.mxu0 0.0
    %860 = vmatpush.msra.mxu0 0.0
    %861 = vmatpush.msra.mxu0 0.0
    %862 = vmatpush.msra.mxu0 0.0
    %863 = vmatpush.msra.mxu0 0.0
    %864 = vmatpush.msra.mxu0 0.0
    %865 = vmatpush.msra.mxu0 %v843
    %866 = vmatmul.f32.gmra.mxu0 %v845
    %v867 = vpop.f32.mrf.mxu0
    %v868 = vadd.f32 0.0, %v867
    %869 = vmatmul.f32.gmra.mxu0 %v848
    %v870 = vpop.f32.mrf.mxu0
    %v871 = vadd.f32 0.0, %v870
    %872 = vdwg.mxu0
    %v873 = vadd.f32 %v741, %v868
    %v874 = vadd.f32 %v742, %v871
    %v875 = vadd.f32 %v239, %v873
    %v876 = vadd.f32 %v264, %v874
    %v877 = vld [vmem:[#allocation7 + $0x6] sm:$0x1]
    %v878 = vld [vmem:[#allocation7 + $0x7] sm:$0x1]
    %v879 = vsel %vm206, %v875, 0.0
    %880 = vadd.xlane.f32.xlu0 %v879
    %v881 = vpop.xlane.xlu0 %880
    %v882 = vsel %vm206, %v876, 0.0
    %883 = vadd.xlane.f32.xlu0 %v882
    %v884 = vpop.xlane.xlu0 %883
    %v885 = vmul.f32 %v881, %v216
    %v886 = vmul.f32 %v884, %v216
    %v887 = vsub.f32 %v875, %v885
    %v888 = vsub.f32 %v876, %v886
    %v889 = vmul.f32 %v887, %v887
    %v890 = vmul.f32 %v888, %v888
    %v891 = vsel %vm206, %v889, 0.0
    %892 = vadd.xlane.f32.xlu0 %v891
    %v893 = vpop.xlane.xlu0 %892
    %v894 = vsel %vm206, %v890, 0.0
    %895 = vadd.xlane.f32.xlu0 %v894
    %v896 = vpop.xlane.xlu0 %895
    %v897 = vmul.f32 %v893, %v216
    %v898 = vmul.f32 %v896, %v216
    %v899 = vadd.f32 %v897, 1e-05
    %v900 = vadd.f32 %v898, 1e-05
    %v901 = vrsqrt.pop %v899
    %v902 = vmul.f32 %v901, %v899
    %v903 = vmul.f32 %v902, %v901
    %v904 = vmul.f32 0.5, %v903
    %v905 = vsub.f32 1.5, %v904
    %v906 = vmul.f32 %v901, %v905
    %vm907 = vweird.f32 %v899
    %vm908 = vweird.f32 %v901
    %vm909 = vmor %vm907, %vm908
    %v910 = vsel %vm909, %v901, %v906
    %v911 = vrsqrt.pop %v900
    %v912 = vmul.f32 %v911, %v900
    %v913 = vmul.f32 %v912, %v911
    %v914 = vmul.f32 0.5, %v913
    %v915 = vsub.f32 1.5, %v914
    %v916 = vmul.f32 %v911, %v915
    %vm917 = vweird.f32 %v900
    %vm918 = vweird.f32 %v911
    %vm919 = vmor %vm917, %vm918
    %v920 = vsel %vm919, %v911, %v916
    %v921 = vmul.f32 %v887, %v910
    %v922 = vmul.f32 %v888, %v920
    %v923 = vperm.slane %v877, 0
    %v924 = vmul.f32 %v921, %v923
    %v925 = vmul.f32 %v922, %v923
    %v926 = vperm.slane %v878, 0
    %v927 = vadd.f32 %v924, %v926
    %v928 = vadd.f32 %v925, %v926
    %v929 = vpack.c.bf16 %v928, %v927
    %v930 = vld [vmem:[#allocation10] sm:$0xff]
    %v931 = vld [vmem:[#allocation10 + $0x8] sm:$0xff]
    %v932 = vld [vmem:[#allocation10 + $0x10] sm:$0xff]
    %v933 = vld [vmem:[#allocation10 + $0x18] sm:$0xff]
    %v934 = vld [vmem:[#allocation10 + $0x20] sm:$0xff]
    %v935 = vld [vmem:[#allocation10 + $0x28] sm:$0xff]
    %v936 = vld [vmem:[#allocation10 + $0x30] sm:$0xff]
    %v937 = vld [vmem:[#allocation10 + $0x38] sm:$0xff]
    %v938 = vld [vmem:[#allocation10 + $0x40] sm:$0xff]
    %v939 = vld [vmem:[#allocation10 + $0x48] sm:$0xff]
    %v940 = vld [vmem:[#allocation10 + $0x50] sm:$0xff]
    %v941 = vld [vmem:[#allocation10 + $0x58] sm:$0xff]
    %v942 = vld [vmem:[#allocation10 + $0x60] sm:$0xff]
    %v943 = vld [vmem:[#allocation10 + $0x68] sm:$0xff]
    %v944 = vld [vmem:[#allocation10 + $0x70] sm:$0xff]
    %v945 = vld [vmem:[#allocation10 + $0x78] sm:$0xff]
    %v946 = vld [vmem:[#allocation10 + $0x80] sm:$0xff]
    %v947 = vld [vmem:[#allocation10 + $0x88] sm:$0xff]
    %v948 = vld [vmem:[#allocation10 + $0x90] sm:$0xff]
    %v949 = vld [vmem:[#allocation10 + $0x98] sm:$0xff]
    %v950 = vld [vmem:[#allocation10 + $0xa0] sm:$0xff]
    %v951 = vld [vmem:[#allocation10 + $0xa8] sm:$0xff]
    %v952 = vld [vmem:[#allocation10 + $0xb0] sm:$0xff]
    %v953 = vld [vmem:[#allocation10 + $0xb8] sm:$0xff]
    %v954 = vld [vmem:[#allocation10 + $0xc0] sm:$0xff]
    %v955 = vld [vmem:[#allocation10 + $0xc8] sm:$0xff]
    %v956 = vld [vmem:[#allocation10 + $0xd0] sm:$0xff]
    %v957 = vld [vmem:[#allocation10 + $0xd8] sm:$0xff]
    %v958 = vld [vmem:[#allocation10 + $0xe0] sm:$0xff]
    %v959 = vld [vmem:[#allocation10 + $0xe8] sm:$0xff]
    %v960 = vld [vmem:[#allocation10 + $0xf0] sm:$0xff]
    %v961 = vld [vmem:[#allocation10 + $0xf8] sm:$0xff]
    %v962 = vld [vmem:[%s10] ss:$2 sm:$0xff]
    %s963 = scalar_lea.vmem %s10, 16
    %v964 = vld [vmem:[%s963] ss:$2 sm:$0xff]
    %v967 = vperm.slane %v962, 0
    %v968 = vperm.slane %v962, 1
    %v969 = vperm.slane %v962, 2
    %v970 = vperm.slane %v962, 3
    %v971 = vperm.slane %v962, 4
    %v972 = vperm.slane %v962, 5
    %v973 = vperm.slane %v962, 6
    %v974 = vperm.slane %v962, 7
    %v975 = vperm.slane %v964, 0
    %v976 = vperm.slane %v964, 1
    %v977 = vperm.slane %v964, 2
    %v978 = vperm.slane %v964, 3
    %v979 = vperm.slane %v964, 4
    %v980 = vperm.slane %v964, 5
    %v981 = vperm.slane %v964, 6
    %v982 = vperm.slane %v964, 7
    %v1031 = vunpack.c.l.b16 %v930
    %v1032 = vunpack.c.h.b16 %v930
    %v1033 = vunpack.c.l.b16 %v931
    %v1034 = vunpack.c.h.b16 %v931
    %v1035 = vunpack.c.l.b16 %v932
    %v1036 = vunpack.c.h.b16 %v932
    %v1037 = vunpack.c.l.b16 %v933
    %v1038 = vunpack.c.h.b16 %v933
    %v1039 = vunpack.c.l.b16 %v934
    %v1040 = vunpack.c.h.b16 %v934
    %v1041 = vunpack.c.l.b16 %v935
    %v1042 = vunpack.c.h.b16 %v935
    %v1043 = vunpack.c.l.b16 %v936
    %v1044 = vunpack.c.h.b16 %v936
    %v1045 = vunpack.c.l.b16 %v937
    %v1046 = vunpack.c.h.b16 %v937
    %v1047 = vunpack.c.l.b16 %v938
    %v1048 = vunpack.c.h.b16 %v938
    %v1049 = vunpack.c.l.b16 %v939
    %v1050 = vunpack.c.h.b16 %v939
    %v1051 = vunpack.c.l.b16 %v940
    %v1052 = vunpack.c.h.b16 %v940
    %v1053 = vunpack.c.l.b16 %v941
    %v1054 = vunpack.c.h.b16 %v941
    %v1055 = vunpack.c.l.b16 %v942
    %v1056 = vunpack.c.h.b16 %v942
    %v1057 = vunpack.c.l.b16 %v943
    %v1058 = vunpack.c.h.b16 %v943
    %v1059 = vunpack.c.l.b16 %v944
    %v1060 = vunpack.c.h.b16 %v944
    %v1061 = vunpack.c.l.b16 %v945
    %v1062 = vunpack.c.h.b16 %v945
    %v1063 = vunpack.c.l.b16 %v946
    %v1064 = vunpack.c.h.b16 %v946
    %v1065 = vunpack.c.l.b16 %v947
    %v1066 = vunpack.c.h.b16 %v947
    %v1067 = vunpack.c.l.b16 %v948
    %v1068 = vunpack.c.h.b16 %v948
    %v1069 = vunpack.c.l.b16 %v949
    %v1070 = vunpack.c.h.b16 %v949
    %v1071 = vunpack.c.l.b16 %v950
    %v1072 = vunpack.c.h.b16 %v950
    %v1073 = vunpack.c.l.b16 %v951
    %v1074 = vunpack.c.h.b16 %v951
    %v1075 = vunpack.c.l.b16 %v952
    %v1076 = vunpack.c.h.b16 %v952
    %v1077 = vunpack.c.l.b16 %v953
    %v1078 = vunpack.c.h.b16 %v953
    %v1079 = vunpack.c.l.b16 %v954
    %v1080 = vunpack.c.h.b16 %v954
    %v1081 = vunpack.c.l.b16 %v955
    %v1082 = vunpack.c.h.b16 %v955
    %v1083 = vunpack.c.l.b16 %v956
    %v1084 = vunpack.c.h.b16 %v956
    %v1085 = vunpack.c.l.b16 %v957
    %v1086 = vunpack.c.h.b16 %v957
    %v1087 = vunpack.c.l.b16 %v958
    %v1088 = vunpack.c.h.b16 %v958
    %v1089 = vunpack.c.l.b16 %v959
    %v1090 = vunpack.c.h.b16 %v959
    %v1091 = vunpack.c.l.b16 %v960
    %v1092 = vunpack.c.h.b16 %v960
    %v1093 = vunpack.c.l.b16 %v961
    %v1094 = vunpack.c.h.b16 %v961
    %v1095 = vpack.c.b16 %v1047, %v1031
    %v1096 = vpack.c.b16 %v1048, %v1032
    %v1097 = vpack.c.b16 %v1049, %v1033
    %v1098 = vpack.c.b16 %v1050, %v1034
    %v1099 = vpack.c.b16 %v1051, %v1035
    %v1100 = vpack.c.b16 %v1052, %v1036
    %v1101 = vpack.c.b16 %v1053, %v1037
    %v1102 = vpack.c.b16 %v1054, %v1038
    %v1103 = vpack.c.b16 %v1055, %v1039
    %v1104 = vpack.c.b16 %v1056, %v1040
    %v1105 = vpack.c.b16 %v1057, %v1041
    %v1106 = vpack.c.b16 %v1058, %v1042
    %v1107 = vpack.c.b16 %v1059, %v1043
    %v1108 = vpack.c.b16 %v1060, %v1044
    %v1109 = vpack.c.b16 %v1061, %v1045
    %v1110 = vpack.c.b16 %v1062, %v1046
    %v1111 = vpack.c.b16 %v1079, %v1063
    %v1112 = vpack.c.b16 %v1080, %v1064
    %v1113 = vpack.c.b16 %v1081, %v1065
    %v1114 = vpack.c.b16 %v1082, %v1066
    %v1115 = vpack.c.b16 %v1083, %v1067
    %v1116 = vpack.c.b16 %v1084, %v1068
    %v1117 = vpack.c.b16 %v1085, %v1069
    %v1118 = vpack.c.b16 %v1086, %v1070
    %v1119 = vpack.c.b16 %v1087, %v1071
    %v1120 = vpack.c.b16 %v1088, %v1072
    %v1121 = vpack.c.b16 %v1089, %v1073
    %v1122 = vpack.c.b16 %v1090, %v1074
    %v1123 = vpack.c.b16 %v1091, %v1075
    %v1124 = vpack.c.b16 %v1092, %v1076
    %v1125 = vpack.c.b16 %v1093, %v1077
    %v1126 = vpack.c.b16 %v1094, %v1078
    %v1160 = vsel %vm206, %v929, 0
    %1162 = vmatpush.bf16.msra.mxu0 0
    %1163 = vmatpush.bf16.msra.mxu0 0
    %1164 = vmatpush.bf16.msra.mxu0 0
    %1165 = vmatpush.bf16.msra.mxu0 0
    %1166 = vmatpush.bf16.msra.mxu0 0
    %1167 = vmatpush.bf16.msra.mxu0 0
    %1168 = vmatpush.bf16.msra.mxu0 %v1111
    %1169 = vmatpush.bf16.msra.mxu0 %v1095
    %1170 = vmatmul.bf16.gmra.mxu0 %v1160
    %v1171 = vpop.f32.mrf.mxu0
    %v1172 = vadd.f32 %v967, %v1171
    %v1173 = vpop.f32.mrf.mxu0
    %v1174 = vadd.f32 %v967, %v1173
    %1175 = vdwg.mxu0
    %1176 = vmatpush.bf16.msra.mxu0 0
    %1177 = vmatpush.bf16.msra.mxu0 0
    %1178 = vmatpush.bf16.msra.mxu0 0
    %1179 = vmatpush.bf16.msra.mxu0 0
    %1180 = vmatpush.bf16.msra.mxu0 0
    %1181 = vmatpush.bf16.msra.mxu0 0
    %1182 = vmatpush.bf16.msra.mxu0 %v1112
    %1183 = vmatpush.bf16.msra.mxu0 %v1096
    %1184 = vmatmul.bf16.gmra.mxu0 %v1160
    %v1185 = vpop.f32.mrf.mxu0
    %v1186 = vadd.f32 %v968, %v1185
    %v1187 = vpop.f32.mrf.mxu0
    %v1188 = vadd.f32 %v968, %v1187
    %1189 = vdwg.mxu0
    %1190 = vmatpush.bf16.msra.mxu0 0
    %1191 = vmatpush.bf16.msra.mxu0 0
    %1192 = vmatpush.bf16.msra.mxu0 0
    %1193 = vmatpush.bf16.msra.mxu0 0
    %1194 = vmatpush.bf16.msra.mxu0 0
    %1195 = vmatpush.bf16.msra.mxu0 0
    %1196 = vmatpush.bf16.msra.mxu0 %v1113
    %1197 = vmatpush.bf16.msra.mxu0 %v1097
    %1198 = vmatmul.bf16.gmra.mxu0 %v1160
    %v1199 = vpop.f32.mrf.mxu0
    %v1200 = vadd.f32 %v969, %v1199
    %v1201 = vpop.f32.mrf.mxu0
    %v1202 = vadd.f32 %v969, %v1201
    %1203 = vdwg.mxu0
    %1204 = vmatpush.bf16.msra.mxu0 0
    %1205 = vmatpush.bf16.msra.mxu0 0
    %1206 = vmatpush.bf16.msra.mxu0 0
    %1207 = vmatpush.bf16.msra.mxu0 0
    %1208 = vmatpush.bf16.msra.mxu0 0
    %1209 = vmatpush.bf16.msra.mxu0 0
    %1210 = vmatpush.bf16.msra.mxu0 %v1114
    %1211 = vmatpush.bf16.msra.mxu0 %v1098
    %1212 = vmatmul.bf16.gmra.mxu0 %v1160
    %v1213 = vpop.f32.mrf.mxu0
    %v1214 = vadd.f32 %v970, %v1213
    %v1215 = vpop.f32.mrf.mxu0
    %v1216 = vadd.f32 %v970, %v1215
    %1217 = vdwg.mxu0
    %1218 = vmatpush.bf16.msra.mxu0 0
    %1219 = vmatpush.bf16.msra.mxu0 0
    %1220 = vmatpush.bf16.msra.mxu0 0
    %1221 = vmatpush.bf16.msra.mxu0 0
    %1222 = vmatpush.bf16.msra.mxu0 0
    %1223 = vmatpush.bf16.msra.mxu0 0
    %1224 = vmatpush.bf16.msra.mxu0 %v1115
    %1225 = vmatpush.bf16.msra.mxu0 %v1099
    %1226 = vmatmul.bf16.gmra.mxu0 %v1160
    %v1227 = vpop.f32.mrf.mxu0
    %v1228 = vadd.f32 %v971, %v1227
    %v1229 = vpop.f32.mrf.mxu0
    %v1230 = vadd.f32 %v971, %v1229
    %1231 = vdwg.mxu0
    %1232 = vmatpush.bf16.msra.mxu0 0
    %1233 = vmatpush.bf16.msra.mxu0 0
    %1234 = vmatpush.bf16.msra.mxu0 0
    %1235 = vmatpush.bf16.msra.mxu0 0
    %1236 = vmatpush.bf16.msra.mxu0 0
    %1237 = vmatpush.bf16.msra.mxu0 0
    %1238 = vmatpush.bf16.msra.mxu0 %v1116
    %1239 = vmatpush.bf16.msra.mxu0 %v1100
    %1240 = vmatmul.bf16.gmra.mxu0 %v1160
    %v1241 = vpop.f32.mrf.mxu0
    %v1242 = vadd.f32 %v972, %v1241
    %v1243 = vpop.f32.mrf.mxu0
    %v1244 = vadd.f32 %v972, %v1243
    %1245 = vdwg.mxu0
    %1246 = vmatpush.bf16.msra.mxu0 0
    %1247 = vmatpush.bf16.msra.mxu0 0
    %1248 = vmatpush.bf16.msra.mxu0 0
    %1249 = vmatpush.bf16.msra.mxu0 0
    %1250 = vmatpush.bf16.msra.mxu0 0
    %1251 = vmatpush.bf16.msra.mxu0 0
    %1252 = vmatpush.bf16.msra.mxu0 %v1117
    %1253 = vmatpush.bf16.msra.mxu0 %v1101
    %1254 = vmatmul.bf16.gmra.mxu0 %v1160
    %v1255 = vpop.f32.mrf.mxu0
    %v1256 = vadd.f32 %v973, %v1255
    %v1257 = vpop.f32.mrf.mxu0
    %v1258 = vadd.f32 %v973, %v1257
    %1259 = vdwg.mxu0
    %1260 = vmatpush.bf16.msra.mxu0 0
    %1261 = vmatpush.bf16.msra.mxu0 0
    %1262 = vmatpush.bf16.msra.mxu0 0
    %1263 = vmatpush.bf16.msra.mxu0 0
    %1264 = vmatpush.bf16.msra.mxu0 0
    %1265 = vmatpush.bf16.msra.mxu0 0
    %1266 = vmatpush.bf16.msra.mxu0 %v1118
    %1267 = vmatpush.bf16.msra.mxu0 %v1102
    %1268 = vmatmul.bf16.gmra.mxu0 %v1160
    %v1269 = vpop.f32.mrf.mxu0
    %v1270 = vadd.f32 %v974, %v1269
    %v1271 = vpop.f32.mrf.mxu0
    %v1272 = vadd.f32 %v974, %v1271
    %1273 = vdwg.mxu0
    %1274 = vmatpush.bf16.msra.mxu0 0
    %1275 = vmatpush.bf16.msra.mxu0 0
    %1276 = vmatpush.bf16.msra.mxu0 0
    %1277 = vmatpush.bf16.msra.mxu0 0
    %1278 = vmatpush.bf16.msra.mxu0 0
    %1279 = vmatpush.bf16.msra.mxu0 0
    %1280 = vmatpush.bf16.msra.mxu0 %v1119
    %1281 = vmatpush.bf16.msra.mxu0 %v1103
    %1282 = vmatmul.bf16.gmra.mxu0 %v1160
    %v1283 = vpop.f32.mrf.mxu0
    %v1284 = vadd.f32 %v975, %v1283
    %v1285 = vpop.f32.mrf.mxu0
    %v1286 = vadd.f32 %v975, %v1285
    %1287 = vdwg.mxu0
    %1288 = vmatpush.bf16.msra.mxu0 0
    %1289 = vmatpush.bf16.msra.mxu0 0
    %1290 = vmatpush.bf16.msra.mxu0 0
    %1291 = vmatpush.bf16.msra.mxu0 0
    %1292 = vmatpush.bf16.msra.mxu0 0
    %1293 = vmatpush.bf16.msra.mxu0 0
    %1294 = vmatpush.bf16.msra.mxu0 %v1120
    %1295 = vmatpush.bf16.msra.mxu0 %v1104
    %1296 = vmatmul.bf16.gmra.mxu0 %v1160
    %v1297 = vpop.f32.mrf.mxu0
    %v1298 = vadd.f32 %v976, %v1297
    %v1299 = vpop.f32.mrf.mxu0
    %v1300 = vadd.f32 %v976, %v1299
    %1301 = vdwg.mxu0
    %1302 = vmatpush.bf16.msra.mxu0 0
    %1303 = vmatpush.bf16.msra.mxu0 0
    %1304 = vmatpush.bf16.msra.mxu0 0
    %1305 = vmatpush.bf16.msra.mxu0 0
    %1306 = vmatpush.bf16.msra.mxu0 0
    %1307 = vmatpush.bf16.msra.mxu0 0
    %1308 = vmatpush.bf16.msra.mxu0 %v1121
    %1309 = vmatpush.bf16.msra.mxu0 %v1105
    %1310 = vmatmul.bf16.gmra.mxu0 %v1160
    %v1311 = vpop.f32.mrf.mxu0
    %v1312 = vadd.f32 %v977, %v1311
    %v1313 = vpop.f32.mrf.mxu0
    %v1314 = vadd.f32 %v977, %v1313
    %1315 = vdwg.mxu0
    %1316 = vmatpush.bf16.msra.mxu0 0
    %1317 = vmatpush.bf16.msra.mxu0 0
    %1318 = vmatpush.bf16.msra.mxu0 0
    %1319 = vmatpush.bf16.msra.mxu0 0
    %1320 = vmatpush.bf16.msra.mxu0 0
    %1321 = vmatpush.bf16.msra.mxu0 0
    %1322 = vmatpush.bf16.msra.mxu0 %v1122
    %1323 = vmatpush.bf16.msra.mxu0 %v1106
    %1324 = vmatmul.bf16.gmra.mxu0 %v1160
    %v1325 = vpop.f32.mrf.mxu0
    %v1326 = vadd.f32 %v978, %v1325
    %v1327 = vpop.f32.mrf.mxu0
    %v1328 = vadd.f32 %v978, %v1327
    %1329 = vdwg.mxu0
    %1330 = vmatpush.bf16.msra.mxu0 0
    %1331 = vmatpush.bf16.msra.mxu0 0
    %1332 = vmatpush.bf16.msra.mxu0 0
    %1333 = vmatpush.bf16.msra.mxu0 0
    %1334 = vmatpush.bf16.msra.mxu0 0
    %1335 = vmatpush.bf16.msra.mxu0 0
    %1336 = vmatpush.bf16.msra.mxu0 %v1123
    %1337 = vmatpush.bf16.msra.mxu0 %v1107
    %1338 = vmatmul.bf16.gmra.mxu0 %v1160
    %v1339 = vpop.f32.mrf.mxu0
    %v1340 = vadd.f32 %v979, %v1339
    %v1341 = vpop.f32.mrf.mxu0
    %v1342 = vadd.f32 %v979, %v1341
    %1343 = vdwg.mxu0
    %1344 = vmatpush.bf16.msra.mxu0 0
    %1345 = vmatpush.bf16.msra.mxu0 0
    %1346 = vmatpush.bf16.msra.mxu0 0
    %1347 = vmatpush.bf16.msra.mxu0 0
    %1348 = vmatpush.bf16.msra.mxu0 0
    %1349 = vmatpush.bf16.msra.mxu0 0
    %1350 = vmatpush.bf16.msra.mxu0 %v1124
    %1351 = vmatpush.bf16.msra.mxu0 %v1108
    %1352 = vmatmul.bf16.gmra.mxu0 %v1160
    %v1353 = vpop.f32.mrf.mxu0
    %v1354 = vadd.f32 %v980, %v1353
    %v1355 = vpop.f32.mrf.mxu0
    %v1356 = vadd.f32 %v980, %v1355
    %1357 = vdwg.mxu0
    %1358 = vmatpush.bf16.msra.mxu0 0
    %1359 = vmatpush.bf16.msra.mxu0 0
    %1360 = vmatpush.bf16.msra.mxu0 0
    %1361 = vmatpush.bf16.msra.mxu0 0
    %1362 = vmatpush.bf16.msra.mxu0 0
    %1363 = vmatpush.bf16.msra.mxu0 0
    %1364 = vmatpush.bf16.msra.mxu0 %v1125
    %1365 = vmatpush.bf16.msra.mxu0 %v1109
    %1366 = vmatmul.bf16.gmra.mxu0 %v1160
    %v1367 = vpop.f32.mrf.mxu0
    %v1368 = vadd.f32 %v981, %v1367
    %v1369 = vpop.f32.mrf.mxu0
    %v1370 = vadd.f32 %v981, %v1369
    %1371 = vdwg.mxu0
    %1372 = vmatpush.bf16.msra.mxu0 0
    %1373 = vmatpush.bf16.msra.mxu0 0
    %1374 = vmatpush.bf16.msra.mxu0 0
    %1375 = vmatpush.bf16.msra.mxu0 0
    %1376 = vmatpush.bf16.msra.mxu0 0
    %1377 = vmatpush.bf16.msra.mxu0 0
    %1378 = vmatpush.bf16.msra.mxu0 %v1126
    %1379 = vmatpush.bf16.msra.mxu0 %v1110
    %1380 = vmatmul.bf16.gmra.mxu0 %v1160
    %v1381 = vpop.f32.mrf.mxu0
    %v1382 = vadd.f32 %v982, %v1381
    %v1383 = vpop.f32.mrf.mxu0
    %v1384 = vadd.f32 %v982, %v1383
    %1385 = vdwg.mxu0
    %v1386 = vmax.f32 %v1172, 0.0
    %v1387 = vmax.f32 %v1186, 0.0
    %v1388 = vmax.f32 %v1200, 0.0
    %v1389 = vmax.f32 %v1214, 0.0
    %v1390 = vmax.f32 %v1228, 0.0
    %v1391 = vmax.f32 %v1242, 0.0
    %v1392 = vmax.f32 %v1256, 0.0
    %v1393 = vmax.f32 %v1270, 0.0
    %v1394 = vmax.f32 %v1284, 0.0
    %v1395 = vmax.f32 %v1298, 0.0
    %v1396 = vmax.f32 %v1312, 0.0
    %v1397 = vmax.f32 %v1326, 0.0
    %v1398 = vmax.f32 %v1340, 0.0
    %v1399 = vmax.f32 %v1354, 0.0
    %v1400 = vmax.f32 %v1368, 0.0
    %v1401 = vmax.f32 %v1382, 0.0
    %v1402 = vmax.f32 %v1174, 0.0
    %v1403 = vmax.f32 %v1188, 0.0
    %v1404 = vmax.f32 %v1202, 0.0
    %v1405 = vmax.f32 %v1216, 0.0
    %v1406 = vmax.f32 %v1230, 0.0
    %v1407 = vmax.f32 %v1244, 0.0
    %v1408 = vmax.f32 %v1258, 0.0
    %v1409 = vmax.f32 %v1272, 0.0
    %v1410 = vmax.f32 %v1286, 0.0
    %v1411 = vmax.f32 %v1300, 0.0
    %v1412 = vmax.f32 %v1314, 0.0
    %v1413 = vmax.f32 %v1328, 0.0
    %v1414 = vmax.f32 %v1342, 0.0
    %v1415 = vmax.f32 %v1356, 0.0
    %v1416 = vmax.f32 %v1370, 0.0
    %v1417 = vmax.f32 %v1384, 0.0
    %v1418 = vpack.c.bf16 %v1402, %v1386
    %v1419 = vpack.c.bf16 %v1403, %v1387
    %v1420 = vpack.c.bf16 %v1404, %v1388
    %v1421 = vpack.c.bf16 %v1405, %v1389
    %v1422 = vpack.c.bf16 %v1406, %v1390
    %v1423 = vpack.c.bf16 %v1407, %v1391
    %v1424 = vpack.c.bf16 %v1408, %v1392
    %v1425 = vpack.c.bf16 %v1409, %v1393
    %v1426 = vpack.c.bf16 %v1410, %v1394
    %v1427 = vpack.c.bf16 %v1411, %v1395
    %v1428 = vpack.c.bf16 %v1412, %v1396
    %v1429 = vpack.c.bf16 %v1413, %v1397
    %v1430 = vpack.c.bf16 %v1414, %v1398
    %v1431 = vpack.c.bf16 %v1415, %v1399
    %v1432 = vpack.c.bf16 %v1416, %v1400
    %v1433 = vpack.c.bf16 %v1417, %v1401
    %v1434 = vld [vmem:[#allocation12] sm:$0xff]
    %v1435 = vld [vmem:[#allocation12 + $0x8] sm:$0xff]
    %v1436 = vld [vmem:[#allocation12 + $0x10] sm:$0xff]
    %v1437 = vld [vmem:[#allocation12 + $0x18] sm:$0xff]
    %v1438 = vld [vmem:[#allocation12 + $0x20] sm:$0xff]
    %v1439 = vld [vmem:[#allocation12 + $0x28] sm:$0xff]
    %v1440 = vld [vmem:[#allocation12 + $0x30] sm:$0xff]
    %v1441 = vld [vmem:[#allocation12 + $0x38] sm:$0xff]
    %v1442 = vld [vmem:[#allocation12 + $0x40] sm:$0xff]
    %v1443 = vld [vmem:[#allocation12 + $0x48] sm:$0xff]
    %v1444 = vld [vmem:[#allocation12 + $0x50] sm:$0xff]
    %v1445 = vld [vmem:[#allocation12 + $0x58] sm:$0xff]
    %v1446 = vld [vmem:[#allocation12 + $0x60] sm:$0xff]
    %v1447 = vld [vmem:[#allocation12 + $0x68] sm:$0xff]
    %v1448 = vld [vmem:[#allocation12 + $0x70] sm:$0xff]
    %v1449 = vld [vmem:[#allocation12 + $0x78] sm:$0xff]
    %v1450 = vld [vmem:[#allocation12 + $0x80] sm:$0xff]
    %v1451 = vld [vmem:[#allocation12 + $0x88] sm:$0xff]
    %v1452 = vld [vmem:[#allocation12 + $0x90] sm:$0xff]
    %v1453 = vld [vmem:[#allocation12 + $0x98] sm:$0xff]
    %v1454 = vld [vmem:[#allocation12 + $0xa0] sm:$0xff]
    %v1455 = vld [vmem:[#allocation12 + $0xa8] sm:$0xff]
    %v1456 = vld [vmem:[#allocation12 + $0xb0] sm:$0xff]
    %v1457 = vld [vmem:[#allocation12 + $0xb8] sm:$0xff]
    %v1458 = vld [vmem:[#allocation12 + $0xc0] sm:$0xff]
    %v1459 = vld [vmem:[#allocation12 + $0xc8] sm:$0xff]
    %v1460 = vld [vmem:[#allocation12 + $0xd0] sm:$0xff]
    %v1461 = vld [vmem:[#allocation12 + $0xd8] sm:$0xff]
    %v1462 = vld [vmem:[#allocation12 + $0xe0] sm:$0xff]
    %v1463 = vld [vmem:[#allocation12 + $0xe8] sm:$0xff]
    %v1464 = vld [vmem:[#allocation12 + $0xf0] sm:$0xff]
    %v1465 = vld [vmem:[#allocation12 + $0xf8] sm:$0xff]
    %v1466 = vld [vmem:[#allocation7 + $0x8] sm:$0x1]
    %v1467 = vperm.slane %v1466, 0
    %v1500 = vunpack.c.l.b16 %v1434
    %v1501 = vunpack.c.h.b16 %v1434
    %v1502 = vunpack.c.l.b16 %v1435
    %v1503 = vunpack.c.h.b16 %v1435
    %v1504 = vunpack.c.l.b16 %v1436
    %v1505 = vunpack.c.h.b16 %v1436
    %v1506 = vunpack.c.l.b16 %v1437
    %v1507 = vunpack.c.h.b16 %v1437
    %v1508 = vunpack.c.l.b16 %v1438
    %v1509 = vunpack.c.h.b16 %v1438
    %v1510 = vunpack.c.l.b16 %v1439
    %v1511 = vunpack.c.h.b16 %v1439
    %v1512 = vunpack.c.l.b16 %v1440
    %v1513 = vunpack.c.h.b16 %v1440
    %v1514 = vunpack.c.l.b16 %v1441
    %v1515 = vunpack.c.h.b16 %v1441
    %v1516 = vunpack.c.l.b16 %v1442
    %v1517 = vunpack.c.h.b16 %v1442
    %v1518 = vunpack.c.l.b16 %v1443
    %v1519 = vunpack.c.h.b16 %v1443
    %v1520 = vunpack.c.l.b16 %v1444
    %v1521 = vunpack.c.h.b16 %v1444
    %v1522 = vunpack.c.l.b16 %v1445
    %v1523 = vunpack.c.h.b16 %v1445
    %v1524 = vunpack.c.l.b16 %v1446
    %v1525 = vunpack.c.h.b16 %v1446
    %v1526 = vunpack.c.l.b16 %v1447
    %v1527 = vunpack.c.h.b16 %v1447
    %v1528 = vunpack.c.l.b16 %v1448
    %v1529 = vunpack.c.h.b16 %v1448
    %v1530 = vunpack.c.l.b16 %v1449
    %v1531 = vunpack.c.h.b16 %v1449
    %v1532 = vunpack.c.l.b16 %v1450
    %v1533 = vunpack.c.h.b16 %v1450
    %v1534 = vunpack.c.l.b16 %v1451
    %v1535 = vunpack.c.h.b16 %v1451
    %v1536 = vunpack.c.l.b16 %v1452
    %v1537 = vunpack.c.h.b16 %v1452
    %v1538 = vunpack.c.l.b16 %v1453
    %v1539 = vunpack.c.h.b16 %v1453
    %v1540 = vunpack.c.l.b16 %v1454
    %v1541 = vunpack.c.h.b16 %v1454
    %v1542 = vunpack.c.l.b16 %v1455
    %v1543 = vunpack.c.h.b16 %v1455
    %v1544 = vunpack.c.l.b16 %v1456
    %v1545 = vunpack.c.h.b16 %v1456
    %v1546 = vunpack.c.l.b16 %v1457
    %v1547 = vunpack.c.h.b16 %v1457
    %v1548 = vunpack.c.l.b16 %v1458
    %v1549 = vunpack.c.h.b16 %v1458
    %v1550 = vunpack.c.l.b16 %v1459
    %v1551 = vunpack.c.h.b16 %v1459
    %v1552 = vunpack.c.l.b16 %v1460
    %v1553 = vunpack.c.h.b16 %v1460
    %v1554 = vunpack.c.l.b16 %v1461
    %v1555 = vunpack.c.h.b16 %v1461
    %v1556 = vunpack.c.l.b16 %v1462
    %v1557 = vunpack.c.h.b16 %v1462
    %v1558 = vunpack.c.l.b16 %v1463
    %v1559 = vunpack.c.h.b16 %v1463
    %v1560 = vunpack.c.l.b16 %v1464
    %v1561 = vunpack.c.h.b16 %v1464
    %v1562 = vunpack.c.l.b16 %v1465
    %v1563 = vunpack.c.h.b16 %v1465
    %v1564 = vpack.c.b16 %v1516, %v1500
    %v1565 = vpack.c.b16 %v1517, %v1501
    %v1566 = vpack.c.b16 %v1518, %v1502
    %v1567 = vpack.c.b16 %v1519, %v1503
    %v1568 = vpack.c.b16 %v1520, %v1504
    %v1569 = vpack.c.b16 %v1521, %v1505
    %v1570 = vpack.c.b16 %v1522, %v1506
    %v1571 = vpack.c.b16 %v1523, %v1507
    %v1572 = vpack.c.b16 %v1524, %v1508
    %v1573 = vpack.c.b16 %v1525, %v1509
    %v1574 = vpack.c.b16 %v1526, %v1510
    %v1575 = vpack.c.b16 %v1527, %v1511
    %v1576 = vpack.c.b16 %v1528, %v1512
    %v1577 = vpack.c.b16 %v1529, %v1513
    %v1578 = vpack.c.b16 %v1530, %v1514
    %v1579 = vpack.c.b16 %v1531, %v1515
    %v1580 = vpack.c.b16 %v1548, %v1532
    %v1581 = vpack.c.b16 %v1549, %v1533
    %v1582 = vpack.c.b16 %v1550, %v1534
    %v1583 = vpack.c.b16 %v1551, %v1535
    %v1584 = vpack.c.b16 %v1552, %v1536
    %v1585 = vpack.c.b16 %v1553, %v1537
    %v1586 = vpack.c.b16 %v1554, %v1538
    %v1587 = vpack.c.b16 %v1555, %v1539
    %v1588 = vpack.c.b16 %v1556, %v1540
    %v1589 = vpack.c.b16 %v1557, %v1541
    %v1590 = vpack.c.b16 %v1558, %v1542
    %v1591 = vpack.c.b16 %v1559, %v1543
    %v1592 = vpack.c.b16 %v1560, %v1544
    %v1593 = vpack.c.b16 %v1561, %v1545
    %v1594 = vpack.c.b16 %v1562, %v1546
    %v1595 = vpack.c.b16 %v1563, %v1547
    %1628 = vmatpush.bf16.xpose.msra.mxu0 0
    %1629 = vmatpush.bf16.xpose.msra.mxu0 0
    %1630 = vmatpush.bf16.xpose.msra.mxu0 0
    %1631 = vmatpush.bf16.xpose.msra.mxu0 0
    %1632 = vmatpush.bf16.xpose.msra.mxu0 0
    %1633 = vmatpush.bf16.xpose.msra.mxu0 0
    %1634 = vmatpush.bf16.xpose.msra.mxu0 %v1580
    %1635 = vmatpush.bf16.xpose.msra.mxu0 %v1564
    %1636 = vmatmul.bf16.gmra.mxu0 %v1418
    %v1637 = vpop.f32.mrf.mxu0
    %v1638 = vadd.f32 %v1467, %v1637
    %v1639 = vpop.f32.mrf.mxu0
    %v1640 = vadd.f32 %v1467, %v1639
    %1641 = vdwg.mxu0
    %1642 = vmatpush.bf16.xpose.msra.mxu0 0
    %1643 = vmatpush.bf16.xpose.msra.mxu0 0
    %1644 = vmatpush.bf16.xpose.msra.mxu0 0
    %1645 = vmatpush.bf16.xpose.msra.mxu0 0
    %1646 = vmatpush.bf16.xpose.msra.mxu0 0
    %1647 = vmatpush.bf16.xpose.msra.mxu0 0
    %1648 = vmatpush.bf16.xpose.msra.mxu0 %v1581
    %1649 = vmatpush.bf16.xpose.msra.mxu0 %v1565
    %1650 = vmatmul.bf16.gmra.mxu0 %v1419
    %v1651 = vpop.f32.mrf.mxu0
    %v1652 = vadd.f32 %v1638, %v1651
    %v1653 = vpop.f32.mrf.mxu0
    %v1654 = vadd.f32 %v1640, %v1653
    %1655 = vdwg.mxu0
    %1656 = vmatpush.bf16.xpose.msra.mxu0 0
    %1657 = vmatpush.bf16.xpose.msra.mxu0 0
    %1658 = vmatpush.bf16.xpose.msra.mxu0 0
    %1659 = vmatpush.bf16.xpose.msra.mxu0 0
    %1660 = vmatpush.bf16.xpose.msra.mxu0 0
    %1661 = vmatpush.bf16.xpose.msra.mxu0 0
    %1662 = vmatpush.bf16.xpose.msra.mxu0 %v1582
    %1663 = vmatpush.bf16.xpose.msra.mxu0 %v1566
    %1664 = vmatmul.bf16.gmra.mxu0 %v1420
    %v1665 = vpop.f32.mrf.mxu0
    %v1666 = vadd.f32 %v1652, %v1665
    %v1667 = vpop.f32.mrf.mxu0
    %v1668 = vadd.f32 %v1654, %v1667
    %1669 = vdwg.mxu0
    %1670 = vmatpush.bf16.xpose.msra.mxu0 0
    %1671 = vmatpush.bf16.xpose.msra.mxu0 0
    %1672 = vmatpush.bf16.xpose.msra.mxu0 0
    %1673 = vmatpush.bf16.xpose.msra.mxu0 0
    %1674 = vmatpush.bf16.xpose.msra.mxu0 0
    %1675 = vmatpush.bf16.xpose.msra.mxu0 0
    %1676 = vmatpush.bf16.xpose.msra.mxu0 %v1583
    %1677 = vmatpush.bf16.xpose.msra.mxu0 %v1567
    %1678 = vmatmul.bf16.gmra.mxu0 %v1421
    %v1679 = vpop.f32.mrf.mxu0
    %v1680 = vadd.f32 %v1666, %v1679
    %v1681 = vpop.f32.mrf.mxu0
    %v1682 = vadd.f32 %v1668, %v1681
    %1683 = vdwg.mxu0
    %1684 = vmatpush.bf16.xpose.msra.mxu0 0
    %1685 = vmatpush.bf16.xpose.msra.mxu0 0
    %1686 = vmatpush.bf16.xpose.msra.mxu0 0
    %1687 = vmatpush.bf16.xpose.msra.mxu0 0
    %1688 = vmatpush.bf16.xpose.msra.mxu0 0
    %1689 = vmatpush.bf16.xpose.msra.mxu0 0
    %1690 = vmatpush.bf16.xpose.msra.mxu0 %v1584
    %1691 = vmatpush.bf16.xpose.msra.mxu0 %v1568
    %1692 = vmatmul.bf16.gmra.mxu0 %v1422
    %v1693 = vpop.f32.mrf.mxu0
    %v1694 = vadd.f32 %v1680, %v1693
    %v1695 = vpop.f32.mrf.mxu0
    %v1696 = vadd.f32 %v1682, %v1695
    %1697 = vdwg.mxu0
    %1698 = vmatpush.bf16.xpose.msra.mxu0 0
    %1699 = vmatpush.bf16.xpose.msra.mxu0 0
    %1700 = vmatpush.bf16.xpose.msra.mxu0 0
    %1701 = vmatpush.bf16.xpose.msra.mxu0 0
    %1702 = vmatpush.bf16.xpose.msra.mxu0 0
    %1703 = vmatpush.bf16.xpose.msra.mxu0 0
    %1704 = vmatpush.bf16.xpose.msra.mxu0 %v1585
    %1705 = vmatpush.bf16.xpose.msra.mxu0 %v1569
    %1706 = vmatmul.bf16.gmra.mxu0 %v1423
    %v1707 = vpop.f32.mrf.mxu0
    %v1708 = vadd.f32 %v1694, %v1707
    %v1709 = vpop.f32.mrf.mxu0
    %v1710 = vadd.f32 %v1696, %v1709
    %1711 = vdwg.mxu0
    %1712 = vmatpush.bf16.xpose.msra.mxu0 0
    %1713 = vmatpush.bf16.xpose.msra.mxu0 0
    %1714 = vmatpush.bf16.xpose.msra.mxu0 0
    %1715 = vmatpush.bf16.xpose.msra.mxu0 0
    %1716 = vmatpush.bf16.xpose.msra.mxu0 0
    %1717 = vmatpush.bf16.xpose.msra.mxu0 0
    %1718 = vmatpush.bf16.xpose.msra.mxu0 %v1586
    %1719 = vmatpush.bf16.xpose.msra.mxu0 %v1570
    %1720 = vmatmul.bf16.gmra.mxu0 %v1424
    %v1721 = vpop.f32.mrf.mxu0
    %v1722 = vadd.f32 %v1708, %v1721
    %v1723 = vpop.f32.mrf.mxu0
    %v1724 = vadd.f32 %v1710, %v1723
    %1725 = vdwg.mxu0
    %1726 = vmatpush.bf16.xpose.msra.mxu0 0
    %1727 = vmatpush.bf16.xpose.msra.mxu0 0
    %1728 = vmatpush.bf16.xpose.msra.mxu0 0
    %1729 = vmatpush.bf16.xpose.msra.mxu0 0
    %1730 = vmatpush.bf16.xpose.msra.mxu0 0
    %1731 = vmatpush.bf16.xpose.msra.mxu0 0
    %1732 = vmatpush.bf16.xpose.msra.mxu0 %v1587
    %1733 = vmatpush.bf16.xpose.msra.mxu0 %v1571
    %1734 = vmatmul.bf16.gmra.mxu0 %v1425
    %v1735 = vpop.f32.mrf.mxu0
    %v1736 = vadd.f32 %v1722, %v1735
    %v1737 = vpop.f32.mrf.mxu0
    %v1738 = vadd.f32 %v1724, %v1737
    %1739 = vdwg.mxu0
    %1740 = vmatpush.bf16.xpose.msra.mxu0 0
    %1741 = vmatpush.bf16.xpose.msra.mxu0 0
    %1742 = vmatpush.bf16.xpose.msra.mxu0 0
    %1743 = vmatpush.bf16.xpose.msra.mxu0 0
    %1744 = vmatpush.bf16.xpose.msra.mxu0 0
    %1745 = vmatpush.bf16.xpose.msra.mxu0 0
    %1746 = vmatpush.bf16.xpose.msra.mxu0 %v1588
    %1747 = vmatpush.bf16.xpose.msra.mxu0 %v1572
    %1748 = vmatmul.bf16.gmra.mxu0 %v1426
    %v1749 = vpop.f32.mrf.mxu0
    %v1750 = vadd.f32 %v1736, %v1749
    %v1751 = vpop.f32.mrf.mxu0
    %v1752 = vadd.f32 %v1738, %v1751
    %1753 = vdwg.mxu0
    %1754 = vmatpush.bf16.xpose.msra.mxu0 0
    %1755 = vmatpush.bf16.xpose.msra.mxu0 0
    %1756 = vmatpush.bf16.xpose.msra.mxu0 0
    %1757 = vmatpush.bf16.xpose.msra.mxu0 0
    %1758 = vmatpush.bf16.xpose.msra.mxu0 0
    %1759 = vmatpush.bf16.xpose.msra.mxu0 0
    %1760 = vmatpush.bf16.xpose.msra.mxu0 %v1589
    %1761 = vmatpush.bf16.xpose.msra.mxu0 %v1573
    %1762 = vmatmul.bf16.gmra.mxu0 %v1427
    %v1763 = vpop.f32.mrf.mxu0
    %v1764 = vadd.f32 %v1750, %v1763
    %v1765 = vpop.f32.mrf.mxu0
    %v1766 = vadd.f32 %v1752, %v1765
    %1767 = vdwg.mxu0
    %1768 = vmatpush.bf16.xpose.msra.mxu0 0
    %1769 = vmatpush.bf16.xpose.msra.mxu0 0
    %1770 = vmatpush.bf16.xpose.msra.mxu0 0
    %1771 = vmatpush.bf16.xpose.msra.mxu0 0
    %1772 = vmatpush.bf16.xpose.msra.mxu0 0
    %1773 = vmatpush.bf16.xpose.msra.mxu0 0
    %1774 = vmatpush.bf16.xpose.msra.mxu0 %v1590
    %1775 = vmatpush.bf16.xpose.msra.mxu0 %v1574
    %1776 = vmatmul.bf16.gmra.mxu0 %v1428
    %v1777 = vpop.f32.mrf.mxu0
    %v1778 = vadd.f32 %v1764, %v1777
    %v1779 = vpop.f32.mrf.mxu0
    %v1780 = vadd.f32 %v1766, %v1779
    %1781 = vdwg.mxu0
    %1782 = vmatpush.bf16.xpose.msra.mxu0 0
    %1783 = vmatpush.bf16.xpose.msra.mxu0 0
    %1784 = vmatpush.bf16.xpose.msra.mxu0 0
    %1785 = vmatpush.bf16.xpose.msra.mxu0 0
    %1786 = vmatpush.bf16.xpose.msra.mxu0 0
    %1787 = vmatpush.bf16.xpose.msra.mxu0 0
    %1788 = vmatpush.bf16.xpose.msra.mxu0 %v1591
    %1789 = vmatpush.bf16.xpose.msra.mxu0 %v1575
    %1790 = vmatmul.bf16.gmra.mxu0 %v1429
    %v1791 = vpop.f32.mrf.mxu0
    %v1792 = vadd.f32 %v1778, %v1791
    %v1793 = vpop.f32.mrf.mxu0
    %v1794 = vadd.f32 %v1780, %v1793
    %1795 = vdwg.mxu0
    %1796 = vmatpush.bf16.xpose.msra.mxu0 0
    %1797 = vmatpush.bf16.xpose.msra.mxu0 0
    %1798 = vmatpush.bf16.xpose.msra.mxu0 0
    %1799 = vmatpush.bf16.xpose.msra.mxu0 0
    %1800 = vmatpush.bf16.xpose.msra.mxu0 0
    %1801 = vmatpush.bf16.xpose.msra.mxu0 0
    %1802 = vmatpush.bf16.xpose.msra.mxu0 %v1592
    %1803 = vmatpush.bf16.xpose.msra.mxu0 %v1576
    %1804 = vmatmul.bf16.gmra.mxu0 %v1430
    %v1805 = vpop.f32.mrf.mxu0
    %v1806 = vadd.f32 %v1792, %v1805
    %v1807 = vpop.f32.mrf.mxu0
    %v1808 = vadd.f32 %v1794, %v1807
    %1809 = vdwg.mxu0
    %1810 = vmatpush.bf16.xpose.msra.mxu0 0
    %1811 = vmatpush.bf16.xpose.msra.mxu0 0
    %1812 = vmatpush.bf16.xpose.msra.mxu0 0
    %1813 = vmatpush.bf16.xpose.msra.mxu0 0
    %1814 = vmatpush.bf16.xpose.msra.mxu0 0
    %1815 = vmatpush.bf16.xpose.msra.mxu0 0
    %1816 = vmatpush.bf16.xpose.msra.mxu0 %v1593
    %1817 = vmatpush.bf16.xpose.msra.mxu0 %v1577
    %1818 = vmatmul.bf16.gmra.mxu0 %v1431
    %v1819 = vpop.f32.mrf.mxu0
    %v1820 = vadd.f32 %v1806, %v1819
    %v1821 = vpop.f32.mrf.mxu0
    %v1822 = vadd.f32 %v1808, %v1821
    %1823 = vdwg.mxu0
    %1824 = vmatpush.bf16.xpose.msra.mxu0 0
    %1825 = vmatpush.bf16.xpose.msra.mxu0 0
    %1826 = vmatpush.bf16.xpose.msra.mxu0 0
    %1827 = vmatpush.bf16.xpose.msra.mxu0 0
    %1828 = vmatpush.bf16.xpose.msra.mxu0 0
    %1829 = vmatpush.bf16.xpose.msra.mxu0 0
    %1830 = vmatpush.bf16.xpose.msra.mxu0 %v1594
    %1831 = vmatpush.bf16.xpose.msra.mxu0 %v1578
    %1832 = vmatmul.bf16.gmra.mxu0 %v1432
    %v1833 = vpop.f32.mrf.mxu0
    %v1834 = vadd.f32 %v1820, %v1833
    %v1835 = vpop.f32.mrf.mxu0
    %v1836 = vadd.f32 %v1822, %v1835
    %1837 = vdwg.mxu0
    %1838 = vmatpush.bf16.xpose.msra.mxu0 0
    %1839 = vmatpush.bf16.xpose.msra.mxu0 0
    %1840 = vmatpush.bf16.xpose.msra.mxu0 0
    %1841 = vmatpush.bf16.xpose.msra.mxu0 0
    %1842 = vmatpush.bf16.xpose.msra.mxu0 0
    %1843 = vmatpush.bf16.xpose.msra.mxu0 0
    %1844 = vmatpush.bf16.xpose.msra.mxu0 %v1595
    %1845 = vmatpush.bf16.xpose.msra.mxu0 %v1579
    %1846 = vmatmul.bf16.gmra.mxu0 %v1433
    %v1847 = vpop.f32.mrf.mxu0
    %v1848 = vadd.f32 %v1834, %v1847
    %v1849 = vpop.f32.mrf.mxu0
    %v1850 = vadd.f32 %v1836, %v1849
    %1851 = vdwg.mxu0
    %v1852 = vadd.f32 %v927, %v1848
    %v1853 = vadd.f32 %v928, %v1850
    %v1854 = vld [vmem:[#allocation7 + $0x9] sm:$0x1]
    %v1855 = vld [vmem:[#allocation7 + $0xa] sm:$0x1]
    %v1856 = vsel %vm206, %v1852, 0.0
    %1857 = vadd.xlane.f32.xlu0 %v1856
    %v1858 = vpop.xlane.xlu0 %1857
    %v1859 = vsel %vm206, %v1853, 0.0
    %1860 = vadd.xlane.f32.xlu0 %v1859
    %v1861 = vpop.xlane.xlu0 %1860
    %v1862 = vmul.f32 %v1858, %v216
    %v1863 = vmul.f32 %v1861, %v216
    %v1864 = vsub.f32 %v1852, %v1862
    %v1865 = vsub.f32 %v1853, %v1863
    %v1866 = vmul.f32 %v1864, %v1864
    %v1867 = vmul.f32 %v1865, %v1865
    %v1868 = vsel %vm206, %v1866, 0.0
    %1869 = vadd.xlane.f32.xlu0 %v1868
    %v1870 = vpop.xlane.xlu0 %1869
    %v1871 = vsel %vm206, %v1867, 0.0
    %1872 = vadd.xlane.f32.xlu0 %v1871
    %v1873 = vpop.xlane.xlu0 %1872
    %v1874 = vmul.f32 %v1870, %v216
    %v1875 = vmul.f32 %v1873, %v216
    %v1876 = vadd.f32 %v1874, 1e-05
    %v1877 = vadd.f32 %v1875, 1e-05
    %v1878 = vrsqrt.pop %v1876
    %v1879 = vmul.f32 %v1878, %v1876
    %v1880 = vmul.f32 %v1879, %v1878
    %v1881 = vmul.f32 0.5, %v1880
    %v1882 = vsub.f32 1.5, %v1881
    %v1883 = vmul.f32 %v1878, %v1882
    %vm1884 = vweird.f32 %v1876
    %vm1885 = vweird.f32 %v1878
    %vm1886 = vmor %vm1884, %vm1885
    %v1887 = vsel %vm1886, %v1878, %v1883
    %v1888 = vrsqrt.pop %v1877
    %v1889 = vmul.f32 %v1888, %v1877
    %v1890 = vmul.f32 %v1889, %v1888
    %v1891 = vmul.f32 0.5, %v1890
    %v1892 = vsub.f32 1.5, %v1891
    %v1893 = vmul.f32 %v1888, %v1892
    %vm1894 = vweird.f32 %v1877
    %vm1895 = vweird.f32 %v1888
    %vm1896 = vmor %vm1894, %vm1895
    %v1897 = vsel %vm1896, %v1888, %v1893
    %v1898 = vmul.f32 %v1864, %v1887
    %v1899 = vmul.f32 %v1865, %v1897
    %v1900 = vperm.slane %v1854, 0
    %v1901 = vmul.f32 %v1898, %v1900
    %v1902 = vmul.f32 %v1899, %v1900
    %v1903 = vperm.slane %v1855, 0
    %v1904 = vadd.f32 %v1901, %v1903
    %v1905 = vadd.f32 %v1902, %v1903
    %s1906 = scalar_lea.vmem %s6, 32
    %v1907 = vld [vmem:[%s1906] sm:$0xff]
    %v1908 = vld [vmem:[%s1906 + $0x8] sm:$0xff]
    %v1909 = vld [vmem:[%s1906 + $0x10] sm:$0xff]
    %v1910 = vld [vmem:[%s1906 + $0x18] sm:$0xff]
    %s1911 = scalar_lea.vmem %s7, 1
    %v1912 = vld [vmem:[%s1911] sm:$0x1]
    %v1914 = vperm.slane %v1912, 0
    %v1917 = vsel %vm206, %v1904, 0
    %v1920 = vsel %vm206, %v1905, 0
    %1922 = vmatpush.msra.mxu0 0.0
    %1923 = vmatpush.msra.mxu0 0.0
    %1924 = vmatpush.msra.mxu0 0.0
    %1925 = vmatpush.msra.mxu0 0.0
    %1926 = vmatpush.msra.mxu0 0.0
    %1927 = vmatpush.msra.mxu0 0.0
    %1928 = vmatpush.msra.mxu0 0.0
    %1929 = vmatpush.msra.mxu0 0.0
    %1930 = vmatpush.msra.mxu0 0.0
    %1931 = vmatpush.msra.mxu0 0.0
    %1932 = vmatpush.msra.mxu0 0.0
    %1933 = vmatpush.msra.mxu0 0.0
    %1934 = vmatpush.msra.mxu0 %v1910
    %1935 = vmatpush.msra.mxu0 %v1909
    %1936 = vmatpush.msra.mxu0 %v1908
    %1937 = vmatpush.msra.mxu0 %v1907
    %1938 = vmatmul.f32.gmra.mxu0 %v1917
    %v1939 = vpop.f32.mrf.mxu0
    %v1940 = vadd.f32 %v1914, %v1939
    %1941 = vmatmul.f32.gmra.mxu0 %v1920
    %v1942 = vpop.f32.mrf.mxu0
    %v1943 = vadd.f32 %v1914, %v1942
    %1944 = vdwg.mxu0
    %v1945 = vld [vmem:[#allocation7 + $0xb] sm:$0x1]
    %1948 = vrot.lane.b32.xlu0 %v1940, 96
    %v1949 = vpop.permute.xlu0 %1948
    %1950 = vrot.lane.b32.xlu0 %v1943, 96
    %v1951 = vpop.permute.xlu0 %1950
    %v1952 = vsel %vm352, %v1940, 0
    %v1954 = vsel %vm352, %v1943, 0
    %v1956 = vsel %vm352, %v1949, 0
    %v1958 = vsel %vm352, %v1951, 0
    %1960 = vmatpush.xpose.msra.mxu0 0.0
    %1961 = vmatpush.xpose.msra.mxu0 0.0
    %1962 = vmatpush.xpose.msra.mxu0 0.0
    %1963 = vmatpush.xpose.msra.mxu0 0.0
    %1964 = vmatpush.xpose.msra.mxu0 0.0
    %1965 = vmatpush.xpose.msra.mxu0 0.0
    %1966 = vmatpush.xpose.msra.mxu0 0.0
    %1967 = vmatpush.xpose.msra.mxu0 0.0
    %1968 = vmatpush.xpose.msra.mxu0 0.0
    %1969 = vmatpush.xpose.msra.mxu0 0.0
    %1970 = vmatpush.xpose.msra.mxu0 0.0
    %1971 = vmatpush.xpose.msra.mxu0 0.0
    %1972 = vmatpush.xpose.msra.mxu0 0.0
    %1973 = vmatpush.xpose.msra.mxu0 0.0
    %1974 = vmatpush.xpose.msra.mxu0 %v1958
    %1975 = vmatpush.xpose.msra.mxu0 %v1956
    %1976 = vmatmul.f32.gmra.mxu0 %v1952
    %v1977 = vpop.f32.mrf.mxu0
    %v1978 = vadd.f32 0.0, %v1977
    %1979 = vmatmul.f32.gmra.mxu0 %v1954
    %v1980 = vpop.f32.mrf.mxu0
    %v1981 = vadd.f32 0.0, %v1980
    %1982 = vdwg.mxu0
    %v1983 = vmul.f32 %v1978, 0.35355338
    %v1984 = vmul.f32 %v1981, 0.35355338
    %v1985 = vadd.f32 %v1983, %v306
    %v1986 = vadd.f32 %v1984, %v307
    %v1987 = vsel %vm388, %v1985, -inf
    %1988 = vmax.xlane.f32.xlu0 %v1987
    %v1989 = vpop.xlane.xlu0 %1988
    %v1990 = vsel %vm388, %v1986, -inf
    %1991 = vmax.xlane.f32.xlu0 %v1990
    %v1992 = vpop.xlane.xlu0 %1991
    %v1993 = vsub.f32 %v1985, %v1989
    %v1994 = vsub.f32 %v1986, %v1992
    %v1995 = vmul.f32 %v1993, 1.442695
    %v1996 = vpow.pop %v1995
    %v1997 = vmul.f32 %v1994, 1.442695
    %v1998 = vpow.pop %v1997
    %v1999 = vsel %vm388, %v1996, 0.0
    %2000 = vadd.xlane.f32.xlu0 %v1999
    %v2001 = vpop.xlane.xlu0 %2000
    %v2002 = vsel %vm388, %v1998, 0.0
    %2003 = vadd.xlane.f32.xlu0 %v2002
    %v2004 = vpop.xlane.xlu0 %2003
    %v2005 = vrcp.pop %v2001
    %v2006 = vrcp.pop %v2004
    %v2007 = vmul.f32 %v1996, %v2005
    %v2008 = vmul.f32 %v1998, %v2006
    %2009 = vrot.lane.b32.xlu0 %v1940, 64
    %v2010 = vpop.permute.xlu0 %2009
    %2011 = vrot.lane.b32.xlu0 %v1943, 64
    %v2012 = vpop.permute.xlu0 %2011
    %v2016 = vsel %vm388, %v2007, 0
    %v2019 = vsel %vm388, %v2008, 0
    %2021 = vmatpush.msra.mxu0 0.0
    %2022 = vmatpush.msra.mxu0 0.0
    %2023 = vmatpush.msra.mxu0 0.0
    %2024 = vmatpush.msra.mxu0 0.0
    %2025 = vmatpush.msra.mxu0 0.0
    %2026 = vmatpush.msra.mxu0 0.0
    %2027 = vmatpush.msra.mxu0 0.0
    %2028 = vmatpush.msra.mxu0 0.0
    %2029 = vmatpush.msra.mxu0 0.0
    %2030 = vmatpush.msra.mxu0 0.0
    %2031 = vmatpush.msra.mxu0 0.0
    %2032 = vmatpush.msra.mxu0 0.0
    %2033 = vmatpush.msra.mxu0 0.0
    %2034 = vmatpush.msra.mxu0 0.0
    %2035 = vmatpush.msra.mxu0 %v2012
    %2036 = vmatpush.msra.mxu0 %v2010
    %2037 = vmatmul.f32.gmra.mxu0 %v2016
    %v2038 = vpop.f32.mrf.mxu0
    %v2039 = vadd.f32 0.0, %v2038
    %2040 = vmatmul.f32.gmra.mxu0 %v2019
    %v2041 = vpop.f32.mrf.mxu0
    %v2042 = vadd.f32 0.0, %v2041
    %2043 = vdwg.mxu0
    %s2044 = scalar_lea.vmem [#allocation9], 32
    %v2045 = vld [vmem:[%s2044] sm:$0xff]
    %v2047 = vsel %vm352, %v2039, 0
    %v2050 = vsel %vm352, %v2042, 0
    %2052 = vmatpush.msra.mxu0 0.0
    %2053 = vmatpush.msra.mxu0 0.0
    %2054 = vmatpush.msra.mxu0 0.0
    %2055 = vmatpush.msra.mxu0 0.0
    %2056 = vmatpush.msra.mxu0 0.0
    %2057 = vmatpush.msra.mxu0 0.0
    %2058 = vmatpush.msra.mxu0 0.0
    %2059 = vmatpush.msra.mxu0 0.0
    %2060 = vmatpush.msra.mxu0 0.0
    %2061 = vmatpush.msra.mxu0 0.0
    %2062 = vmatpush.msra.mxu0 0.0
    %2063 = vmatpush.msra.mxu0 0.0
    %2064 = vmatpush.msra.mxu0 0.0
    %2065 = vmatpush.msra.mxu0 0.0
    %2066 = vmatpush.msra.mxu0 0.0
    %2067 = vmatpush.msra.mxu0 %v2045
    %2068 = vmatmul.f32.gmra.mxu0 %v2047
    %v2069 = vpop.f32.mrf.mxu0
    %v2070 = vadd.f32 0.0, %v2069
    %2071 = vmatmul.f32.gmra.mxu0 %v2050
    %v2072 = vpop.f32.mrf.mxu0
    %v2073 = vadd.f32 0.0, %v2072
    %2074 = vdwg.mxu0
    %v2075 = vperm.slane %v1945, 0
    %v2076 = vadd.f32 %v2075, %v2070
    %v2077 = vadd.f32 %v2075, %v2073
    %2078 = vrot.lane.b32.xlu0 %v1940, 120
    %v2079 = vpop.permute.xlu0 %2078
    %2080 = vrot.lane.b32.xlu0 %v1943, 120
    %v2081 = vpop.permute.xlu0 %2080
    %2082 = vrot.lane.b32.xlu0 %v1940, 88
    %v2083 = vpop.permute.xlu0 %2082
    %2084 = vrot.lane.b32.xlu0 %v1943, 88
    %v2085 = vpop.permute.xlu0 %2084
    %v2086 = vsel %vm352, %v2079, 0
    %v2088 = vsel %vm352, %v2081, 0
    %v2090 = vsel %vm352, %v2083, 0
    %v2092 = vsel %vm352, %v2085, 0
    %2094 = vmatpush.xpose.msra.mxu0 0.0
    %2095 = vmatpush.xpose.msra.mxu0 0.0
    %2096 = vmatpush.xpose.msra.mxu0 0.0
    %2097 = vmatpush.xpose.msra.mxu0 0.0
    %2098 = vmatpush.xpose.msra.mxu0 0.0
    %2099 = vmatpush.xpose.msra.mxu0 0.0
    %2100 = vmatpush.xpose.msra.mxu0 0.0
    %2101 = vmatpush.xpose.msra.mxu0 0.0
    %2102 = vmatpush.xpose.msra.mxu0 0.0
    %2103 = vmatpush.xpose.msra.mxu0 0.0
    %2104 = vmatpush.xpose.msra.mxu0 0.0
    %2105 = vmatpush.xpose.msra.mxu0 0.0
    %2106 = vmatpush.xpose.msra.mxu0 0.0
    %2107 = vmatpush.xpose.msra.mxu0 0.0
    %2108 = vmatpush.xpose.msra.mxu0 %v2092
    %2109 = vmatpush.xpose.msra.mxu0 %v2090
    %2110 = vmatmul.f32.gmra.mxu0 %v2086
    %v2111 = vpop.f32.mrf.mxu0
    %v2112 = vadd.f32 0.0, %v2111
    %2113 = vmatmul.f32.gmra.mxu0 %v2088
    %v2114 = vpop.f32.mrf.mxu0
    %v2115 = vadd.f32 0.0, %v2114
    %2116 = vdwg.mxu0
    %v2117 = vmul.f32 %v2112, 0.35355338
    %v2118 = vmul.f32 %v2115, 0.35355338
    %v2119 = vadd.f32 %v2117, %v306
    %v2120 = vadd.f32 %v2118, %v307
    %v2121 = vsel %vm388, %v2119, -inf
    %2122 = vmax.xlane.f32.xlu0 %v2121
    %v2123 = vpop.xlane.xlu0 %2122
    %v2124 = vsel %vm388, %v2120, -inf
    %2125 = vmax.xlane.f32.xlu0 %v2124
    %v2126 = vpop.xlane.xlu0 %2125
    %v2127 = vsub.f32 %v2119, %v2123
    %v2128 = vsub.f32 %v2120, %v2126
    %v2129 = vmul.f32 %v2127, 1.442695
    %v2130 = vpow.pop %v2129
    %v2131 = vmul.f32 %v2128, 1.442695
    %v2132 = vpow.pop %v2131
    %v2133 = vsel %vm388, %v2130, 0.0
    %2134 = vadd.xlane.f32.xlu0 %v2133
    %v2135 = vpop.xlane.xlu0 %2134
    %v2136 = vsel %vm388, %v2132, 0.0
    %2137 = vadd.xlane.f32.xlu0 %v2136
    %v2138 = vpop.xlane.xlu0 %2137
    %v2139 = vrcp.pop %v2135
    %v2140 = vrcp.pop %v2138
    %v2141 = vmul.f32 %v2130, %v2139
    %v2142 = vmul.f32 %v2132, %v2140
    %2143 = vrot.lane.b32.xlu0 %v1940, 56
    %v2144 = vpop.permute.xlu0 %2143
    %2145 = vrot.lane.b32.xlu0 %v1943, 56
    %v2146 = vpop.permute.xlu0 %2145
    %v2150 = vsel %vm388, %v2141, 0
    %v2153 = vsel %vm388, %v2142, 0
    %2155 = vmatpush.msra.mxu0 0.0
    %2156 = vmatpush.msra.mxu0 0.0
    %2157 = vmatpush.msra.mxu0 0.0
    %2158 = vmatpush.msra.mxu0 0.0
    %2159 = vmatpush.msra.mxu0 0.0
    %2160 = vmatpush.msra.mxu0 0.0
    %2161 = vmatpush.msra.mxu0 0.0
    %2162 = vmatpush.msra.mxu0 0.0
    %2163 = vmatpush.msra.mxu0 0.0
    %2164 = vmatpush.msra.mxu0 0.0
    %2165 = vmatpush.msra.mxu0 0.0
    %2166 = vmatpush.msra.mxu0 0.0
    %2167 = vmatpush.msra.mxu0 0.0
    %2168 = vmatpush.msra.mxu0 0.0
    %2169 = vmatpush.msra.mxu0 %v2146
    %2170 = vmatpush.msra.mxu0 %v2144
    %2171 = vmatmul.f32.gmra.mxu0 %v2150
    %v2172 = vpop.f32.mrf.mxu0
    %v2173 = vadd.f32 0.0, %v2172
    %2174 = vmatmul.f32.gmra.mxu0 %v2153
    %v2175 = vpop.f32.mrf.mxu0
    %v2176 = vadd.f32 0.0, %v2175
    %2177 = vdwg.mxu0
    %v2178 = vld [vmem:[%s2044 + $0x8] sm:$0xff]
    %v2180 = vsel %vm352, %v2173, 0
    %v2183 = vsel %vm352, %v2176, 0
    %2185 = vmatpush.msra.mxu0 0.0
    %2186 = vmatpush.msra.mxu0 0.0
    %2187 = vmatpush.msra.mxu0 0.0
    %2188 = vmatpush.msra.mxu0 0.0
    %2189 = vmatpush.msra.mxu0 0.0
    %2190 = vmatpush.msra.mxu0 0.0
    %2191 = vmatpush.msra.mxu0 0.0
    %2192 = vmatpush.msra.mxu0 0.0
    %2193 = vmatpush.msra.mxu0 0.0
    %2194 = vmatpush.msra.mxu0 0.0
    %2195 = vmatpush.msra.mxu0 0.0
    %2196 = vmatpush.msra.mxu0 0.0
    %2197 = vmatpush.msra.mxu0 0.0
    %2198 = vmatpush.msra.mxu0 0.0
    %2199 = vmatpush.msra.mxu0 0.0
    %2200 = vmatpush.msra.mxu0 %v2178
    %2201 = vmatmul.f32.gmra.mxu0 %v2180
    %v2202 = vpop.f32.mrf.mxu0
    %v2203 = vadd.f32 0.0, %v2202
    %2204 = vmatmul.f32.gmra.mxu0 %v2183
    %v2205 = vpop.f32.mrf.mxu0
    %v2206 = vadd.f32 0.0, %v2205
    %2207 = vdwg.mxu0
    %v2208 = vadd.f32 %v2076, %v2203
    %v2209 = vadd.f32 %v2077, %v2206
    %2210 = vrot.lane.b32.xlu0 %v1940, 112
    %v2211 = vpop.permute.xlu0 %2210
    %2212 = vrot.lane.b32.xlu0 %v1943, 112
    %v2213 = vpop.permute.xlu0 %2212
    %2214 = vrot.lane.b32.xlu0 %v1940, 80
    %v2215 = vpop.permute.xlu0 %2214
    %2216 = vrot.lane.b32.xlu0 %v1943, 80
    %v2217 = vpop.permute.xlu0 %2216
    %v2218 = vsel %vm352, %v2211, 0
    %v2220 = vsel %vm352, %v2213, 0
    %v2222 = vsel %vm352, %v2215, 0
    %v2224 = vsel %vm352, %v2217, 0
    %2226 = vmatpush.xpose.msra.mxu0 0.0
    %2227 = vmatpush.xpose.msra.mxu0 0.0
    %2228 = vmatpush.xpose.msra.mxu0 0.0
    %2229 = vmatpush.xpose.msra.mxu0 0.0
    %2230 = vmatpush.xpose.msra.mxu0 0.0
    %2231 = vmatpush.xpose.msra.mxu0 0.0
    %2232 = vmatpush.xpose.msra.mxu0 0.0
    %2233 = vmatpush.xpose.msra.mxu0 0.0
    %2234 = vmatpush.xpose.msra.mxu0 0.0
    %2235 = vmatpush.xpose.msra.mxu0 0.0
    %2236 = vmatpush.xpose.msra.mxu0 0.0
    %2237 = vmatpush.xpose.msra.mxu0 0.0
    %2238 = vmatpush.xpose.msra.mxu0 0.0
    %2239 = vmatpush.xpose.msra.mxu0 0.0
    %2240 = vmatpush.xpose.msra.mxu0 %v2224
    %2241 = vmatpush.xpose.msra.mxu0 %v2222
    %2242 = vmatmul.f32.gmra.mxu0 %v2218
    %v2243 = vpop.f32.mrf.mxu0
    %v2244 = vadd.f32 0.0, %v2243
    %2245 = vmatmul.f32.gmra.mxu0 %v2220
    %v2246 = vpop.f32.mrf.mxu0
    %v2247 = vadd.f32 0.0, %v2246
    %2248 = vdwg.mxu0
    %v2249 = vmul.f32 %v2244, 0.35355338
    %v2250 = vmul.f32 %v2247, 0.35355338
    %v2251 = vadd.f32 %v2249, %v306
    %v2252 = vadd.f32 %v2250, %v307
    %v2253 = vsel %vm388, %v2251, -inf
    %2254 = vmax.xlane.f32.xlu0 %v2253
    %v2255 = vpop.xlane.xlu0 %2254
    %v2256 = vsel %vm388, %v2252, -inf
    %2257 = vmax.xlane.f32.xlu0 %v2256
    %v2258 = vpop.xlane.xlu0 %2257
    %v2259 = vsub.f32 %v2251, %v2255
    %v2260 = vsub.f32 %v2252, %v2258
    %v2261 = vmul.f32 %v2259, 1.442695
    %v2262 = vpow.pop %v2261
    %v2263 = vmul.f32 %v2260, 1.442695
    %v2264 = vpow.pop %v2263
    %v2265 = vsel %vm388, %v2262, 0.0
    %2266 = vadd.xlane.f32.xlu0 %v2265
    %v2267 = vpop.xlane.xlu0 %2266
    %v2268 = vsel %vm388, %v2264, 0.0
    %2269 = vadd.xlane.f32.xlu0 %v2268
    %v2270 = vpop.xlane.xlu0 %2269
    %v2271 = vrcp.pop %v2267
    %v2272 = vrcp.pop %v2270
    %v2273 = vmul.f32 %v2262, %v2271
    %v2274 = vmul.f32 %v2264, %v2272
    %2275 = vrot.lane.b32.xlu0 %v1940, 48
    %v2276 = vpop.permute.xlu0 %2275
    %2277 = vrot.lane.b32.xlu0 %v1943, 48
    %v2278 = vpop.permute.xlu0 %2277
    %v2282 = vsel %vm388, %v2273, 0
    %v2285 = vsel %vm388, %v2274, 0
    %2287 = vmatpush.msra.mxu0 0.0
    %2288 = vmatpush.msra.mxu0 0.0
    %2289 = vmatpush.msra.mxu0 0.0
    %2290 = vmatpush.msra.mxu0 0.0
    %2291 = vmatpush.msra.mxu0 0.0
    %2292 = vmatpush.msra.mxu0 0.0
    %2293 = vmatpush.msra.mxu0 0.0
    %2294 = vmatpush.msra.mxu0 0.0
    %2295 = vmatpush.msra.mxu0 0.0
    %2296 = vmatpush.msra.mxu0 0.0
    %2297 = vmatpush.msra.mxu0 0.0
    %2298 = vmatpush.msra.mxu0 0.0
    %2299 = vmatpush.msra.mxu0 0.0
    %2300 = vmatpush.msra.mxu0 0.0
    %2301 = vmatpush.msra.mxu0 %v2278
    %2302 = vmatpush.msra.mxu0 %v2276
    %2303 = vmatmul.f32.gmra.mxu0 %v2282
    %v2304 = vpop.f32.mrf.mxu0
    %v2305 = vadd.f32 0.0, %v2304
    %2306 = vmatmul.f32.gmra.mxu0 %v2285
    %v2307 = vpop.f32.mrf.mxu0
    %v2308 = vadd.f32 0.0, %v2307
    %2309 = vdwg.mxu0
    %v2310 = vld [vmem:[%s2044 + $0x10] sm:$0xff]
    %v2312 = vsel %vm352, %v2305, 0
    %v2315 = vsel %vm352, %v2308, 0
    %2317 = vmatpush.msra.mxu0 0.0
    %2318 = vmatpush.msra.mxu0 0.0
    %2319 = vmatpush.msra.mxu0 0.0
    %2320 = vmatpush.msra.mxu0 0.0
    %2321 = vmatpush.msra.mxu0 0.0
    %2322 = vmatpush.msra.mxu0 0.0
    %2323 = vmatpush.msra.mxu0 0.0
    %2324 = vmatpush.msra.mxu0 0.0
    %2325 = vmatpush.msra.mxu0 0.0
    %2326 = vmatpush.msra.mxu0 0.0
    %2327 = vmatpush.msra.mxu0 0.0
    %2328 = vmatpush.msra.mxu0 0.0
    %2329 = vmatpush.msra.mxu0 0.0
    %2330 = vmatpush.msra.mxu0 0.0
    %2331 = vmatpush.msra.mxu0 0.0
    %2332 = vmatpush.msra.mxu0 %v2310
    %2333 = vmatmul.f32.gmra.mxu0 %v2312
    %v2334 = vpop.f32.mrf.mxu0
    %v2335 = vadd.f32 0.0, %v2334
    %2336 = vmatmul.f32.gmra.mxu0 %v2315
    %v2337 = vpop.f32.mrf.mxu0
    %v2338 = vadd.f32 0.0, %v2337
    %2339 = vdwg.mxu0
    %v2340 = vadd.f32 %v2208, %v2335
    %v2341 = vadd.f32 %v2209, %v2338
    %2342 = vrot.lane.b32.xlu0 %v1940, 104
    %v2343 = vpop.permute.xlu0 %2342
    %2344 = vrot.lane.b32.xlu0 %v1943, 104
    %v2345 = vpop.permute.xlu0 %2344
    %2346 = vrot.lane.b32.xlu0 %v1940, 72
    %v2347 = vpop.permute.xlu0 %2346
    %2348 = vrot.lane.b32.xlu0 %v1943, 72
    %v2349 = vpop.permute.xlu0 %2348
    %v2350 = vsel %vm352, %v2343, 0
    %v2352 = vsel %vm352, %v2345, 0
    %v2354 = vsel %vm352, %v2347, 0
    %v2356 = vsel %vm352, %v2349, 0
    %2358 = vmatpush.xpose.msra.mxu0 0.0
    %2359 = vmatpush.xpose.msra.mxu0 0.0
    %2360 = vmatpush.xpose.msra.mxu0 0.0
    %2361 = vmatpush.xpose.msra.mxu0 0.0
    %2362 = vmatpush.xpose.msra.mxu0 0.0
    %2363 = vmatpush.xpose.msra.mxu0 0.0
    %2364 = vmatpush.xpose.msra.mxu0 0.0
    %2365 = vmatpush.xpose.msra.mxu0 0.0
    %2366 = vmatpush.xpose.msra.mxu0 0.0
    %2367 = vmatpush.xpose.msra.mxu0 0.0
    %2368 = vmatpush.xpose.msra.mxu0 0.0
    %2369 = vmatpush.xpose.msra.mxu0 0.0
    %2370 = vmatpush.xpose.msra.mxu0 0.0
    %2371 = vmatpush.xpose.msra.mxu0 0.0
    %2372 = vmatpush.xpose.msra.mxu0 %v2356
    %2373 = vmatpush.xpose.msra.mxu0 %v2354
    %2374 = vmatmul.f32.gmra.mxu0 %v2350
    %v2375 = vpop.f32.mrf.mxu0
    %v2376 = vadd.f32 0.0, %v2375
    %2377 = vmatmul.f32.gmra.mxu0 %v2352
    %v2378 = vpop.f32.mrf.mxu0
    %v2379 = vadd.f32 0.0, %v2378
    %2380 = vdwg.mxu0
    %v2381 = vmul.f32 %v2376, 0.35355338
    %v2382 = vmul.f32 %v2379, 0.35355338
    %v2383 = vadd.f32 %v2381, %v306
    %v2384 = vadd.f32 %v2382, %v307
    %v2385 = vsel %vm388, %v2383, -inf
    %2386 = vmax.xlane.f32.xlu0 %v2385
    %v2387 = vpop.xlane.xlu0 %2386
    %v2388 = vsel %vm388, %v2384, -inf
    %2389 = vmax.xlane.f32.xlu0 %v2388
    %v2390 = vpop.xlane.xlu0 %2389
    %v2391 = vsub.f32 %v2383, %v2387
    %v2392 = vsub.f32 %v2384, %v2390
    %v2393 = vmul.f32 %v2391, 1.442695
    %v2394 = vpow.pop %v2393
    %v2395 = vmul.f32 %v2392, 1.442695
    %v2396 = vpow.pop %v2395
    %v2397 = vsel %vm388, %v2394, 0.0
    %2398 = vadd.xlane.f32.xlu0 %v2397
    %v2399 = vpop.xlane.xlu0 %2398
    %v2400 = vsel %vm388, %v2396, 0.0
    %2401 = vadd.xlane.f32.xlu0 %v2400
    %v2402 = vpop.xlane.xlu0 %2401
    %v2403 = vrcp.pop %v2399
    %v2404 = vrcp.pop %v2402
    %v2405 = vmul.f32 %v2394, %v2403
    %v2406 = vmul.f32 %v2396, %v2404
    %2407 = vrot.lane.b32.xlu0 %v1940, 40
    %v2408 = vpop.permute.xlu0 %2407
    %2409 = vrot.lane.b32.xlu0 %v1943, 40
    %v2410 = vpop.permute.xlu0 %2409
    %v2414 = vsel %vm388, %v2405, 0
    %v2417 = vsel %vm388, %v2406, 0
    %2419 = vmatpush.msra.mxu0 0.0
    %2420 = vmatpush.msra.mxu0 0.0
    %2421 = vmatpush.msra.mxu0 0.0
    %2422 = vmatpush.msra.mxu0 0.0
    %2423 = vmatpush.msra.mxu0 0.0
    %2424 = vmatpush.msra.mxu0 0.0
    %2425 = vmatpush.msra.mxu0 0.0
    %2426 = vmatpush.msra.mxu0 0.0
    %2427 = vmatpush.msra.mxu0 0.0
    %2428 = vmatpush.msra.mxu0 0.0
    %2429 = vmatpush.msra.mxu0 0.0
    %2430 = vmatpush.msra.mxu0 0.0
    %2431 = vmatpush.msra.mxu0 0.0
    %2432 = vmatpush.msra.mxu0 0.0
    %2433 = vmatpush.msra.mxu0 %v2410
    %2434 = vmatpush.msra.mxu0 %v2408
    %2435 = vmatmul.f32.gmra.mxu0 %v2414
    %v2436 = vpop.f32.mrf.mxu0
    %v2437 = vadd.f32 0.0, %v2436
    %2438 = vmatmul.f32.gmra.mxu0 %v2417
    %v2439 = vpop.f32.mrf.mxu0
    %v2440 = vadd.f32 0.0, %v2439
    %2441 = vdwg.mxu0
    %v2442 = vld [vmem:[%s2044 + $0x18] sm:$0xff]
    %v2444 = vsel %vm352, %v2437, 0
    %v2447 = vsel %vm352, %v2440, 0
    %2449 = vmatpush.msra.mxu0 0.0
    %2450 = vmatpush.msra.mxu0 0.0
    %2451 = vmatpush.msra.mxu0 0.0
    %2452 = vmatpush.msra.mxu0 0.0
    %2453 = vmatpush.msra.mxu0 0.0
    %2454 = vmatpush.msra.mxu0 0.0
    %2455 = vmatpush.msra.mxu0 0.0
    %2456 = vmatpush.msra.mxu0 0.0
    %2457 = vmatpush.msra.mxu0 0.0
    %2458 = vmatpush.msra.mxu0 0.0
    %2459 = vmatpush.msra.mxu0 0.0
    %2460 = vmatpush.msra.mxu0 0.0
    %2461 = vmatpush.msra.mxu0 0.0
    %2462 = vmatpush.msra.mxu0 0.0
    %2463 = vmatpush.msra.mxu0 0.0
    %2464 = vmatpush.msra.mxu0 %v2442
    %2465 = vmatmul.f32.gmra.mxu0 %v2444
    %v2466 = vpop.f32.mrf.mxu0
    %v2467 = vadd.f32 0.0, %v2466
    %2468 = vmatmul.f32.gmra.mxu0 %v2447
    %v2469 = vpop.f32.mrf.mxu0
    %v2470 = vadd.f32 0.0, %v2469
    %2471 = vdwg.mxu0
    %v2472 = vadd.f32 %v2340, %v2467
    %v2473 = vadd.f32 %v2341, %v2470
    %v2474 = vadd.f32 %v1904, %v2472
    %v2475 = vadd.f32 %v1905, %v2473
    %v2476 = vld [vmem:[#allocation7 + $0xc] sm:$0x1]
    %v2477 = vld [vmem:[#allocation7 + $0xd] sm:$0x1]
    %v2478 = vsel %vm206, %v2474, 0.0
    %2479 = vadd.xlane.f32.xlu0 %v2478
    %v2480 = vpop.xlane.xlu0 %2479
    %v2481 = vsel %vm206, %v2475, 0.0
    %2482 = vadd.xlane.f32.xlu0 %v2481
    %v2483 = vpop.xlane.xlu0 %2482
    %v2484 = vmul.f32 %v2480, %v216
    %v2485 = vmul.f32 %v2483, %v216
    %v2486 = vsub.f32 %v2474, %v2484
    %v2487 = vsub.f32 %v2475, %v2485
    %v2488 = vmul.f32 %v2486, %v2486
    %v2489 = vmul.f32 %v2487, %v2487
    %v2490 = vsel %vm206, %v2488, 0.0
    %2491 = vadd.xlane.f32.xlu0 %v2490
    %v2492 = vpop.xlane.xlu0 %2491
    %v2493 = vsel %vm206, %v2489, 0.0
    %2494 = vadd.xlane.f32.xlu0 %v2493
    %v2495 = vpop.xlane.xlu0 %2494
    %v2496 = vmul.f32 %v2492, %v216
    %v2497 = vmul.f32 %v2495, %v216
    %v2498 = vadd.f32 %v2496, 1e-05
    %v2499 = vadd.f32 %v2497, 1e-05
    %v2500 = vrsqrt.pop %v2498
    %v2501 = vmul.f32 %v2500, %v2498
    %v2502 = vmul.f32 %v2501, %v2500
    %v2503 = vmul.f32 0.5, %v2502
    %v2504 = vsub.f32 1.5, %v2503
    %v2505 = vmul.f32 %v2500, %v2504
    %vm2506 = vweird.f32 %v2498
    %vm2507 = vweird.f32 %v2500
    %vm2508 = vmor %vm2506, %vm2507
    %v2509 = vsel %vm2508, %v2500, %v2505
    %v2510 = vrsqrt.pop %v2499
    %v2511 = vmul.f32 %v2510, %v2499
    %v2512 = vmul.f32 %v2511, %v2510
    %v2513 = vmul.f32 0.5, %v2512
    %v2514 = vsub.f32 1.5, %v2513
    %v2515 = vmul.f32 %v2510, %v2514
    %vm2516 = vweird.f32 %v2499
    %vm2517 = vweird.f32 %v2510
    %vm2518 = vmor %vm2516, %vm2517
    %v2519 = vsel %vm2518, %v2510, %v2515
    %v2520 = vmul.f32 %v2486, %v2509
    %v2521 = vmul.f32 %v2487, %v2519
    %v2522 = vperm.slane %v2476, 0
    %v2523 = vmul.f32 %v2520, %v2522
    %v2524 = vmul.f32 %v2521, %v2522
    %v2525 = vperm.slane %v2477, 0
    %v2526 = vadd.f32 %v2523, %v2525
    %v2527 = vadd.f32 %v2524, %v2525
    %v2528 = vpack.c.bf16 %v2527, %v2526
    %s2529 = scalar_lea.vmem [#allocation10], 256
    %v2530 = vld [vmem:[%s2529] sm:$0xff]
    %v2531 = vld [vmem:[%s2529 + $0x8] sm:$0xff]
    %v2532 = vld [vmem:[%s2529 + $0x10] sm:$0xff]
    %v2533 = vld [vmem:[%s2529 + $0x18] sm:$0xff]
    %v2534 = vld [vmem:[%s2529 + $0x20] sm:$0xff]
    %v2535 = vld [vmem:[%s2529 + $0x28] sm:$0xff]
    %v2536 = vld [vmem:[%s2529 + $0x30] sm:$0xff]
    %v2537 = vld [vmem:[%s2529 + $0x38] sm:$0xff]
    %v2538 = vld [vmem:[%s2529 + $0x40] sm:$0xff]
    %v2539 = vld [vmem:[%s2529 + $0x48] sm:$0xff]
    %v2540 = vld [vmem:[%s2529 + $0x50] sm:$0xff]
    %v2541 = vld [vmem:[%s2529 + $0x58] sm:$0xff]
    %v2542 = vld [vmem:[%s2529 + $0x60] sm:$0xff]
    %v2543 = vld [vmem:[%s2529 + $0x68] sm:$0xff]
    %v2544 = vld [vmem:[%s2529 + $0x70] sm:$0xff]
    %v2545 = vld [vmem:[%s2529 + $0x78] sm:$0xff]
    %v2546 = vld [vmem:[%s2529 + $0x80] sm:$0xff]
    %v2547 = vld [vmem:[%s2529 + $0x88] sm:$0xff]
    %v2548 = vld [vmem:[%s2529 + $0x90] sm:$0xff]
    %v2549 = vld [vmem:[%s2529 + $0x98] sm:$0xff]
    %v2550 = vld [vmem:[%s2529 + $0xa0] sm:$0xff]
    %v2551 = vld [vmem:[%s2529 + $0xa8] sm:$0xff]
    %v2552 = vld [vmem:[%s2529 + $0xb0] sm:$0xff]
    %v2553 = vld [vmem:[%s2529 + $0xb8] sm:$0xff]
    %v2554 = vld [vmem:[%s2529 + $0xc0] sm:$0xff]
    %v2555 = vld [vmem:[%s2529 + $0xc8] sm:$0xff]
    %v2556 = vld [vmem:[%s2529 + $0xd0] sm:$0xff]
    %v2557 = vld [vmem:[%s2529 + $0xd8] sm:$0xff]
    %v2558 = vld [vmem:[%s2529 + $0xe0] sm:$0xff]
    %v2559 = vld [vmem:[%s2529 + $0xe8] sm:$0xff]
    %v2560 = vld [vmem:[%s2529 + $0xf0] sm:$0xff]
    %v2561 = vld [vmem:[%s2529 + $0xf8] sm:$0xff]
    %s2562 = scalar_lea.vmem %s10, 1
    %v2563 = vld [vmem:[%s2562] ss:$2 sm:$0xff]
    %s2564 = scalar_lea.vmem %s10, 17
    %v2565 = vld [vmem:[%s2564] ss:$2 sm:$0xff]
    %v2568 = vperm.slane %v2563, 0
    %v2569 = vperm.slane %v2563, 1
    %v2570 = vperm.slane %v2563, 2
    %v2571 = vperm.slane %v2563, 3
    %v2572 = vperm.slane %v2563, 4
    %v2573 = vperm.slane %v2563, 5
    %v2574 = vperm.slane %v2563, 6
    %v2575 = vperm.slane %v2563, 7
    %v2576 = vperm.slane %v2565, 0
    %v2577 = vperm.slane %v2565, 1
    %v2578 = vperm.slane %v2565, 2
    %v2579 = vperm.slane %v2565, 3
    %v2580 = vperm.slane %v2565, 4
    %v2581 = vperm.slane %v2565, 5
    %v2582 = vperm.slane %v2565, 6
    %v2583 = vperm.slane %v2565, 7
    %v2632 = vunpack.c.l.b16 %v2530
    %v2633 = vunpack.c.h.b16 %v2530
    %v2634 = vunpack.c.l.b16 %v2531
    %v2635 = vunpack.c.h.b16 %v2531
    %v2636 = vunpack.c.l.b16 %v2532
    %v2637 = vunpack.c.h.b16 %v2532
    %v2638 = vunpack.c.l.b16 %v2533
    %v2639 = vunpack.c.h.b16 %v2533
    %v2640 = vunpack.c.l.b16 %v2534
    %v2641 = vunpack.c.h.b16 %v2534
    %v2642 = vunpack.c.l.b16 %v2535
    %v2643 = vunpack.c.h.b16 %v2535
    %v2644 = vunpack.c.l.b16 %v2536
    %v2645 = vunpack.c.h.b16 %v2536
    %v2646 = vunpack.c.l.b16 %v2537
    %v2647 = vunpack.c.h.b16 %v2537
    %v2648 = vunpack.c.l.b16 %v2538
    %v2649 = vunpack.c.h.b16 %v2538
    %v2650 = vunpack.c.l.b16 %v2539
    %v2651 = vunpack.c.h.b16 %v2539
    %v2652 = vunpack.c.l.b16 %v2540
    %v2653 = vunpack.c.h.b16 %v2540
    %v2654 = vunpack.c.l.b16 %v2541
    %v2655 = vunpack.c.h.b16 %v2541
    %v2656 = vunpack.c.l.b16 %v2542
    %v2657 = vunpack.c.h.b16 %v2542
    %v2658 = vunpack.c.l.b16 %v2543
    %v2659 = vunpack.c.h.b16 %v2543
    %v2660 = vunpack.c.l.b16 %v2544
    %v2661 = vunpack.c.h.b16 %v2544
    %v2662 = vunpack.c.l.b16 %v2545
    %v2663 = vunpack.c.h.b16 %v2545
    %v2664 = vunpack.c.l.b16 %v2546
    %v2665 = vunpack.c.h.b16 %v2546
    %v2666 = vunpack.c.l.b16 %v2547
    %v2667 = vunpack.c.h.b16 %v2547
    %v2668 = vunpack.c.l.b16 %v2548
    %v2669 = vunpack.c.h.b16 %v2548
    %v2670 = vunpack.c.l.b16 %v2549
    %v2671 = vunpack.c.h.b16 %v2549
    %v2672 = vunpack.c.l.b16 %v2550
    %v2673 = vunpack.c.h.b16 %v2550
    %v2674 = vunpack.c.l.b16 %v2551
    %v2675 = vunpack.c.h.b16 %v2551
    %v2676 = vunpack.c.l.b16 %v2552
    %v2677 = vunpack.c.h.b16 %v2552
    %v2678 = vunpack.c.l.b16 %v2553
    %v2679 = vunpack.c.h.b16 %v2553
    %v2680 = vunpack.c.l.b16 %v2554
    %v2681 = vunpack.c.h.b16 %v2554
    %v2682 = vunpack.c.l.b16 %v2555
    %v2683 = vunpack.c.h.b16 %v2555
    %v2684 = vunpack.c.l.b16 %v2556
    %v2685 = vunpack.c.h.b16 %v2556
    %v2686 = vunpack.c.l.b16 %v2557
    %v2687 = vunpack.c.h.b16 %v2557
    %v2688 = vunpack.c.l.b16 %v2558
    %v2689 = vunpack.c.h.b16 %v2558
    %v2690 = vunpack.c.l.b16 %v2559
    %v2691 = vunpack.c.h.b16 %v2559
    %v2692 = vunpack.c.l.b16 %v2560
    %v2693 = vunpack.c.h.b16 %v2560
    %v2694 = vunpack.c.l.b16 %v2561
    %v2695 = vunpack.c.h.b16 %v2561
    %v2696 = vpack.c.b16 %v2648, %v2632
    %v2697 = vpack.c.b16 %v2649, %v2633
    %v2698 = vpack.c.b16 %v2650, %v2634
    %v2699 = vpack.c.b16 %v2651, %v2635
    %v2700 = vpack.c.b16 %v2652, %v2636
    %v2701 = vpack.c.b16 %v2653, %v2637
    %v2702 = vpack.c.b16 %v2654, %v2638
    %v2703 = vpack.c.b16 %v2655, %v2639
    %v2704 = vpack.c.b16 %v2656, %v2640
    %v2705 = vpack.c.b16 %v2657, %v2641
    %v2706 = vpack.c.b16 %v2658, %v2642
    %v2707 = vpack.c.b16 %v2659, %v2643
    %v2708 = vpack.c.b16 %v2660, %v2644
    %v2709 = vpack.c.b16 %v2661, %v2645
    %v2710 = vpack.c.b16 %v2662, %v2646
    %v2711 = vpack.c.b16 %v2663, %v2647
    %v2712 = vpack.c.b16 %v2680, %v2664
    %v2713 = vpack.c.b16 %v2681, %v2665
    %v2714 = vpack.c.b16 %v2682, %v2666
    %v2715 = vpack.c.b16 %v2683, %v2667
    %v2716 = vpack.c.b16 %v2684, %v2668
    %v2717 = vpack.c.b16 %v2685, %v2669
    %v2718 = vpack.c.b16 %v2686, %v2670
    %v2719 = vpack.c.b16 %v2687, %v2671
    %v2720 = vpack.c.b16 %v2688, %v2672
    %v2721 = vpack.c.b16 %v2689, %v2673
    %v2722 = vpack.c.b16 %v2690, %v2674
    %v2723 = vpack.c.b16 %v2691, %v2675
    %v2724 = vpack.c.b16 %v2692, %v2676
    %v2725 = vpack.c.b16 %v2693, %v2677
    %v2726 = vpack.c.b16 %v2694, %v2678
    %v2727 = vpack.c.b16 %v2695, %v2679
    %v2761 = vsel %vm206, %v2528, 0
    %2763 = vmatpush.bf16.msra.mxu0 0
    %2764 = vmatpush.bf16.msra.mxu0 0
    %2765 = vmatpush.bf16.msra.mxu0 0
    %2766 = vmatpush.bf16.msra.mxu0 0
    %2767 = vmatpush.bf16.msra.mxu0 0
    %2768 = vmatpush.bf16.msra.mxu0 0
    %2769 = vmatpush.bf16.msra.mxu0 %v2712
    %2770 = vmatpush.bf16.msra.mxu0 %v2696
    %2771 = vmatmul.bf16.gmra.mxu0 %v2761
    %v2772 = vpop.f32.mrf.mxu0
    %v2773 = vadd.f32 %v2568, %v2772
    %v2774 = vpop.f32.mrf.mxu0
    %v2775 = vadd.f32 %v2568, %v2774
    %2776 = vdwg.mxu0
    %2777 = vmatpush.bf16.msra.mxu0 0
    %2778 = vmatpush.bf16.msra.mxu0 0
    %2779 = vmatpush.bf16.msra.mxu0 0
    %2780 = vmatpush.bf16.msra.mxu0 0
    %2781 = vmatpush.bf16.msra.mxu0 0
    %2782 = vmatpush.bf16.msra.mxu0 0
    %2783 = vmatpush.bf16.msra.mxu0 %v2713
    %2784 = vmatpush.bf16.msra.mxu0 %v2697
    %2785 = vmatmul.bf16.gmra.mxu0 %v2761
    %v2786 = vpop.f32.mrf.mxu0
    %v2787 = vadd.f32 %v2569, %v2786
    %v2788 = vpop.f32.mrf.mxu0
    %v2789 = vadd.f32 %v2569, %v2788
    %2790 = vdwg.mxu0
    %2791 = vmatpush.bf16.msra.mxu0 0
    %2792 = vmatpush.bf16.msra.mxu0 0
    %2793 = vmatpush.bf16.msra.mxu0 0
    %2794 = vmatpush.bf16.msra.mxu0 0
    %2795 = vmatpush.bf16.msra.mxu0 0
    %2796 = vmatpush.bf16.msra.mxu0 0
    %2797 = vmatpush.bf16.msra.mxu0 %v2714
    %2798 = vmatpush.bf16.msra.mxu0 %v2698
    %2799 = vmatmul.bf16.gmra.mxu0 %v2761
    %v2800 = vpop.f32.mrf.mxu0
    %v2801 = vadd.f32 %v2570, %v2800
    %v2802 = vpop.f32.mrf.mxu0
    %v2803 = vadd.f32 %v2570, %v2802
    %2804 = vdwg.mxu0
    %2805 = vmatpush.bf16.msra.mxu0 0
    %2806 = vmatpush.bf16.msra.mxu0 0
    %2807 = vmatpush.bf16.msra.mxu0 0
    %2808 = vmatpush.bf16.msra.mxu0 0
    %2809 = vmatpush.bf16.msra.mxu0 0
    %2810 = vmatpush.bf16.msra.mxu0 0
    %2811 = vmatpush.bf16.msra.mxu0 %v2715
    %2812 = vmatpush.bf16.msra.mxu0 %v2699
    %2813 = vmatmul.bf16.gmra.mxu0 %v2761
    %v2814 = vpop.f32.mrf.mxu0
    %v2815 = vadd.f32 %v2571, %v2814
    %v2816 = vpop.f32.mrf.mxu0
    %v2817 = vadd.f32 %v2571, %v2816
    %2818 = vdwg.mxu0
    %2819 = vmatpush.bf16.msra.mxu0 0
    %2820 = vmatpush.bf16.msra.mxu0 0
    %2821 = vmatpush.bf16.msra.mxu0 0
    %2822 = vmatpush.bf16.msra.mxu0 0
    %2823 = vmatpush.bf16.msra.mxu0 0
    %2824 = vmatpush.bf16.msra.mxu0 0
    %2825 = vmatpush.bf16.msra.mxu0 %v2716
    %2826 = vmatpush.bf16.msra.mxu0 %v2700
    %2827 = vmatmul.bf16.gmra.mxu0 %v2761
    %v2828 = vpop.f32.mrf.mxu0
    %v2829 = vadd.f32 %v2572, %v2828
    %v2830 = vpop.f32.mrf.mxu0
    %v2831 = vadd.f32 %v2572, %v2830
    %2832 = vdwg.mxu0
    %2833 = vmatpush.bf16.msra.mxu0 0
    %2834 = vmatpush.bf16.msra.mxu0 0
    %2835 = vmatpush.bf16.msra.mxu0 0
    %2836 = vmatpush.bf16.msra.mxu0 0
    %2837 = vmatpush.bf16.msra.mxu0 0
    %2838 = vmatpush.bf16.msra.mxu0 0
    %2839 = vmatpush.bf16.msra.mxu0 %v2717
    %2840 = vmatpush.bf16.msra.mxu0 %v2701
    %2841 = vmatmul.bf16.gmra.mxu0 %v2761
    %v2842 = vpop.f32.mrf.mxu0
    %v2843 = vadd.f32 %v2573, %v2842
    %v2844 = vpop.f32.mrf.mxu0
    %v2845 = vadd.f32 %v2573, %v2844
    %2846 = vdwg.mxu0
    %2847 = vmatpush.bf16.msra.mxu0 0
    %2848 = vmatpush.bf16.msra.mxu0 0
    %2849 = vmatpush.bf16.msra.mxu0 0
    %2850 = vmatpush.bf16.msra.mxu0 0
    %2851 = vmatpush.bf16.msra.mxu0 0
    %2852 = vmatpush.bf16.msra.mxu0 0
    %2853 = vmatpush.bf16.msra.mxu0 %v2718
    %2854 = vmatpush.bf16.msra.mxu0 %v2702
    %2855 = vmatmul.bf16.gmra.mxu0 %v2761
    %v2856 = vpop.f32.mrf.mxu0
    %v2857 = vadd.f32 %v2574, %v2856
    %v2858 = vpop.f32.mrf.mxu0
    %v2859 = vadd.f32 %v2574, %v2858
    %2860 = vdwg.mxu0
    %2861 = vmatpush.bf16.msra.mxu0 0
    %2862 = vmatpush.bf16.msra.mxu0 0
    %2863 = vmatpush.bf16.msra.mxu0 0
    %2864 = vmatpush.bf16.msra.mxu0 0
    %2865 = vmatpush.bf16.msra.mxu0 0
    %2866 = vmatpush.bf16.msra.mxu0 0
    %2867 = vmatpush.bf16.msra.mxu0 %v2719
    %2868 = vmatpush.bf16.msra.mxu0 %v2703
    %2869 = vmatmul.bf16.gmra.mxu0 %v2761
    %v2870 = vpop.f32.mrf.mxu0
    %v2871 = vadd.f32 %v2575, %v2870
    %v2872 = vpop.f32.mrf.mxu0
    %v2873 = vadd.f32 %v2575, %v2872
    %2874 = vdwg.mxu0
    %2875 = vmatpush.bf16.msra.mxu0 0
    %2876 = vmatpush.bf16.msra.mxu0 0
    %2877 = vmatpush.bf16.msra.mxu0 0
    %2878 = vmatpush.bf16.msra.mxu0 0
    %2879 = vmatpush.bf16.msra.mxu0 0
    %2880 = vmatpush.bf16.msra.mxu0 0
    %2881 = vmatpush.bf16.msra.mxu0 %v2720
    %2882 = vmatpush.bf16.msra.mxu0 %v2704
    %2883 = vmatmul.bf16.gmra.mxu0 %v2761
    %v2884 = vpop.f32.mrf.mxu0
    %v2885 = vadd.f32 %v2576, %v2884
    %v2886 = vpop.f32.mrf.mxu0
    %v2887 = vadd.f32 %v2576, %v2886
    %2888 = vdwg.mxu0
    %2889 = vmatpush.bf16.msra.mxu0 0
    %2890 = vmatpush.bf16.msra.mxu0 0
    %2891 = vmatpush.bf16.msra.mxu0 0
    %2892 = vmatpush.bf16.msra.mxu0 0
    %2893 = vmatpush.bf16.msra.mxu0 0
    %2894 = vmatpush.bf16.msra.mxu0 0
    %2895 = vmatpush.bf16.msra.mxu0 %v2721
    %2896 = vmatpush.bf16.msra.mxu0 %v2705
    %2897 = vmatmul.bf16.gmra.mxu0 %v2761
    %v2898 = vpop.f32.mrf.mxu0
    %v2899 = vadd.f32 %v2577, %v2898
    %v2900 = vpop.f32.mrf.mxu0
    %v2901 = vadd.f32 %v2577, %v2900
    %2902 = vdwg.mxu0
    %2903 = vmatpush.bf16.msra.mxu0 0
    %2904 = vmatpush.bf16.msra.mxu0 0
    %2905 = vmatpush.bf16.msra.mxu0 0
    %2906 = vmatpush.bf16.msra.mxu0 0
    %2907 = vmatpush.bf16.msra.mxu0 0
    %2908 = vmatpush.bf16.msra.mxu0 0
    %2909 = vmatpush.bf16.msra.mxu0 %v2722
    %2910 = vmatpush.bf16.msra.mxu0 %v2706
    %2911 = vmatmul.bf16.gmra.mxu0 %v2761
    %v2912 = vpop.f32.mrf.mxu0
    %v2913 = vadd.f32 %v2578, %v2912
    %v2914 = vpop.f32.mrf.mxu0
    %v2915 = vadd.f32 %v2578, %v2914
    %2916 = vdwg.mxu0
    %2917 = vmatpush.bf16.msra.mxu0 0
    %2918 = vmatpush.bf16.msra.mxu0 0
    %2919 = vmatpush.bf16.msra.mxu0 0
    %2920 = vmatpush.bf16.msra.mxu0 0
    %2921 = vmatpush.bf16.msra.mxu0 0
    %2922 = vmatpush.bf16.msra.mxu0 0
    %2923 = vmatpush.bf16.msra.mxu0 %v2723
    %2924 = vmatpush.bf16.msra.mxu0 %v2707
    %2925 = vmatmul.bf16.gmra.mxu0 %v2761
    %v2926 = vpop.f32.mrf.mxu0
    %v2927 = vadd.f32 %v2579, %v2926
    %v2928 = vpop.f32.mrf.mxu0
    %v2929 = vadd.f32 %v2579, %v2928
    %2930 = vdwg.mxu0
    %2931 = vmatpush.bf16.msra.mxu0 0
    %2932 = vmatpush.bf16.msra.mxu0 0
    %2933 = vmatpush.bf16.msra.mxu0 0
    %2934 = vmatpush.bf16.msra.mxu0 0
    %2935 = vmatpush.bf16.msra.mxu0 0
    %2936 = vmatpush.bf16.msra.mxu0 0
    %2937 = vmatpush.bf16.msra.mxu0 %v2724
    %2938 = vmatpush.bf16.msra.mxu0 %v2708
    %2939 = vmatmul.bf16.gmra.mxu0 %v2761
    %v2940 = vpop.f32.mrf.mxu0
    %v2941 = vadd.f32 %v2580, %v2940
    %v2942 = vpop.f32.mrf.mxu0
    %v2943 = vadd.f32 %v2580, %v2942
    %2944 = vdwg.mxu0
    %2945 = vmatpush.bf16.msra.mxu0 0
    %2946 = vmatpush.bf16.msra.mxu0 0
    %2947 = vmatpush.bf16.msra.mxu0 0
    %2948 = vmatpush.bf16.msra.mxu0 0
    %2949 = vmatpush.bf16.msra.mxu0 0
    %2950 = vmatpush.bf16.msra.mxu0 0
    %2951 = vmatpush.bf16.msra.mxu0 %v2725
    %2952 = vmatpush.bf16.msra.mxu0 %v2709
    %2953 = vmatmul.bf16.gmra.mxu0 %v2761
    %v2954 = vpop.f32.mrf.mxu0
    %v2955 = vadd.f32 %v2581, %v2954
    %v2956 = vpop.f32.mrf.mxu0
    %v2957 = vadd.f32 %v2581, %v2956
    %2958 = vdwg.mxu0
    %2959 = vmatpush.bf16.msra.mxu0 0
    %2960 = vmatpush.bf16.msra.mxu0 0
    %2961 = vmatpush.bf16.msra.mxu0 0
    %2962 = vmatpush.bf16.msra.mxu0 0
    %2963 = vmatpush.bf16.msra.mxu0 0
    %2964 = vmatpush.bf16.msra.mxu0 0
    %2965 = vmatpush.bf16.msra.mxu0 %v2726
    %2966 = vmatpush.bf16.msra.mxu0 %v2710
    %2967 = vmatmul.bf16.gmra.mxu0 %v2761
    %v2968 = vpop.f32.mrf.mxu0
    %v2969 = vadd.f32 %v2582, %v2968
    %v2970 = vpop.f32.mrf.mxu0
    %v2971 = vadd.f32 %v2582, %v2970
    %2972 = vdwg.mxu0
    %2973 = vmatpush.bf16.msra.mxu0 0
    %2974 = vmatpush.bf16.msra.mxu0 0
    %2975 = vmatpush.bf16.msra.mxu0 0
    %2976 = vmatpush.bf16.msra.mxu0 0
    %2977 = vmatpush.bf16.msra.mxu0 0
    %2978 = vmatpush.bf16.msra.mxu0 0
    %2979 = vmatpush.bf16.msra.mxu0 %v2727
    %2980 = vmatpush.bf16.msra.mxu0 %v2711
    %2981 = vmatmul.bf16.gmra.mxu0 %v2761
    %v2982 = vpop.f32.mrf.mxu0
    %v2983 = vadd.f32 %v2583, %v2982
    %v2984 = vpop.f32.mrf.mxu0
    %v2985 = vadd.f32 %v2583, %v2984
    %2986 = vdwg.mxu0
    %v2987 = vmax.f32 %v2773, 0.0
    %v2988 = vmax.f32 %v2787, 0.0
    %v2989 = vmax.f32 %v2801, 0.0
    %v2990 = vmax.f32 %v2815, 0.0
    %v2991 = vmax.f32 %v2829, 0.0
    %v2992 = vmax.f32 %v2843, 0.0
    %v2993 = vmax.f32 %v2857, 0.0
    %v2994 = vmax.f32 %v2871, 0.0
    %v2995 = vmax.f32 %v2885, 0.0
    %v2996 = vmax.f32 %v2899, 0.0
    %v2997 = vmax.f32 %v2913, 0.0
    %v2998 = vmax.f32 %v2927, 0.0
    %v2999 = vmax.f32 %v2941, 0.0
    %v3000 = vmax.f32 %v2955, 0.0
    %v3001 = vmax.f32 %v2969, 0.0
    %v3002 = vmax.f32 %v2983, 0.0
    %v3003 = vmax.f32 %v2775, 0.0
    %v3004 = vmax.f32 %v2789, 0.0
    %v3005 = vmax.f32 %v2803, 0.0
    %v3006 = vmax.f32 %v2817, 0.0
    %v3007 = vmax.f32 %v2831, 0.0
    %v3008 = vmax.f32 %v2845, 0.0
    %v3009 = vmax.f32 %v2859, 0.0
    %v3010 = vmax.f32 %v2873, 0.0
    %v3011 = vmax.f32 %v2887, 0.0
    %v3012 = vmax.f32 %v2901, 0.0
    %v3013 = vmax.f32 %v2915, 0.0
    %v3014 = vmax.f32 %v2929, 0.0
    %v3015 = vmax.f32 %v2943, 0.0
    %v3016 = vmax.f32 %v2957, 0.0
    %v3017 = vmax.f32 %v2971, 0.0
    %v3018 = vmax.f32 %v2985, 0.0
    %v3019 = vpack.c.bf16 %v3003, %v2987
    %v3020 = vpack.c.bf16 %v3004, %v2988
    %v3021 = vpack.c.bf16 %v3005, %v2989
    %v3022 = vpack.c.bf16 %v3006, %v2990
    %v3023 = vpack.c.bf16 %v3007, %v2991
    %v3024 = vpack.c.bf16 %v3008, %v2992
    %v3025 = vpack.c.bf16 %v3009, %v2993
    %v3026 = vpack.c.bf16 %v3010, %v2994
    %v3027 = vpack.c.bf16 %v3011, %v2995
    %v3028 = vpack.c.bf16 %v3012, %v2996
    %v3029 = vpack.c.bf16 %v3013, %v2997
    %v3030 = vpack.c.bf16 %v3014, %v2998
    %v3031 = vpack.c.bf16 %v3015, %v2999
    %v3032 = vpack.c.bf16 %v3016, %v3000
    %v3033 = vpack.c.bf16 %v3017, %v3001
    %v3034 = vpack.c.bf16 %v3018, %v3002
    %s3035 = scalar_lea.vmem [#allocation12], 256
    %v3036 = vld [vmem:[%s3035] sm:$0xff]
    %v3037 = vld [vmem:[%s3035 + $0x8] sm:$0xff]
    %v3038 = vld [vmem:[%s3035 + $0x10] sm:$0xff]
    %v3039 = vld [vmem:[%s3035 + $0x18] sm:$0xff]
    %v3040 = vld [vmem:[%s3035 + $0x20] sm:$0xff]
    %v3041 = vld [vmem:[%s3035 + $0x28] sm:$0xff]
    %v3042 = vld [vmem:[%s3035 + $0x30] sm:$0xff]
    %v3043 = vld [vmem:[%s3035 + $0x38] sm:$0xff]
    %v3044 = vld [vmem:[%s3035 + $0x40] sm:$0xff]
    %v3045 = vld [vmem:[%s3035 + $0x48] sm:$0xff]
    %v3046 = vld [vmem:[%s3035 + $0x50] sm:$0xff]
    %v3047 = vld [vmem:[%s3035 + $0x58] sm:$0xff]
    %v3048 = vld [vmem:[%s3035 + $0x60] sm:$0xff]
    %v3049 = vld [vmem:[%s3035 + $0x68] sm:$0xff]
    %v3050 = vld [vmem:[%s3035 + $0x70] sm:$0xff]
    %v3051 = vld [vmem:[%s3035 + $0x78] sm:$0xff]
    %v3052 = vld [vmem:[%s3035 + $0x80] sm:$0xff]
    %v3053 = vld [vmem:[%s3035 + $0x88] sm:$0xff]
    %v3054 = vld [vmem:[%s3035 + $0x90] sm:$0xff]
    %v3055 = vld [vmem:[%s3035 + $0x98] sm:$0xff]
    %v3056 = vld [vmem:[%s3035 + $0xa0] sm:$0xff]
    %v3057 = vld [vmem:[%s3035 + $0xa8] sm:$0xff]
    %v3058 = vld [vmem:[%s3035 + $0xb0] sm:$0xff]
    %v3059 = vld [vmem:[%s3035 + $0xb8] sm:$0xff]
    %v3060 = vld [vmem:[%s3035 + $0xc0] sm:$0xff]
    %v3061 = vld [vmem:[%s3035 + $0xc8] sm:$0xff]
    %v3062 = vld [vmem:[%s3035 + $0xd0] sm:$0xff]
    %v3063 = vld [vmem:[%s3035 + $0xd8] sm:$0xff]
    %v3064 = vld [vmem:[%s3035 + $0xe0] sm:$0xff]
    %v3065 = vld [vmem:[%s3035 + $0xe8] sm:$0xff]
    %v3066 = vld [vmem:[%s3035 + $0xf0] sm:$0xff]
    %v3067 = vld [vmem:[%s3035 + $0xf8] sm:$0xff]
    %v3068 = vld [vmem:[#allocation7 + $0xe] sm:$0x1]
    %v3069 = vperm.slane %v3068, 0
    %v3102 = vunpack.c.l.b16 %v3036
    %v3103 = vunpack.c.h.b16 %v3036
    %v3104 = vunpack.c.l.b16 %v3037
    %v3105 = vunpack.c.h.b16 %v3037
    %v3106 = vunpack.c.l.b16 %v3038
    %v3107 = vunpack.c.h.b16 %v3038
    %v3108 = vunpack.c.l.b16 %v3039
    %v3109 = vunpack.c.h.b16 %v3039
    %v3110 = vunpack.c.l.b16 %v3040
    %v3111 = vunpack.c.h.b16 %v3040
    %v3112 = vunpack.c.l.b16 %v3041
    %v3113 = vunpack.c.h.b16 %v3041
    %v3114 = vunpack.c.l.b16 %v3042
    %v3115 = vunpack.c.h.b16 %v3042
    %v3116 = vunpack.c.l.b16 %v3043
    %v3117 = vunpack.c.h.b16 %v3043
    %v3118 = vunpack.c.l.b16 %v3044
    %v3119 = vunpack.c.h.b16 %v3044
    %v3120 = vunpack.c.l.b16 %v3045
    %v3121 = vunpack.c.h.b16 %v3045
    %v3122 = vunpack.c.l.b16 %v3046
    %v3123 = vunpack.c.h.b16 %v3046
    %v3124 = vunpack.c.l.b16 %v3047
    %v3125 = vunpack.c.h.b16 %v3047
    %v3126 = vunpack.c.l.b16 %v3048
    %v3127 = vunpack.c.h.b16 %v3048
    %v3128 = vunpack.c.l.b16 %v3049
    %v3129 = vunpack.c.h.b16 %v3049
    %v3130 = vunpack.c.l.b16 %v3050
    %v3131 = vunpack.c.h.b16 %v3050
    %v3132 = vunpack.c.l.b16 %v3051
    %v3133 = vunpack.c.h.b16 %v3051
    %v3134 = vunpack.c.l.b16 %v3052
    %v3135 = vunpack.c.h.b16 %v3052
    %v3136 = vunpack.c.l.b16 %v3053
    %v3137 = vunpack.c.h.b16 %v3053
    %v3138 = vunpack.c.l.b16 %v3054
    %v3139 = vunpack.c.h.b16 %v3054
    %v3140 = vunpack.c.l.b16 %v3055
    %v3141 = vunpack.c.h.b16 %v3055
    %v3142 = vunpack.c.l.b16 %v3056
    %v3143 = vunpack.c.h.b16 %v3056
    %v3144 = vunpack.c.l.b16 %v3057
    %v3145 = vunpack.c.h.b16 %v3057
    %v3146 = vunpack.c.l.b16 %v3058
    %v3147 = vunpack.c.h.b16 %v3058
    %v3148 = vunpack.c.l.b16 %v3059
    %v3149 = vunpack.c.h.b16 %v3059
    %v3150 = vunpack.c.l.b16 %v3060
    %v3151 = vunpack.c.h.b16 %v3060
    %v3152 = vunpack.c.l.b16 %v3061
    %v3153 = vunpack.c.h.b16 %v3061
    %v3154 = vunpack.c.l.b16 %v3062
    %v3155 = vunpack.c.h.b16 %v3062
    %v3156 = vunpack.c.l.b16 %v3063
    %v3157 = vunpack.c.h.b16 %v3063
    %v3158 = vunpack.c.l.b16 %v3064
    %v3159 = vunpack.c.h.b16 %v3064
    %v3160 = vunpack.c.l.b16 %v3065
    %v3161 = vunpack.c.h.b16 %v3065
    %v3162 = vunpack.c.l.b16 %v3066
    %v3163 = vunpack.c.h.b16 %v3066
    %v3164 = vunpack.c.l.b16 %v3067
    %v3165 = vunpack.c.h.b16 %v3067
    %v3166 = vpack.c.b16 %v3118, %v3102
    %v3167 = vpack.c.b16 %v3119, %v3103
    %v3168 = vpack.c.b16 %v3120, %v3104
    %v3169 = vpack.c.b16 %v3121, %v3105
    %v3170 = vpack.c.b16 %v3122, %v3106
    %v3171 = vpack.c.b16 %v3123, %v3107
    %v3172 = vpack.c.b16 %v3124, %v3108
    %v3173 = vpack.c.b16 %v3125, %v3109
    %v3174 = vpack.c.b16 %v3126, %v3110
    %v3175 = vpack.c.b16 %v3127, %v3111
    %v3176 = vpack.c.b16 %v3128, %v3112
    %v3177 = vpack.c.b16 %v3129, %v3113
    %v3178 = vpack.c.b16 %v3130, %v3114
    %v3179 = vpack.c.b16 %v3131, %v3115
    %v3180 = vpack.c.b16 %v3132, %v3116
    %v3181 = vpack.c.b16 %v3133, %v3117
    %v3182 = vpack.c.b16 %v3150, %v3134
    %v3183 = vpack.c.b16 %v3151, %v3135
    %v3184 = vpack.c.b16 %v3152, %v3136
    %v3185 = vpack.c.b16 %v3153, %v3137
    %v3186 = vpack.c.b16 %v3154, %v3138
    %v3187 = vpack.c.b16 %v3155, %v3139
    %v3188 = vpack.c.b16 %v3156, %v3140
    %v3189 = vpack.c.b16 %v3157, %v3141
    %v3190 = vpack.c.b16 %v3158, %v3142
    %v3191 = vpack.c.b16 %v3159, %v3143
    %v3192 = vpack.c.b16 %v3160, %v3144
    %v3193 = vpack.c.b16 %v3161, %v3145
    %v3194 = vpack.c.b16 %v3162, %v3146
    %v3195 = vpack.c.b16 %v3163, %v3147
    %v3196 = vpack.c.b16 %v3164, %v3148
    %v3197 = vpack.c.b16 %v3165, %v3149
    %3230 = vmatpush.bf16.xpose.msra.mxu0 0
    %3231 = vmatpush.bf16.xpose.msra.mxu0 0
    %3232 = vmatpush.bf16.xpose.msra.mxu0 0
    %3233 = vmatpush.bf16.xpose.msra.mxu0 0
    %3234 = vmatpush.bf16.xpose.msra.mxu0 0
    %3235 = vmatpush.bf16.xpose.msra.mxu0 0
    %3236 = vmatpush.bf16.xpose.msra.mxu0 %v3182
    %3237 = vmatpush.bf16.xpose.msra.mxu0 %v3166
    %3238 = vmatmul.bf16.gmra.mxu0 %v3019
    %v3239 = vpop.f32.mrf.mxu0
    %v3240 = vpop.f32.mrf.mxu0
    %v3241 = vadd.f32 %v3069, %v3240
    %3242 = vdwg.mxu0
    %3243 = vmatpush.bf16.xpose.msra.mxu0 0
    %3244 = vmatpush.bf16.xpose.msra.mxu0 0
    %3245 = vmatpush.bf16.xpose.msra.mxu0 0
    %3246 = vmatpush.bf16.xpose.msra.mxu0 0
    %3247 = vmatpush.bf16.xpose.msra.mxu0 0
    %3248 = vmatpush.bf16.xpose.msra.mxu0 0
    %3249 = vmatpush.bf16.xpose.msra.mxu0 %v3183
    %3250 = vmatpush.bf16.xpose.msra.mxu0 %v3167
    %3251 = vmatmul.bf16.gmra.mxu0 %v3020
    %v3252 = vpop.f32.mrf.mxu0
    %v3253 = vpop.f32.mrf.mxu0
    %v3254 = vadd.f32 %v3241, %v3253
    %3255 = vdwg.mxu0
    %3256 = vmatpush.bf16.xpose.msra.mxu0 0
    %3257 = vmatpush.bf16.xpose.msra.mxu0 0
    %3258 = vmatpush.bf16.xpose.msra.mxu0 0
    %3259 = vmatpush.bf16.xpose.msra.mxu0 0
    %3260 = vmatpush.bf16.xpose.msra.mxu0 0
    %3261 = vmatpush.bf16.xpose.msra.mxu0 0
    %3262 = vmatpush.bf16.xpose.msra.mxu0 %v3184
    %3263 = vmatpush.bf16.xpose.msra.mxu0 %v3168
    %3264 = vmatmul.bf16.gmra.mxu0 %v3021
    %v3265 = vpop.f32.mrf.mxu0
    %v3266 = vpop.f32.mrf.mxu0
    %v3267 = vadd.f32 %v3254, %v3266
    %3268 = vdwg.mxu0
    %3269 = vmatpush.bf16.xpose.msra.mxu0 0
    %3270 = vmatpush.bf16.xpose.msra.mxu0 0
    %3271 = vmatpush.bf16.xpose.msra.mxu0 0
    %3272 = vmatpush.bf16.xpose.msra.mxu0 0
    %3273 = vmatpush.bf16.xpose.msra.mxu0 0
    %3274 = vmatpush.bf16.xpose.msra.mxu0 0
    %3275 = vmatpush.bf16.xpose.msra.mxu0 %v3185
    %3276 = vmatpush.bf16.xpose.msra.mxu0 %v3169
    %3277 = vmatmul.bf16.gmra.mxu0 %v3022
    %v3278 = vpop.f32.mrf.mxu0
    %v3279 = vpop.f32.mrf.mxu0
    %v3280 = vadd.f32 %v3267, %v3279
    %3281 = vdwg.mxu0
    %3282 = vmatpush.bf16.xpose.msra.mxu0 0
    %3283 = vmatpush.bf16.xpose.msra.mxu0 0
    %3284 = vmatpush.bf16.xpose.msra.mxu0 0
    %3285 = vmatpush.bf16.xpose.msra.mxu0 0
    %3286 = vmatpush.bf16.xpose.msra.mxu0 0
    %3287 = vmatpush.bf16.xpose.msra.mxu0 0
    %3288 = vmatpush.bf16.xpose.msra.mxu0 %v3186
    %3289 = vmatpush.bf16.xpose.msra.mxu0 %v3170
    %3290 = vmatmul.bf16.gmra.mxu0 %v3023
    %v3291 = vpop.f32.mrf.mxu0
    %v3292 = vpop.f32.mrf.mxu0
    %v3293 = vadd.f32 %v3280, %v3292
    %3294 = vdwg.mxu0
    %3295 = vmatpush.bf16.xpose.msra.mxu0 0
    %3296 = vmatpush.bf16.xpose.msra.mxu0 0
    %3297 = vmatpush.bf16.xpose.msra.mxu0 0
    %3298 = vmatpush.bf16.xpose.msra.mxu0 0
    %3299 = vmatpush.bf16.xpose.msra.mxu0 0
    %3300 = vmatpush.bf16.xpose.msra.mxu0 0
    %3301 = vmatpush.bf16.xpose.msra.mxu0 %v3187
    %3302 = vmatpush.bf16.xpose.msra.mxu0 %v3171
    %3303 = vmatmul.bf16.gmra.mxu0 %v3024
    %v3304 = vpop.f32.mrf.mxu0
    %v3305 = vpop.f32.mrf.mxu0
    %v3306 = vadd.f32 %v3293, %v3305
    %3307 = vdwg.mxu0
    %3308 = vmatpush.bf16.xpose.msra.mxu0 0
    %3309 = vmatpush.bf16.xpose.msra.mxu0 0
    %3310 = vmatpush.bf16.xpose.msra.mxu0 0
    %3311 = vmatpush.bf16.xpose.msra.mxu0 0
    %3312 = vmatpush.bf16.xpose.msra.mxu0 0
    %3313 = vmatpush.bf16.xpose.msra.mxu0 0
    %3314 = vmatpush.bf16.xpose.msra.mxu0 %v3188
    %3315 = vmatpush.bf16.xpose.msra.mxu0 %v3172
    %3316 = vmatmul.bf16.gmra.mxu0 %v3025
    %v3317 = vpop.f32.mrf.mxu0
    %v3318 = vpop.f32.mrf.mxu0
    %v3319 = vadd.f32 %v3306, %v3318
    %3320 = vdwg.mxu0
    %3321 = vmatpush.bf16.xpose.msra.mxu0 0
    %3322 = vmatpush.bf16.xpose.msra.mxu0 0
    %3323 = vmatpush.bf16.xpose.msra.mxu0 0
    %3324 = vmatpush.bf16.xpose.msra.mxu0 0
    %3325 = vmatpush.bf16.xpose.msra.mxu0 0
    %3326 = vmatpush.bf16.xpose.msra.mxu0 0
    %3327 = vmatpush.bf16.xpose.msra.mxu0 %v3189
    %3328 = vmatpush.bf16.xpose.msra.mxu0 %v3173
    %3329 = vmatmul.bf16.gmra.mxu0 %v3026
    %v3330 = vpop.f32.mrf.mxu0
    %v3331 = vpop.f32.mrf.mxu0
    %v3332 = vadd.f32 %v3319, %v3331
    %3333 = vdwg.mxu0
    %3334 = vmatpush.bf16.xpose.msra.mxu0 0
    %3335 = vmatpush.bf16.xpose.msra.mxu0 0
    %3336 = vmatpush.bf16.xpose.msra.mxu0 0
    %3337 = vmatpush.bf16.xpose.msra.mxu0 0
    %3338 = vmatpush.bf16.xpose.msra.mxu0 0
    %3339 = vmatpush.bf16.xpose.msra.mxu0 0
    %3340 = vmatpush.bf16.xpose.msra.mxu0 %v3190
    %3341 = vmatpush.bf16.xpose.msra.mxu0 %v3174
    %3342 = vmatmul.bf16.gmra.mxu0 %v3027
    %v3343 = vpop.f32.mrf.mxu0
    %v3344 = vpop.f32.mrf.mxu0
    %v3345 = vadd.f32 %v3332, %v3344
    %3346 = vdwg.mxu0
    %3347 = vmatpush.bf16.xpose.msra.mxu0 0
    %3348 = vmatpush.bf16.xpose.msra.mxu0 0
    %3349 = vmatpush.bf16.xpose.msra.mxu0 0
    %3350 = vmatpush.bf16.xpose.msra.mxu0 0
    %3351 = vmatpush.bf16.xpose.msra.mxu0 0
    %3352 = vmatpush.bf16.xpose.msra.mxu0 0
    %3353 = vmatpush.bf16.xpose.msra.mxu0 %v3191
    %3354 = vmatpush.bf16.xpose.msra.mxu0 %v3175
    %3355 = vmatmul.bf16.gmra.mxu0 %v3028
    %v3356 = vpop.f32.mrf.mxu0
    %v3357 = vpop.f32.mrf.mxu0
    %v3358 = vadd.f32 %v3345, %v3357
    %3359 = vdwg.mxu0
    %3360 = vmatpush.bf16.xpose.msra.mxu0 0
    %3361 = vmatpush.bf16.xpose.msra.mxu0 0
    %3362 = vmatpush.bf16.xpose.msra.mxu0 0
    %3363 = vmatpush.bf16.xpose.msra.mxu0 0
    %3364 = vmatpush.bf16.xpose.msra.mxu0 0
    %3365 = vmatpush.bf16.xpose.msra.mxu0 0
    %3366 = vmatpush.bf16.xpose.msra.mxu0 %v3192
    %3367 = vmatpush.bf16.xpose.msra.mxu0 %v3176
    %3368 = vmatmul.bf16.gmra.mxu0 %v3029
    %v3369 = vpop.f32.mrf.mxu0
    %v3370 = vpop.f32.mrf.mxu0
    %v3371 = vadd.f32 %v3358, %v3370
    %3372 = vdwg.mxu0
    %3373 = vmatpush.bf16.xpose.msra.mxu0 0
    %3374 = vmatpush.bf16.xpose.msra.mxu0 0
    %3375 = vmatpush.bf16.xpose.msra.mxu0 0
    %3376 = vmatpush.bf16.xpose.msra.mxu0 0
    %3377 = vmatpush.bf16.xpose.msra.mxu0 0
    %3378 = vmatpush.bf16.xpose.msra.mxu0 0
    %3379 = vmatpush.bf16.xpose.msra.mxu0 %v3193
    %3380 = vmatpush.bf16.xpose.msra.mxu0 %v3177
    %3381 = vmatmul.bf16.gmra.mxu0 %v3030
    %v3382 = vpop.f32.mrf.mxu0
    %v3383 = vpop.f32.mrf.mxu0
    %v3384 = vadd.f32 %v3371, %v3383
    %3385 = vdwg.mxu0
    %3386 = vmatpush.bf16.xpose.msra.mxu0 0
    %3387 = vmatpush.bf16.xpose.msra.mxu0 0
    %3388 = vmatpush.bf16.xpose.msra.mxu0 0
    %3389 = vmatpush.bf16.xpose.msra.mxu0 0
    %3390 = vmatpush.bf16.xpose.msra.mxu0 0
    %3391 = vmatpush.bf16.xpose.msra.mxu0 0
    %3392 = vmatpush.bf16.xpose.msra.mxu0 %v3194
    %3393 = vmatpush.bf16.xpose.msra.mxu0 %v3178
    %3394 = vmatmul.bf16.gmra.mxu0 %v3031
    %v3395 = vpop.f32.mrf.mxu0
    %v3396 = vpop.f32.mrf.mxu0
    %v3397 = vadd.f32 %v3384, %v3396
    %3398 = vdwg.mxu0
    %3399 = vmatpush.bf16.xpose.msra.mxu0 0
    %3400 = vmatpush.bf16.xpose.msra.mxu0 0
    %3401 = vmatpush.bf16.xpose.msra.mxu0 0
    %3402 = vmatpush.bf16.xpose.msra.mxu0 0
    %3403 = vmatpush.bf16.xpose.msra.mxu0 0
    %3404 = vmatpush.bf16.xpose.msra.mxu0 0
    %3405 = vmatpush.bf16.xpose.msra.mxu0 %v3195
    %3406 = vmatpush.bf16.xpose.msra.mxu0 %v3179
    %3407 = vmatmul.bf16.gmra.mxu0 %v3032
    %v3408 = vpop.f32.mrf.mxu0
    %v3409 = vpop.f32.mrf.mxu0
    %v3410 = vadd.f32 %v3397, %v3409
    %3411 = vdwg.mxu0
    %3412 = vmatpush.bf16.xpose.msra.mxu0 0
    %3413 = vmatpush.bf16.xpose.msra.mxu0 0
    %3414 = vmatpush.bf16.xpose.msra.mxu0 0
    %3415 = vmatpush.bf16.xpose.msra.mxu0 0
    %3416 = vmatpush.bf16.xpose.msra.mxu0 0
    %3417 = vmatpush.bf16.xpose.msra.mxu0 0
    %3418 = vmatpush.bf16.xpose.msra.mxu0 %v3196
    %3419 = vmatpush.bf16.xpose.msra.mxu0 %v3180
    %3420 = vmatmul.bf16.gmra.mxu0 %v3033
    %v3421 = vpop.f32.mrf.mxu0
    %v3422 = vpop.f32.mrf.mxu0
    %v3423 = vadd.f32 %v3410, %v3422
    %3424 = vdwg.mxu0
    %3425 = vmatpush.bf16.xpose.msra.mxu0 0
    %3426 = vmatpush.bf16.xpose.msra.mxu0 0
    %3427 = vmatpush.bf16.xpose.msra.mxu0 0
    %3428 = vmatpush.bf16.xpose.msra.mxu0 0
    %3429 = vmatpush.bf16.xpose.msra.mxu0 0
    %3430 = vmatpush.bf16.xpose.msra.mxu0 0
    %3431 = vmatpush.bf16.xpose.msra.mxu0 %v3197
    %3432 = vmatpush.bf16.xpose.msra.mxu0 %v3181
    %3433 = vmatmul.bf16.gmra.mxu0 %v3034
    %v3434 = vpop.f32.mrf.mxu0
    %v3435 = vpop.f32.mrf.mxu0
    %v3436 = vadd.f32 %v3423, %v3435
    %3437 = vdwg.mxu0
    %v3438 = vadd.f32 %v2527, %v3436
    %v3439 = vld [vmem:[#allocation7 + $0xf] sm:$0x1]
    %v3440 = vld [vmem:[#allocation7 + $0x10] sm:$0x1]
    %v3441 = vsel %vm206, %v3438, 0.0
    %3442 = vadd.xlane.f32.xlu0 %v3441
    %v3443 = vpop.xlane.xlu0 %3442
    %v3444 = vmul.f32 %v3443, %v216
    %v3445 = vsub.f32 %v3438, %v3444
    %v3446 = vmul.f32 %v3445, %v3445
    %v3447 = vsel %vm206, %v3446, 0.0
    %3448 = vadd.xlane.f32.xlu0 %v3447
    %v3449 = vpop.xlane.xlu0 %3448
    %v3450 = vmul.f32 %v3449, %v216
    %v3451 = vadd.f32 %v3450, 1e-05
    %v3452 = vrsqrt.pop %v3451
    %v3453 = vmul.f32 %v3452, %v3451
    %v3454 = vmul.f32 %v3453, %v3452
    %v3455 = vmul.f32 0.5, %v3454
    %v3456 = vsub.f32 1.5, %v3455
    %v3457 = vmul.f32 %v3452, %v3456
    %vm3458 = vweird.f32 %v3451
    %vm3459 = vweird.f32 %v3452
    %vm3460 = vmor %vm3458, %vm3459
    %v3461 = vsel %vm3460, %v3452, %v3457
    %v3462 = vmul.f32 %v3445, %v3461
    %v3463 = vperm.slane %v3439, 0
    %v3464 = vmul.f32 %v3462, %v3463
    %v3465 = vperm.slane %v3440, 0
    %v3466 = vadd.f32 %v3464, %v3465
    %v3467 = vld [vmem:[#allocation7 + $0x3] sm:$0x1]
    %v3468 = vld [vmem:[#allocation7 + $0x4] sm:$0x1]
    %v3469 = vsel %vm206, %v3466, 0.0
    %3470 = vadd.xlane.f32.xlu0 %v3469
    %v3471 = vpop.xlane.xlu0 %3470
    %v3472 = vmul.f32 %v3471, %v216
    %v3473 = vsub.f32 %v3466, %v3472
    %v3474 = vmul.f32 %v3473, %v3473
    %v3475 = vsel %vm206, %v3474, 0.0
    %3476 = vadd.xlane.f32.xlu0 %v3475
    %v3477 = vpop.xlane.xlu0 %3476
    %v3478 = vmul.f32 %v3477, %v216
    %v3479 = vadd.f32 %v3478, 1e-05
    %v3480 = vrsqrt.pop %v3479
    %v3481 = vmul.f32 %v3480, %v3479
    %v3482 = vmul.f32 %v3481, %v3480
    %v3483 = vmul.f32 0.5, %v3482
    %v3484 = vsub.f32 1.5, %v3483
    %v3485 = vmul.f32 %v3480, %v3484
    %vm3486 = vweird.f32 %v3479
    %vm3487 = vweird.f32 %v3480
    %vm3488 = vmor %vm3486, %vm3487
    %v3489 = vsel %vm3488, %v3480, %v3485
    %v3490 = vmul.f32 %v3473, %v3489
    %v3491 = vperm.slane %v3467, 0
    %v3492 = vmul.f32 %v3490, %v3491
    %v3493 = vperm.slane %v3468, 0
    %v3494 = vadd.f32 %v3492, %v3493
    %v3495 = vld [vmem:[#allocation13] sm:$0xff]
    %v3496 = vld [vmem:[#allocation13 + $0x8] sm:$0xff]
    %v3497 = vld [vmem:[#allocation13 + $0x10] sm:$0xff]
    %v3498 = vld [vmem:[#allocation13 + $0x18] sm:$0xff]
    %v3499 = vld [vmem:[%s13] sm:$0x1]
    %v3501 = vperm.slane %v3499, 0
    %v3504 = vsel %vm206, %v3494, 0
    %3506 = vmatpush.msra.mxu0 0.0
    %3507 = vmatpush.msra.mxu0 0.0
    %3508 = vmatpush.msra.mxu0 0.0
    %3509 = vmatpush.msra.mxu0 0.0
    %3510 = vmatpush.msra.mxu0 0.0
    %3511 = vmatpush.msra.mxu0 0.0
    %3512 = vmatpush.msra.mxu0 0.0
    %3513 = vmatpush.msra.mxu0 0.0
    %3514 = vmatpush.msra.mxu0 0.0
    %3515 = vmatpush.msra.mxu0 0.0
    %3516 = vmatpush.msra.mxu0 0.0
    %3517 = vmatpush.msra.mxu0 0.0
    %3518 = vmatpush.msra.mxu0 %v3498
    %3519 = vmatpush.msra.mxu0 %v3497
    %3520 = vmatpush.msra.mxu0 %v3496
    %3521 = vmatpush.msra.mxu0 %v3495
    %3522 = vmatmul.f32.gmra.mxu0 %v3504
    %v3523 = vpop.f32.mrf.mxu0
    %v3524 = vadd.f32 %v3501, %v3523
    %3525 = vdwg.mxu0
    %3526 = vst [vmem:[%s14] sm:$0xff] %v3524
    // Predicated region
    $region90: #{classification_forward.1} parent=1 // pred_check
      _
    $region91: #{classification_forward.1} parent=1 // pred_check_branch
      %3528 = sbr.rel (0) target = $region93
    $region92: #{classification_forward.1} parent=1 // pred_region
      _
    $region93: #{classification_forward.1} parent=1 // pred_fallthru
      _
    // Predicated region
    $region94: #{classification_forward.1} parent=1 // pred_check
      _
    $region95: #{classification_forward.1} parent=1 // pred_check_branch
      %3530 = sbr.rel (0) target = $region97
    $region96: #{classification_forward.1} parent=1 // pred_region
      _
    $region97: #{classification_forward.1} parent=1 // pred_fallthru
      _
    %3531 = vsyncpa [#allocation3], 1
    %3532 = vsyncpa [#allocation5], 1
    %3533 = vsyncpa [#allocation8], 1
    %3534 = vsyncpa [#allocation11], 1
    %3535 = vsyncpa [#allocation14], 1

</llo_original>
